<compile_context>
chip_gen: v7x
topology: tpu7x:2x2x1
jax: 0.10.0
libtpu: 0.0.40
codegen_flags: <defaults>
</compile_context>

<pallas_src>
import functools

import jax
import jax.numpy as jnp
from jax.experimental import pallas as pl
from jax.experimental.pallas import tpu as pltpu


def _layer_norm(x, gamma, beta, eps=1e-5):
    mu = jnp.mean(x, axis=-1, keepdims=True)
    var = jnp.mean((x - mu) ** 2, axis=-1, keepdims=True)
    return (x - mu) * jax.lax.rsqrt(var + eps) * gamma + beta


def _mhca_layer_kernel(
    xq_ref, xkv_ref,
    wq_ref, wk_ref, wv_ref, wo_ref, bo_ref,
    g1_ref, be1_ref,
    w1_ref, b1_ref, w2_ref, b2_ref,
    g2_ref, be2_ref,
    o_ref,
    *, bm, num_heads, head_dim, compute_dtype, approx_recip,
):
    rows_q, d = xq_ref.shape        # rows_q = bm * nq  (lane-dense packed batch block)
    rows_kv, _ = xkv_ref.shape      # rows_kv = bm * nkv
    nq = rows_q // bm
    nkv = rows_kv // bm
    H, Dh = num_heads, head_dim
    inner = H * Dh
    cd = compute_dtype

    xq = xq_ref[...]                # (bm*nq, d)  f32 residual / LayerNorm path stays f32
    xkv = xkv_ref[...]              # (bm*nkv, d)

    # ---- q/k/v projections: wide lane-dense 2-D MXU matmuls (f32 accumulation) ----
    # head_dim**-0.5 scale is pre-folded into wq by the wrapper.
    q2 = jnp.dot(xq.astype(cd), wq_ref[...], preferred_element_type=jnp.float32)   # (bm*nq, inner)
    k2 = jnp.dot(xkv.astype(cd), wk_ref[...], preferred_element_type=jnp.float32)  # (bm*nkv, inner)
    v2 = jnp.dot(xkv.astype(cd), wv_ref[...], preferred_element_type=jnp.float32)  # (bm*nkv, inner)

    # Un-pack the batch block for attention (leading-dim split; lane dim untouched).
    q3 = q2.reshape(bm, nq, inner).astype(cd)
    k3 = k2.reshape(bm, nkv, inner).astype(cd)
    v3 = v2.reshape(bm, nkv, inner).astype(cd)

    # ---- per-head scaled dot-product attention (static lane slices, batched over bm) ----
    # TODO(synk): optional boolean mask [nq, nkv] not applied here (mask=None path only).
    # TODO(synk): flash-style nkv tiling (online softmax) for long sequences.
    o_heads = []
    for h in range(H):
        qh = q3[:, :, h * Dh:(h + 1) * Dh]            # (bm, nq, Dh)
        kh = k3[:, :, h * Dh:(h + 1) * Dh]            # (bm, nkv, Dh)
        vh = v3[:, :, h * Dh:(h + 1) * Dh]            # (bm, nkv, Dh)
        s = jnp.einsum("bqe,bke->bqk", qh, kh,
                       preferred_element_type=jnp.float32)   # (bm, nq, nkv) f32
        s = s - jnp.max(s, axis=-1, keepdims=True)           # f32 softmax statistics
        p = jnp.exp(s)
        denom = jnp.sum(p, axis=-1, keepdims=True)
        if approx_recip:
            p = p * pl.reciprocal(denom, approx=True)        # EUP slot, nearly free
        else:
            p = p / denom
        o_heads.append(jnp.einsum("bqk,bke->bqe", p.astype(cd), vh,
                                  preferred_element_type=jnp.float32))  # (bm, nq, Dh)

    # ---- output projection: ONE matmul with full contraction depth K = H*Dh ----
    o_cat = jnp.concatenate(o_heads, axis=-1).reshape(rows_q, inner)
    attn = jnp.dot(o_cat.astype(cd), wo_ref[...], preferred_element_type=jnp.float32)
    attn = attn + bo_ref[...]

    # ---- residual + LayerNorm1 (f32) ----
    x = _layer_norm(xq + attn, g1_ref[...], be1_ref[...])

    # ---- feed-forward: Linear -> ReLU -> Linear (dropout = identity at p=0) ----
    h1 = jnp.dot(x.astype(cd), w1_ref[...], preferred_element_type=jnp.float32)
    h1 = jnp.maximum(h1 + b1_ref[...], 0.0)
    ff = jnp.dot(h1.astype(cd), w2_ref[...], preferred_element_type=jnp.float32)
    ff = ff + b2_ref[...]

    # ---- residual + LayerNorm2 (f32) ----
    o_ref[...] = _layer_norm(x + ff, g2_ref[...], be2_ref[...]).astype(o_ref.dtype)


def mhca_layer(xq, xkv, params, *, num_heads, head_dim,
               compute_dtype=jnp.float32, out_dtype=None,
               batch_block=8, approx_softmax_recip=True):
    m, nq, d = xq.shape
    _, nkv, _ = xkv.shape
    inner = num_heads * head_dim
    ff_dim = params["w1"].shape[1]
    cd = compute_dtype
    out_dtype = xq.dtype if out_dtype is None else out_dtype
    assert params["wq"].shape == (d, inner)

    # Pack several batch elements per grid step (per-step overhead ~0.35us dominates at
    # small per-element work); pick the largest divisor of m that is <= batch_block.
    bm = 1
    for c in range(1, min(m, batch_block) + 1):
        if m % c == 0:
            bm = c
    grid = (m // bm,)

    # Lane-dense flattened views of the activations: (m, n, d) -> (m*n, d).  Free at
    # trace time; each grid step then reads/writes one contiguous (bm*n, d) slab.
    xq2 = xq.reshape(m * nq, d).astype(jnp.float32)
    xkv2 = xkv.reshape(m * nkv, d).astype(jnp.float32)

    f32 = jnp.float32
    weights = (
        # head_dim**-0.5 folded into wq at trace time: saves scaling the (nq, nkv)
        # score tensor (the largest intermediate) inside the kernel.
        (params["wq"] * (head_dim ** -0.5)).astype(cd),
        params["wk"].astype(cd),
        params["wv"].astype(cd),
        params["wo"].astype(cd),                # (inner, d): single wide output projection
        params["bo"].astype(f32),
        params["g1"].astype(f32), params["be1"].astype(f32),
        params["w1"].astype(cd), params["b1"].astype(f32),
        params["w2"].astype(cd), params["b2"].astype(f32),
        params["g2"].astype(f32), params["be2"].astype(f32),
    )

    kernel = functools.partial(
        _mhca_layer_kernel,
        bm=bm, num_heads=num_heads, head_dim=head_dim,
        compute_dtype=cd, approx_recip=approx_softmax_recip,
    )

    # Advisory cost estimate so XLA schedules neighbours around the kernel sensibly.
    flops = 2 * m * (
        nq * d * inner + 2 * nkv * d * inner        # q / k / v projections
        + 2 * nq * nkv * inner                      # q@k^T and p@v
        + nq * inner * d                            # output projection
        + 2 * nq * d * ff_dim                       # feed-forward
    )
    transcendentals = m * num_heads * nq * nkv      # softmax exp
    bytes_accessed = int(
        4 * (xq.size + xkv.size)
        + jnp.dtype(out_dtype).itemsize * m * nq * d
        + sum(int(w.size) * jnp.dtype(w.dtype).itemsize for w in weights)
    )

    def run(single_buffer_weights):
        def weight_spec(w):
            nd = w.ndim
            idx = lambda b, _nd=nd: (0,) * _nd      # grid-invariant: fetched once
            if single_buffer_weights:
                # Constant-index blocks never change across the batch grid ->
                # single-buffer them to halve their VMEM footprint.
                return pl.BlockSpec(w.shape, idx, pipeline_mode=pl.Buffered(1))
            return pl.BlockSpec(w.shape, idx)

        return pl.pallas_call(
            kernel,
            out_shape=jax.ShapeDtypeStruct((m * nq, d), out_dtype),
            grid_spec=pltpu.PrefetchScalarGridSpec(
                num_scalar_prefetch=0,
                grid=grid,
                in_specs=[
                    pl.BlockSpec((bm * nq, d), lambda b: (b, 0)),     # xq  (packed batch)
                    pl.BlockSpec((bm * nkv, d), lambda b: (b, 0)),    # xkv (packed batch)
                ] + [weight_spec(w) for w in weights],
                out_specs=pl.BlockSpec((bm * nq, d), lambda b: (b, 0)),
            ),
            compiler_params=pltpu.CompilerParams(
                # batch axis is fully independent -> megacore-shardable
                dimension_semantics=("parallel",),
                # 48 MiB fits every generation (v7x has only 64 MiB physical per core);
                # raise toward ~96-110 MiB on v5e/v6e once shapes are production-sized.
                vmem_limit_bytes=48 * 1024 * 1024,
            ),
            cost_estimate=pl.CostEstimate(
                flops=int(flops),
                transcendentals=int(transcendentals),
                bytes_accessed=bytes_accessed,
            ),
        )(xq2, xkv2, *weights)

    try:
        out2 = run(single_buffer_weights=True)
    except Exception:
        # TODO(synk): pl.Buffered(1) pipeline_mode unsupported on this jax build;
        # falling back to default (double-buffered) weight blocks.
        out2 = run(single_buffer_weights=False)

    return out2.reshape(m, nq, d)


# ---------------- pure-JAX reference for verification ----------------
def mhca_layer_ref(xq, xkv, params, *, num_heads, head_dim):
    q = xq @ params["wq"]
    k = xkv @ params["wk"]
    v = xkv @ params["wv"]

    def split(t):  # (m, n, H*Dh) -> (m, H, n, Dh)
        m_, n_, _ = t.shape
        return t.reshape(m_, n_, num_heads, head_dim).transpose(0, 2, 1, 3)

    qh, kh, vh = split(q), split(k), split(v)
    s = jnp.einsum("mhqd,mhkd->mhqk", qh, kh) * (head_dim ** -0.5)
    p = jax.nn.softmax(s, axis=-1)
    o = jnp.einsum("mhqk,mhkd->mhqd", p, vh)
    o = o.transpose(0, 2, 1, 3).reshape(xq.shape[0], xq.shape[1], num_heads * head_dim)
    attn = o @ params["wo"] + params["bo"]

    def ln(x, g, b, eps=1e-5):
        mu = jnp.mean(x, axis=-1, keepdims=True)
        var = jnp.mean((x - mu) ** 2, axis=-1, keepdims=True)
        return (x - mu) / jnp.sqrt(var + eps) * g + b

    x = ln(xq + attn, params["g1"], params["be1"])
    ff = jnp.maximum(x @ params["w1"] + params["b1"], 0.0) @ params["w2"] + params["b2"]
    return ln(x + ff, params["g2"], params["be2"])


if __name__ == "__main__":
    # small shapes consistent with the module's [m, n, d] interface
    m, nq, nkv, d = 2, 8, 16, 32
    num_heads, head_dim = 4, 8          # inner_dim = num_heads * head_dim = d
    ff_dim = d                          # feedforward_dim defaults to embed_dim

    key = jax.random.PRNGKey(0)
    keys = jax.random.split(key, 12)

    xq = jax.random.normal(keys[0], (m, nq, d), jnp.float32)
    xkv = jax.random.normal(keys[1], (m, nkv, d), jnp.float32)

    inner = num_heads * head_dim
    s = 0.1
    params = {
        # attention projections (Linear bias=False for q/k/v, bias for out proj)
        "wq": s * jax.random.normal(keys[2], (d, inner), jnp.float32),
        "wk": s * jax.random.normal(keys[3], (d, inner), jnp.float32),
        "wv": s * jax.random.normal(keys[4], (d, inner), jnp.float32),
        "wo": s * jax.random.normal(keys[5], (inner, d), jnp.float32),
        "bo": s * jax.random.normal(keys[6], (1, d), jnp.float32),
        # LayerNorm1 / LayerNorm2 affine params
        "g1": jnp.ones((1, d), jnp.float32),
        "be1": jnp.zeros((1, d), jnp.float32),
        "g2": jnp.ones((1, d), jnp.float32),
        "be2": jnp.zeros((1, d), jnp.float32),
        # feed-forward block
        "w1": s * jax.random.normal(keys[7], (d, ff_dim), jnp.float32),
        "b1": s * jax.random.normal(keys[8], (1, ff_dim), jnp.float32),
        "w2": s * jax.random.normal(keys[9], (ff_dim, d), jnp.float32),
        "b2": s * jax.random.normal(keys[10], (1, d), jnp.float32),
    }

    ref = mhca_layer_ref(xq, xkv, params, num_heads=num_heads, head_dim=head_dim)

    # f32 MXU operands (exact-parity path). Tolerance covers the EUP approx reciprocal.
    out_f32 = jax.block_until_ready(
        mhca_layer(xq, xkv, params, num_heads=num_heads, head_dim=head_dim,
                   compute_dtype=jnp.float32))
    assert out_f32.shape == (m, nq, d)
    assert jnp.allclose(out_f32, ref, atol=5e-3, rtol=5e-3), \
        float(jnp.max(jnp.abs(out_f32 - ref)))

    # bf16 MXU operands (recommended production path on v5e/v6e/v7x):
    # f32 accumulation, f32 softmax/LayerNorm statistics.
    out_bf16 = jax.block_until_ready(
        mhca_layer(xq, xkv, params, num_heads=num_heads, head_dim=head_dim,
                   compute_dtype=jnp.bfloat16))
    assert jnp.allclose(out_bf16, ref, atol=5e-2, rtol=5e-2), \
        float(jnp.max(jnp.abs(out_bf16 - ref)))

    print("KERNEL_OK")
</pallas_src>

<mosaic_0001>
module attributes {stable_mosaic.version = 11 : i64} {
  func.func @_mhca_layer_kernel(%arg0: i32, %arg1: memref<16x32xf32, #tpu.memory_space<vmem>>, %arg2: memref<32x32xf32, #tpu.memory_space<vmem>>, %arg3: memref<32x32xf32, #tpu.memory_space<vmem>>, %arg4: memref<32x32xf32, #tpu.memory_space<vmem>>, %arg5: memref<32x32xf32, #tpu.memory_space<vmem>>, %arg6: memref<32x32xf32, #tpu.memory_space<vmem>>, %arg7: memref<1x32xf32, #tpu.memory_space<vmem>>, %arg8: memref<1x32xf32, #tpu.memory_space<vmem>>, %arg9: memref<1x32xf32, #tpu.memory_space<vmem>>, %arg10: memref<32x32xf32, #tpu.memory_space<vmem>>, %arg11: memref<1x32xf32, #tpu.memory_space<vmem>>, %arg12: memref<32x32xf32, #tpu.memory_space<vmem>>, %arg13: memref<1x32xf32, #tpu.memory_space<vmem>>, %arg14: memref<1x32xf32, #tpu.memory_space<vmem>>, %arg15: memref<1x32xf32, #tpu.memory_space<vmem>>, %arg16: memref<16x32xf32, #tpu.memory_space<vmem>>) attributes {dimension_semantics = [#tpu.dimension_semantics<parallel>], iteration_bounds = array<i64: 1>, scalar_prefetch = 0 : i64, scratch_operands = 0 : i64, tpu.core_type = #tpu.core_type<tc>, window_params = [{transform_indices = @transform_0, window_bounds = array<i64: 16, 32>}, {transform_indices = @transform_1, window_bounds = array<i64: 32, 32>}, {pipeline_mode = #tpu.pipeline_mode<synchronous>, transform_indices = @transform_2, window_bounds = array<i64: 32, 32>}, {pipeline_mode = #tpu.pipeline_mode<synchronous>, transform_indices = @transform_3, window_bounds = array<i64: 32, 32>}, {pipeline_mode = #tpu.pipeline_mode<synchronous>, transform_indices = @transform_4, window_bounds = array<i64: 32, 32>}, {pipeline_mode = #tpu.pipeline_mode<synchronous>, transform_indices = @transform_5, window_bounds = array<i64: 32, 32>}, {pipeline_mode = #tpu.pipeline_mode<synchronous>, transform_indices = @transform_6, window_bounds = array<i64: 1, 32>}, {pipeline_mode = #tpu.pipeline_mode<synchronous>, transform_indices = @transform_7, window_bounds = array<i64: 1, 32>}, {pipeline_mode = #tpu.pipeline_mode<synchronous>, transform_indices = @transform_8, window_bounds = array<i64: 1, 32>}, {pipeline_mode = #tpu.pipeline_mode<synchronous>, transform_indices = @transform_9, window_bounds = array<i64: 32, 32>}, {pipeline_mode = #tpu.pipeline_mode<synchronous>, transform_indices = @transform_10, window_bounds = array<i64: 1, 32>}, {pipeline_mode = #tpu.pipeline_mode<synchronous>, transform_indices = @transform_11, window_bounds = array<i64: 32, 32>}, {pipeline_mode = #tpu.pipeline_mode<synchronous>, transform_indices = @transform_12, window_bounds = array<i64: 1, 32>}, {pipeline_mode = #tpu.pipeline_mode<synchronous>, transform_indices = @transform_13, window_bounds = array<i64: 1, 32>}, {pipeline_mode = #tpu.pipeline_mode<synchronous>, transform_indices = @transform_14, window_bounds = array<i64: 1, 32>}, {transform_indices = @transform_15, window_bounds = array<i64: 16, 32>}]} {
    %c0 = arith.constant 0 : index
    %c0_0 = arith.constant 0 : index
    %0 = vector.load %arg1[%c0, %c0_0] : memref<16x32xf32, #tpu.memory_space<vmem>>, vector<16x32xf32>
    %c0_1 = arith.constant 0 : index
    %c0_2 = arith.constant 0 : index
    %1 = vector.load %arg2[%c0_1, %c0_2] : memref<32x32xf32, #tpu.memory_space<vmem>>, vector<32x32xf32>
    %c0_3 = arith.constant 0 : index
    %c0_4 = arith.constant 0 : index
    %2 = vector.load %arg3[%c0_3, %c0_4] : memref<32x32xf32, #tpu.memory_space<vmem>>, vector<32x32xf32>
    %cst = arith.constant dense<0.000000e+00> : vector<16x32xf32>
    %3 = tpu.matmul %0, %2, %cst {dimension_numbers = #tpu.dot_dimension_numbers<[1], [0], [0], [1], [0, 0, 1, 1], [], []>} : vector<16x32xf32>, vector<32x32xf32>, vector<16x32xf32> -> vector<16x32xf32>
    %c0_5 = arith.constant 0 : index
    %c0_6 = arith.constant 0 : index
    %4 = vector.load %arg4[%c0_5, %c0_6] : memref<32x32xf32, #tpu.memory_space<vmem>>, vector<32x32xf32>
    %cst_7 = arith.constant dense<0.000000e+00> : vector<32x32xf32>
    %5 = tpu.matmul %1, %4, %cst_7 {dimension_numbers = #tpu.dot_dimension_numbers<[1], [0], [0], [1], [0, 0, 1, 1], [], []>} : vector<32x32xf32>, vector<32x32xf32>, vector<32x32xf32> -> vector<32x32xf32>
    %c0_8 = arith.constant 0 : index
    %c0_9 = arith.constant 0 : index
    %6 = vector.load %arg5[%c0_8, %c0_9] : memref<32x32xf32, #tpu.memory_space<vmem>>, vector<32x32xf32>
    %cst_10 = arith.constant dense<0.000000e+00> : vector<32x32xf32>
    %7 = tpu.matmul %1, %6, %cst_10 {dimension_numbers = #tpu.dot_dimension_numbers<[1], [0], [0], [1], [0, 0, 1, 1], [], []>} : vector<32x32xf32>, vector<32x32xf32>, vector<32x32xf32> -> vector<32x32xf32>
    %8 = vector.shape_cast %3 : vector<16x32xf32> to vector<2x8x32xf32>
    %9 = vector.shape_cast %5 : vector<32x32xf32> to vector<2x16x32xf32>
    %10 = vector.shape_cast %7 : vector<32x32xf32> to vector<2x16x32xf32>
    %11 = vector.extract_strided_slice %8 {offsets = [0, 0, 0], sizes = [2, 8, 8], strides = [1, 1, 1]} : vector<2x8x32xf32> to vector<2x8x8xf32>
    %12 = vector.extract_strided_slice %9 {offsets = [0, 0, 0], sizes = [2, 16, 8], strides = [1, 1, 1]} : vector<2x16x32xf32> to vector<2x16x8xf32>
    %13 = vector.extract_strided_slice %10 {offsets = [0, 0, 0], sizes = [2, 16, 8], strides = [1, 1, 1]} : vector<2x16x32xf32> to vector<2x16x8xf32>
    "tpu.trace_start"() <{level = 10 : i32, message = "bqe,bke->bqk"}> : () -> ()
    %cst_11 = arith.constant dense<0.000000e+00> : vector<2x8x16xf32>
    %14 = tpu.matmul %11, %12, %cst_11 {dimension_numbers = #tpu.dot_dimension_numbers<[2], [2], [1], [1], [0, 0, 0, 1, 1, 1], [0], [0]>} : vector<2x8x8xf32>, vector<2x16x8xf32>, vector<2x8x16xf32> -> vector<2x8x16xf32>
    "tpu.trace_stop"() : () -> ()
    %cst_12 = arith.constant dense<0xFF800000> : vector<2x8xf32>
    %15 = vector.multi_reduction <maximumf>, %14, %cst_12 [2] : vector<2x8x16xf32> to vector<2x8xf32>
    %16 = vector.shape_cast %15 : vector<2x8xf32> to vector<2x8x1xf32>
    %17 = vector.broadcast %16 : vector<2x8x1xf32> to vector<2x8x16xf32>
    %18 = arith.subf %14, %17 : vector<2x8x16xf32>
    %19 = math.exp %18 : vector<2x8x16xf32>
    %cst_13 = arith.constant dense<0.000000e+00> : vector<2x8xf32>
    %20 = vector.multi_reduction <add>, %19, %cst_13 [2] : vector<2x8x16xf32> to vector<2x8xf32>
    %21 = vector.shape_cast %20 : vector<2x8xf32> to vector<2x8x1xf32>
    %22 = tpu.reciprocal %21 {approx = true} : vector<2x8x1xf32> -> vector<2x8x1xf32>
    %23 = vector.broadcast %22 : vector<2x8x1xf32> to vector<2x8x16xf32>
    %24 = arith.mulf %19, %23 : vector<2x8x16xf32>
    "tpu.trace_start"() <{level = 10 : i32, message = "bqk,bke->bqe"}> : () -> ()
    %cst_14 = arith.constant dense<0.000000e+00> : vector<2x8x8xf32>
    %25 = tpu.matmul %24, %13, %cst_14 {dimension_numbers = #tpu.dot_dimension_numbers<[2], [1], [1], [2], [0, 0, 0, 1, 1, 2], [0], [0]>} : vector<2x8x16xf32>, vector<2x16x8xf32>, vector<2x8x8xf32> -> vector<2x8x8xf32>
    "tpu.trace_stop"() : () -> ()
    %26 = vector.extract_strided_slice %8 {offsets = [0, 0, 8], sizes = [2, 8, 8], strides = [1, 1, 1]} : vector<2x8x32xf32> to vector<2x8x8xf32>
    %27 = vector.extract_strided_slice %9 {offsets = [0, 0, 8], sizes = [2, 16, 8], strides = [1, 1, 1]} : vector<2x16x32xf32> to vector<2x16x8xf32>
    %28 = vector.extract_strided_slice %10 {offsets = [0, 0, 8], sizes = [2, 16, 8], strides = [1, 1, 1]} : vector<2x16x32xf32> to vector<2x16x8xf32>
    "tpu.trace_start"() <{level = 10 : i32, message = "bqe,bke->bqk"}> : () -> ()
    %cst_15 = arith.constant dense<0.000000e+00> : vector<2x8x16xf32>
    %29 = tpu.matmul %26, %27, %cst_15 {dimension_numbers = #tpu.dot_dimension_numbers<[2], [2], [1], [1], [0, 0, 0, 1, 1, 1], [0], [0]>} : vector<2x8x8xf32>, vector<2x16x8xf32>, vector<2x8x16xf32> -> vector<2x8x16xf32>
    "tpu.trace_stop"() : () -> ()
    %cst_16 = arith.constant dense<0xFF800000> : vector<2x8xf32>
    %30 = vector.multi_reduction <maximumf>, %29, %cst_16 [2] : vector<2x8x16xf32> to vector<2x8xf32>
    %31 = vector.shape_cast %30 : vector<2x8xf32> to vector<2x8x1xf32>
    %32 = vector.broadcast %31 : vector<2x8x1xf32> to vector<2x8x16xf32>
    %33 = arith.subf %29, %32 : vector<2x8x16xf32>
    %34 = math.exp %33 : vector<2x8x16xf32>
    %cst_17 = arith.constant dense<0.000000e+00> : vector<2x8xf32>
    %35 = vector.multi_reduction <add>, %34, %cst_17 [2] : vector<2x8x16xf32> to vector<2x8xf32>
    %36 = vector.shape_cast %35 : vector<2x8xf32> to vector<2x8x1xf32>
    %37 = tpu.reciprocal %36 {approx = true} : vector<2x8x1xf32> -> vector<2x8x1xf32>
    %38 = vector.broadcast %37 : vector<2x8x1xf32> to vector<2x8x16xf32>
    %39 = arith.mulf %34, %38 : vector<2x8x16xf32>
    "tpu.trace_start"() <{level = 10 : i32, message = "bqk,bke->bqe"}> : () -> ()
    %cst_18 = arith.constant dense<0.000000e+00> : vector<2x8x8xf32>
    %40 = tpu.matmul %39, %28, %cst_18 {dimension_numbers = #tpu.dot_dimension_numbers<[2], [1], [1], [2], [0, 0, 0, 1, 1, 2], [0], [0]>} : vector<2x8x16xf32>, vector<2x16x8xf32>, vector<2x8x8xf32> -> vector<2x8x8xf32>
    "tpu.trace_stop"() : () -> ()
    %41 = vector.extract_strided_slice %8 {offsets = [0, 0, 16], sizes = [2, 8, 8], strides = [1, 1, 1]} : vector<2x8x32xf32> to vector<2x8x8xf32>
    %42 = vector.extract_strided_slice %9 {offsets = [0, 0, 16], sizes = [2, 16, 8], strides = [1, 1, 1]} : vector<2x16x32xf32> to vector<2x16x8xf32>
    %43 = vector.extract_strided_slice %10 {offsets = [0, 0, 16], sizes = [2, 16, 8], strides = [1, 1, 1]} : vector<2x16x32xf32> to vector<2x16x8xf32>
    "tpu.trace_start"() <{level = 10 : i32, message = "bqe,bke->bqk"}> : () -> ()
    %cst_19 = arith.constant dense<0.000000e+00> : vector<2x8x16xf32>
    %44 = tpu.matmul %41, %42, %cst_19 {dimension_numbers = #tpu.dot_dimension_numbers<[2], [2], [1], [1], [0, 0, 0, 1, 1, 1], [0], [0]>} : vector<2x8x8xf32>, vector<2x16x8xf32>, vector<2x8x16xf32> -> vector<2x8x16xf32>
    "tpu.trace_stop"() : () -> ()
    %cst_20 = arith.constant dense<0xFF800000> : vector<2x8xf32>
    %45 = vector.multi_reduction <maximumf>, %44, %cst_20 [2] : vector<2x8x16xf32> to vector<2x8xf32>
    %46 = vector.shape_cast %45 : vector<2x8xf32> to vector<2x8x1xf32>
    %47 = vector.broadcast %46 : vector<2x8x1xf32> to vector<2x8x16xf32>
    %48 = arith.subf %44, %47 : vector<2x8x16xf32>
    %49 = math.exp %48 : vector<2x8x16xf32>
    %cst_21 = arith.constant dense<0.000000e+00> : vector<2x8xf32>
    %50 = vector.multi_reduction <add>, %49, %cst_21 [2] : vector<2x8x16xf32> to vector<2x8xf32>
    %51 = vector.shape_cast %50 : vector<2x8xf32> to vector<2x8x1xf32>
    %52 = tpu.reciprocal %51 {approx = true} : vector<2x8x1xf32> -> vector<2x8x1xf32>
    %53 = vector.broadcast %52 : vector<2x8x1xf32> to vector<2x8x16xf32>
    %54 = arith.mulf %49, %53 : vector<2x8x16xf32>
    "tpu.trace_start"() <{level = 10 : i32, message = "bqk,bke->bqe"}> : () -> ()
    %cst_22 = arith.constant dense<0.000000e+00> : vector<2x8x8xf32>
    %55 = tpu.matmul %54, %43, %cst_22 {dimension_numbers = #tpu.dot_dimension_numbers<[2], [1], [1], [2], [0, 0, 0, 1, 1, 2], [0], [0]>} : vector<2x8x16xf32>, vector<2x16x8xf32>, vector<2x8x8xf32> -> vector<2x8x8xf32>
    "tpu.trace_stop"() : () -> ()
    %56 = vector.extract_strided_slice %8 {offsets = [0, 0, 24], sizes = [2, 8, 8], strides = [1, 1, 1]} : vector<2x8x32xf32> to vector<2x8x8xf32>
    %57 = vector.extract_strided_slice %9 {offsets = [0, 0, 24], sizes = [2, 16, 8], strides = [1, 1, 1]} : vector<2x16x32xf32> to vector<2x16x8xf32>
    %58 = vector.extract_strided_slice %10 {offsets = [0, 0, 24], sizes = [2, 16, 8], strides = [1, 1, 1]} : vector<2x16x32xf32> to vector<2x16x8xf32>
    "tpu.trace_start"() <{level = 10 : i32, message = "bqe,bke->bqk"}> : () -> ()
    %cst_23 = arith.constant dense<0.000000e+00> : vector<2x8x16xf32>
    %59 = tpu.matmul %56, %57, %cst_23 {dimension_numbers = #tpu.dot_dimension_numbers<[2], [2], [1], [1], [0, 0, 0, 1, 1, 1], [0], [0]>} : vector<2x8x8xf32>, vector<2x16x8xf32>, vector<2x8x16xf32> -> vector<2x8x16xf32>
    "tpu.trace_stop"() : () -> ()
    %cst_24 = arith.constant dense<0xFF800000> : vector<2x8xf32>
    %60 = vector.multi_reduction <maximumf>, %59, %cst_24 [2] : vector<2x8x16xf32> to vector<2x8xf32>
    %61 = vector.shape_cast %60 : vector<2x8xf32> to vector<2x8x1xf32>
    %62 = vector.broadcast %61 : vector<2x8x1xf32> to vector<2x8x16xf32>
    %63 = arith.subf %59, %62 : vector<2x8x16xf32>
    %64 = math.exp %63 : vector<2x8x16xf32>
    %cst_25 = arith.constant dense<0.000000e+00> : vector<2x8xf32>
    %65 = vector.multi_reduction <add>, %64, %cst_25 [2] : vector<2x8x16xf32> to vector<2x8xf32>
    %66 = vector.shape_cast %65 : vector<2x8xf32> to vector<2x8x1xf32>
    %67 = tpu.reciprocal %66 {approx = true} : vector<2x8x1xf32> -> vector<2x8x1xf32>
    %68 = vector.broadcast %67 : vector<2x8x1xf32> to vector<2x8x16xf32>
    %69 = arith.mulf %64, %68 : vector<2x8x16xf32>
    "tpu.trace_start"() <{level = 10 : i32, message = "bqk,bke->bqe"}> : () -> ()
    %cst_26 = arith.constant dense<0.000000e+00> : vector<2x8x8xf32>
    %70 = tpu.matmul %69, %58, %cst_26 {dimension_numbers = #tpu.dot_dimension_numbers<[2], [1], [1], [2], [0, 0, 0, 1, 1, 2], [0], [0]>} : vector<2x8x16xf32>, vector<2x16x8xf32>, vector<2x8x8xf32> -> vector<2x8x8xf32>
    "tpu.trace_stop"() : () -> ()
    %71 = tpu.concatenate %25, %40, %55, %70 in 2 : vector<2x8x8xf32>, vector<2x8x8xf32>, vector<2x8x8xf32>, vector<2x8x8xf32> -> vector<2x8x32xf32>
    %72 = vector.shape_cast %71 : vector<2x8x32xf32> to vector<16x32xf32>
    %c0_27 = arith.constant 0 : index
    %c0_28 = arith.constant 0 : index
    %73 = vector.load %arg6[%c0_27, %c0_28] : memref<32x32xf32, #tpu.memory_space<vmem>>, vector<32x32xf32>
    %cst_29 = arith.constant dense<0.000000e+00> : vector<16x32xf32>
    %74 = tpu.matmul %72, %73, %cst_29 {dimension_numbers = #tpu.dot_dimension_numbers<[1], [0], [0], [1], [0, 0, 1, 1], [], []>} : vector<16x32xf32>, vector<32x32xf32>, vector<16x32xf32> -> vector<16x32xf32>
    %c0_30 = arith.constant 0 : index
    %c0_31 = arith.constant 0 : index
    %75 = vector.load %arg7[%c0_30, %c0_31] : memref<1x32xf32, #tpu.memory_space<vmem>>, vector<1x32xf32>
    %76 = vector.broadcast %75 : vector<1x32xf32> to vector<16x32xf32>
    %77 = arith.addf %74, %76 : vector<16x32xf32>
    %78 = arith.addf %0, %77 : vector<16x32xf32>
    %c0_32 = arith.constant 0 : index
    %c0_33 = arith.constant 0 : index
    %79 = vector.load %arg8[%c0_32, %c0_33] : memref<1x32xf32, #tpu.memory_space<vmem>>, vector<1x32xf32>
    %c0_34 = arith.constant 0 : index
    %c0_35 = arith.constant 0 : index
    %80 = vector.load %arg9[%c0_34, %c0_35] : memref<1x32xf32, #tpu.memory_space<vmem>>, vector<1x32xf32>
    %cst_36 = arith.constant dense<0.000000e+00> : vector<16xf32>
    %81 = vector.multi_reduction <add>, %78, %cst_36 [1] : vector<16x32xf32> to vector<16xf32>
    %82 = vector.shape_cast %81 : vector<16xf32> to vector<16x1xf32>
    %cst_37 = arith.constant 3.200000e+01 : f32
    %83 = vector.broadcast %cst_37 : f32 to vector<16x1xf32>
    %84 = arith.divf %82, %83 : vector<16x1xf32>
    %85 = vector.broadcast %84 : vector<16x1xf32> to vector<16x32xf32>
    %86 = arith.subf %78, %85 : vector<16x32xf32>
    %87 = arith.mulf %86, %86 : vector<16x32xf32>
    %cst_38 = arith.constant dense<0.000000e+00> : vector<16xf32>
    %88 = vector.multi_reduction <add>, %87, %cst_38 [1] : vector<16x32xf32> to vector<16xf32>
    %89 = vector.shape_cast %88 : vector<16xf32> to vector<16x1xf32>
    %cst_39 = arith.constant 3.200000e+01 : f32
    %90 = vector.broadcast %cst_39 : f32 to vector<16x1xf32>
    %91 = arith.divf %89, %90 : vector<16x1xf32>
    %92 = vector.broadcast %84 : vector<16x1xf32> to vector<16x32xf32>
    %93 = arith.subf %78, %92 : vector<16x32xf32>
    %cst_40 = arith.constant 9.99999974E-6 : f32
    %94 = vector.broadcast %cst_40 : f32 to vector<16x1xf32>
    %95 = arith.addf %91, %94 : vector<16x1xf32>
    %96 = math.rsqrt %95 : vector<16x1xf32>
    %97 = vector.broadcast %96 : vector<16x1xf32> to vector<16x32xf32>
    %98 = arith.mulf %93, %97 : vector<16x32xf32>
    %99 = vector.broadcast %79 : vector<1x32xf32> to vector<16x32xf32>
    %100 = arith.mulf %98, %99 : vector<16x32xf32>
    %101 = vector.broadcast %80 : vector<1x32xf32> to vector<16x32xf32>
    %102 = arith.addf %100, %101 : vector<16x32xf32>
    %c0_41 = arith.constant 0 : index
    %c0_42 = arith.constant 0 : index
    %103 = vector.load %arg10[%c0_41, %c0_42] : memref<32x32xf32, #tpu.memory_space<vmem>>, vector<32x32xf32>
    %cst_43 = arith.constant dense<0.000000e+00> : vector<16x32xf32>
    %104 = tpu.matmul %102, %103, %cst_43 {dimension_numbers = #tpu.dot_dimension_numbers<[1], [0], [0], [1], [0, 0, 1, 1], [], []>} : vector<16x32xf32>, vector<32x32xf32>, vector<16x32xf32> -> vector<16x32xf32>
    %c0_44 = arith.constant 0 : index
    %c0_45 = arith.constant 0 : index
    %105 = vector.load %arg11[%c0_44, %c0_45] : memref<1x32xf32, #tpu.memory_space<vmem>>, vector<1x32xf32>
    %106 = vector.broadcast %105 : vector<1x32xf32> to vector<16x32xf32>
    %107 = arith.addf %104, %106 : vector<16x32xf32>
    %cst_46 = arith.constant 0.000000e+00 : f32
    %108 = vector.broadcast %cst_46 : f32 to vector<16x32xf32>
    %109 = arith.maximumf %107, %108 : vector<16x32xf32>
    %c0_47 = arith.constant 0 : index
    %c0_48 = arith.constant 0 : index
    %110 = vector.load %arg12[%c0_47, %c0_48] : memref<32x32xf32, #tpu.memory_space<vmem>>, vector<32x32xf32>
    %cst_49 = arith.constant dense<0.000000e+00> : vector<16x32xf32>
    %111 = tpu.matmul %109, %110, %cst_49 {dimension_numbers = #tpu.dot_dimension_numbers<[1], [0], [0], [1], [0, 0, 1, 1], [], []>} : vector<16x32xf32>, vector<32x32xf32>, vector<16x32xf32> -> vector<16x32xf32>
    %c0_50 = arith.constant 0 : index
    %c0_51 = arith.constant 0 : index
    %112 = vector.load %arg13[%c0_50, %c0_51] : memref<1x32xf32, #tpu.memory_space<vmem>>, vector<1x32xf32>
    %113 = vector.broadcast %112 : vector<1x32xf32> to vector<16x32xf32>
    %114 = arith.addf %111, %113 : vector<16x32xf32>
    %115 = arith.addf %102, %114 : vector<16x32xf32>
    %c0_52 = arith.constant 0 : index
    %c0_53 = arith.constant 0 : index
    %116 = vector.load %arg14[%c0_52, %c0_53] : memref<1x32xf32, #tpu.memory_space<vmem>>, vector<1x32xf32>
    %c0_54 = arith.constant 0 : index
    %c0_55 = arith.constant 0 : index
    %117 = vector.load %arg15[%c0_54, %c0_55] : memref<1x32xf32, #tpu.memory_space<vmem>>, vector<1x32xf32>
    %cst_56 = arith.constant dense<0.000000e+00> : vector<16xf32>
    %118 = vector.multi_reduction <add>, %115, %cst_56 [1] : vector<16x32xf32> to vector<16xf32>
    %119 = vector.shape_cast %118 : vector<16xf32> to vector<16x1xf32>
    %cst_57 = arith.constant 3.200000e+01 : f32
    %120 = vector.broadcast %cst_57 : f32 to vector<16x1xf32>
    %121 = arith.divf %119, %120 : vector<16x1xf32>
    %122 = vector.broadcast %121 : vector<16x1xf32> to vector<16x32xf32>
    %123 = arith.subf %115, %122 : vector<16x32xf32>
    %124 = arith.mulf %123, %123 : vector<16x32xf32>
    %cst_58 = arith.constant dense<0.000000e+00> : vector<16xf32>
    %125 = vector.multi_reduction <add>, %124, %cst_58 [1] : vector<16x32xf32> to vector<16xf32>
    %126 = vector.shape_cast %125 : vector<16xf32> to vector<16x1xf32>
    %cst_59 = arith.constant 3.200000e+01 : f32
    %127 = vector.broadcast %cst_59 : f32 to vector<16x1xf32>
    %128 = arith.divf %126, %127 : vector<16x1xf32>
    %129 = vector.broadcast %121 : vector<16x1xf32> to vector<16x32xf32>
    %130 = arith.subf %115, %129 : vector<16x32xf32>
    %cst_60 = arith.constant 9.99999974E-6 : f32
    %131 = vector.broadcast %cst_60 : f32 to vector<16x1xf32>
    %132 = arith.addf %128, %131 : vector<16x1xf32>
    %133 = math.rsqrt %132 : vector<16x1xf32>
    %134 = vector.broadcast %133 : vector<16x1xf32> to vector<16x32xf32>
    %135 = arith.mulf %130, %134 : vector<16x32xf32>
    %136 = vector.broadcast %116 : vector<1x32xf32> to vector<16x32xf32>
    %137 = arith.mulf %135, %136 : vector<16x32xf32>
    %138 = vector.broadcast %117 : vector<1x32xf32> to vector<16x32xf32>
    %139 = arith.addf %137, %138 : vector<16x32xf32>
    %c0_61 = arith.constant 0 : index
    %c0_62 = arith.constant 0 : index
    %140 = vector.load %arg16[%c0_61, %c0_62] : memref<16x32xf32, #tpu.memory_space<vmem>>, vector<16x32xf32>
    tpu.vector_store %arg16[%c0_61, %c0_62], %139 {strides = array<i32>} : memref<16x32xf32, #tpu.memory_space<vmem>>, vector<16x32xf32>,
    return
  }
  func.func @transform_0(%arg0: i32) -> (i32, i32) {
    %c0_i32 = arith.constant 0 : i32
    %c0_i32_0 = arith.constant 0 : i32
    return %arg0, %c0_i32 : i32, i32
  }
  func.func @transform_1(%arg0: i32) -> (i32, i32) {
    %c0_i32 = arith.constant 0 : i32
    %c0_i32_0 = arith.constant 0 : i32
    return %arg0, %c0_i32 : i32, i32
  }
  func.func @transform_2(%arg0: i32) -> (i32, i32) {
    %c0_i32 = arith.constant 0 : i32
    %c0_i32_0 = arith.constant 0 : i32
    %c0_i32_1 = arith.constant 0 : i32
    return %c0_i32, %c0_i32_0 : i32, i32
  }
  func.func @transform_3(%arg0: i32) -> (i32, i32) {
    %c0_i32 = arith.constant 0 : i32
    %c0_i32_0 = arith.constant 0 : i32
    %c0_i32_1 = arith.constant 0 : i32
    return %c0_i32, %c0_i32_0 : i32, i32
  }
  func.func @transform_4(%arg0: i32) -> (i32, i32) {
    %c0_i32 = arith.constant 0 : i32
    %c0_i32_0 = arith.constant 0 : i32
    %c0_i32_1 = arith.constant 0 : i32
    return %c0_i32, %c0_i32_0 : i32, i32
  }
  func.func @transform_5(%arg0: i32) -> (i32, i32) {
    %c0_i32 = arith.constant 0 : i32
    %c0_i32_0 = arith.constant 0 : i32
    %c0_i32_1 = arith.constant 0 : i32
    return %c0_i32, %c0_i32_0 : i32, i32
  }
  func.func @transform_6(%arg0: i32) -> (i32, i32) {
    %c0_i32 = arith.constant 0 : i32
    %c0_i32_0 = arith.constant 0 : i32
    %c0_i32_1 = arith.constant 0 : i32
    return %c0_i32, %c0_i32_0 : i32, i32
  }
  func.func @transform_7(%arg0: i32) -> (i32, i32) {
    %c0_i32 = arith.constant 0 : i32
    %c0_i32_0 = arith.constant 0 : i32
    %c0_i32_1 = arith.constant 0 : i32
    return %c0_i32, %c0_i32_0 : i32, i32
  }
  func.func @transform_8(%arg0: i32) -> (i32, i32) {
    %c0_i32 = arith.constant 0 : i32
    %c0_i32_0 = arith.constant 0 : i32
    %c0_i32_1 = arith.constant 0 : i32
    return %c0_i32, %c0_i32_0 : i32, i32
  }
  func.func @transform_9(%arg0: i32) -> (i32, i32) {
    %c0_i32 = arith.constant 0 : i32
    %c0_i32_0 = arith.constant 0 : i32
    %c0_i32_1 = arith.constant 0 : i32
    return %c0_i32, %c0_i32_0 : i32, i32
  }
  func.func @transform_10(%arg0: i32) -> (i32, i32) {
    %c0_i32 = arith.constant 0 : i32
    %c0_i32_0 = arith.constant 0 : i32
    %c0_i32_1 = arith.constant 0 : i32
    return %c0_i32, %c0_i32_0 : i32, i32
  }
  func.func @transform_11(%arg0: i32) -> (i32, i32) {
    %c0_i32 = arith.constant 0 : i32
    %c0_i32_0 = arith.constant 0 : i32
    %c0_i32_1 = arith.constant 0 : i32
    return %c0_i32, %c0_i32_0 : i32, i32
  }
  func.func @transform_12(%arg0: i32) -> (i32, i32) {
    %c0_i32 = arith.constant 0 : i32
    %c0_i32_0 = arith.constant 0 : i32
    %c0_i32_1 = arith.constant 0 : i32
    return %c0_i32, %c0_i32_0 : i32, i32
  }
  func.func @transform_13(%arg0: i32) -> (i32, i32) {
    %c0_i32 = arith.constant 0 : i32
    %c0_i32_0 = arith.constant 0 : i32
    %c0_i32_1 = arith.constant 0 : i32
    return %c0_i32, %c0_i32_0 : i32, i32
  }
  func.func @transform_14(%arg0: i32) -> (i32, i32) {
    %c0_i32 = arith.constant 0 : i32
    %c0_i32_0 = arith.constant 0 : i32
    %c0_i32_1 = arith.constant 0 : i32
    return %c0_i32, %c0_i32_0 : i32, i32
  }
  func.func @transform_15(%arg0: i32) -> (i32, i32) {
    %c0_i32 = arith.constant 0 : i32
    %c0_i32_0 = arith.constant 0 : i32
    return %arg0, %c0_i32 : i32, i32
  }
}

module attributes {stable_mosaic.version = 11 : i64} {
  func.func @_mhca_layer_kernel(%arg0: i32, %arg1: memref<16x32xf32, #tpu.memory_space<vmem>>, %arg2: memref<32x32xf32, #tpu.memory_space<vmem>>, %arg3: memref<32x32xf32, #tpu.memory_space<vmem>>, %arg4: memref<32x32xf32, #tpu.memory_space<vmem>>, %arg5: memref<32x32xf32, #tpu.memory_space<vmem>>, %arg6: memref<32x32xf32, #tpu.memory_space<vmem>>, %arg7: memref<1x32xf32, #tpu.memory_space<vmem>>, %arg8: memref<1x32xf32, #tpu.memory_space<vmem>>, %arg9: memref<1x32xf32, #tpu.memory_space<vmem>>, %arg10: memref<32x32xf32, #tpu.memory_space<vmem>>, %arg11: memref<1x32xf32, #tpu.memory_space<vmem>>, %arg12: memref<32x32xf32, #tpu.memory_space<vmem>>, %arg13: memref<1x32xf32, #tpu.memory_space<vmem>>, %arg14: memref<1x32xf32, #tpu.memory_space<vmem>>, %arg15: memref<1x32xf32, #tpu.memory_space<vmem>>, %arg16: memref<16x32xf32, #tpu.memory_space<vmem>>) attributes {dimension_semantics = [#tpu.dimension_semantics<parallel>], iteration_bounds = array<i64: 1>, scalar_prefetch = 0 : i64, scratch_operands = 0 : i64, tpu.core_type = #tpu.core_type<tc>, window_params = [{transform_indices = @transform_0, window_bounds = array<i64: 16, 32>}, {transform_indices = @transform_1, window_bounds = array<i64: 32, 32>}, {pipeline_mode = #tpu.pipeline_mode<synchronous>, transform_indices = @transform_2, window_bounds = array<i64: 32, 32>}, {pipeline_mode = #tpu.pipeline_mode<synchronous>, transform_indices = @transform_3, window_bounds = array<i64: 32, 32>}, {pipeline_mode = #tpu.pipeline_mode<synchronous>, transform_indices = @transform_4, window_bounds = array<i64: 32, 32>}, {pipeline_mode = #tpu.pipeline_mode<synchronous>, transform_indices = @transform_5, window_bounds = array<i64: 32, 32>}, {pipeline_mode = #tpu.pipeline_mode<synchronous>, transform_indices = @transform_6, window_bounds = array<i64: 1, 32>}, {pipeline_mode = #tpu.pipeline_mode<synchronous>, transform_indices = @transform_7, window_bounds = array<i64: 1, 32>}, {pipeline_mode = #tpu.pipeline_mode<synchronous>, transform_indices = @transform_8, window_bounds = array<i64: 1, 32>}, {pipeline_mode = #tpu.pipeline_mode<synchronous>, transform_indices = @transform_9, window_bounds = array<i64: 32, 32>}, {pipeline_mode = #tpu.pipeline_mode<synchronous>, transform_indices = @transform_10, window_bounds = array<i64: 1, 32>}, {pipeline_mode = #tpu.pipeline_mode<synchronous>, transform_indices = @transform_11, window_bounds = array<i64: 32, 32>}, {pipeline_mode = #tpu.pipeline_mode<synchronous>, transform_indices = @transform_12, window_bounds = array<i64: 1, 32>}, {pipeline_mode = #tpu.pipeline_mode<synchronous>, transform_indices = @transform_13, window_bounds = array<i64: 1, 32>}, {pipeline_mode = #tpu.pipeline_mode<synchronous>, transform_indices = @transform_14, window_bounds = array<i64: 1, 32>}, {transform_indices = @transform_15, window_bounds = array<i64: 16, 32>}]} {
    %c0 = arith.constant 0 : index
    %c0_0 = arith.constant 0 : index
    %0 = vector.load %arg1[%c0, %c0_0] : memref<16x32xf32, #tpu.memory_space<vmem>>, vector<16x32xf32>
    %c0_1 = arith.constant 0 : index
    %c0_2 = arith.constant 0 : index
    %1 = vector.load %arg2[%c0_1, %c0_2] : memref<32x32xf32, #tpu.memory_space<vmem>>, vector<32x32xf32>
    %c0_3 = arith.constant 0 : index
    %c0_4 = arith.constant 0 : index
    %2 = vector.load %arg3[%c0_3, %c0_4] : memref<32x32xf32, #tpu.memory_space<vmem>>, vector<32x32xf32>
    %cst = arith.constant dense<0.000000e+00> : vector<16x32xf32>
    %3 = tpu.matmul %0, %2, %cst {dimension_numbers = #tpu.dot_dimension_numbers<[1], [0], [0], [1], [0, 0, 1, 1], [], []>} : vector<16x32xf32>, vector<32x32xf32>, vector<16x32xf32> -> vector<16x32xf32>
    %c0_5 = arith.constant 0 : index
    %c0_6 = arith.constant 0 : index
    %4 = vector.load %arg4[%c0_5, %c0_6] : memref<32x32xf32, #tpu.memory_space<vmem>>, vector<32x32xf32>
    %cst_7 = arith.constant dense<0.000000e+00> : vector<32x32xf32>
    %5 = tpu.matmul %1, %4, %cst_7 {dimension_numbers = #tpu.dot_dimension_numbers<[1], [0], [0], [1], [0, 0, 1, 1], [], []>} : vector<32x32xf32>, vector<32x32xf32>, vector<32x32xf32> -> vector<32x32xf32>
    %c0_8 = arith.constant 0 : index
    %c0_9 = arith.constant 0 : index
    %6 = vector.load %arg5[%c0_8, %c0_9] : memref<32x32xf32, #tpu.memory_space<vmem>>, vector<32x32xf32>
    %cst_10 = arith.constant dense<0.000000e+00> : vector<32x32xf32>
    %7 = tpu.matmul %1, %6, %cst_10 {dimension_numbers = #tpu.dot_dimension_numbers<[1], [0], [0], [1], [0, 0, 1, 1], [], []>} : vector<32x32xf32>, vector<32x32xf32>, vector<32x32xf32> -> vector<32x32xf32>
    %8 = vector.shape_cast %3 : vector<16x32xf32> to vector<2x8x32xf32>
    %9 = vector.shape_cast %5 : vector<32x32xf32> to vector<2x16x32xf32>
    %10 = vector.shape_cast %7 : vector<32x32xf32> to vector<2x16x32xf32>
    %11 = vector.extract_strided_slice %8 {offsets = [0, 0, 0], sizes = [2, 8, 8], strides = [1, 1, 1]} : vector<2x8x32xf32> to vector<2x8x8xf32>
    %12 = vector.extract_strided_slice %9 {offsets = [0, 0, 0], sizes = [2, 16, 8], strides = [1, 1, 1]} : vector<2x16x32xf32> to vector<2x16x8xf32>
    %13 = vector.extract_strided_slice %10 {offsets = [0, 0, 0], sizes = [2, 16, 8], strides = [1, 1, 1]} : vector<2x16x32xf32> to vector<2x16x8xf32>
    "tpu.trace_start"() <{level = 10 : i32, message = "bqe,bke->bqk"}> : () -> ()
    %cst_11 = arith.constant dense<0.000000e+00> : vector<2x8x16xf32>
    %14 = tpu.matmul %11, %12, %cst_11 {dimension_numbers = #tpu.dot_dimension_numbers<[2], [2], [1], [1], [0, 0, 0, 1, 1, 1], [0], [0]>} : vector<2x8x8xf32>, vector<2x16x8xf32>, vector<2x8x16xf32> -> vector<2x8x16xf32>
    "tpu.trace_stop"() : () -> ()
    %cst_12 = arith.constant dense<0xFF800000> : vector<2x8xf32>
    %15 = vector.multi_reduction <maximumf>, %14, %cst_12 [2] : vector<2x8x16xf32> to vector<2x8xf32>
    %16 = vector.shape_cast %15 : vector<2x8xf32> to vector<2x8x1xf32>
    %17 = vector.broadcast %16 : vector<2x8x1xf32> to vector<2x8x16xf32>
    %18 = arith.subf %14, %17 : vector<2x8x16xf32>
    %19 = math.exp %18 : vector<2x8x16xf32>
    %cst_13 = arith.constant dense<0.000000e+00> : vector<2x8xf32>
    %20 = vector.multi_reduction <add>, %19, %cst_13 [2] : vector<2x8x16xf32> to vector<2x8xf32>
    %21 = vector.shape_cast %20 : vector<2x8xf32> to vector<2x8x1xf32>
    %22 = tpu.reciprocal %21 {approx = true} : vector<2x8x1xf32> -> vector<2x8x1xf32>
    %23 = vector.broadcast %22 : vector<2x8x1xf32> to vector<2x8x16xf32>
    %24 = arith.mulf %19, %23 : vector<2x8x16xf32>
    "tpu.trace_start"() <{level = 10 : i32, message = "bqk,bke->bqe"}> : () -> ()
    %cst_14 = arith.constant dense<0.000000e+00> : vector<2x8x8xf32>
    %25 = tpu.matmul %24, %13, %cst_14 {dimension_numbers = #tpu.dot_dimension_numbers<[2], [1], [1], [2], [0, 0, 0, 1, 1, 2], [0], [0]>} : vector<2x8x16xf32>, vector<2x16x8xf32>, vector<2x8x8xf32> -> vector<2x8x8xf32>
    "tpu.trace_stop"() : () -> ()
    %26 = vector.extract_strided_slice %8 {offsets = [0, 0, 8], sizes = [2, 8, 8], strides = [1, 1, 1]} : vector<2x8x32xf32> to vector<2x8x8xf32>
    %27 = vector.extract_strided_slice %9 {offsets = [0, 0, 8], sizes = [2, 16, 8], strides = [1, 1, 1]} : vector<2x16x32xf32> to vector<2x16x8xf32>
    %28 = vector.extract_strided_slice %10 {offsets = [0, 0, 8], sizes = [2, 16, 8], strides = [1, 1, 1]} : vector<2x16x32xf32> to vector<2x16x8xf32>
    "tpu.trace_start"() <{level = 10 : i32, message = "bqe,bke->bqk"}> : () -> ()
    %cst_15 = arith.constant dense<0.000000e+00> : vector<2x8x16xf32>
    %29 = tpu.matmul %26, %27, %cst_15 {dimension_numbers = #tpu.dot_dimension_numbers<[2], [2], [1], [1], [0, 0, 0, 1, 1, 1], [0], [0]>} : vector<2x8x8xf32>, vector<2x16x8xf32>, vector<2x8x16xf32> -> vector<2x8x16xf32>
    "tpu.trace_stop"() : () -> ()
    %cst_16 = arith.constant dense<0xFF800000> : vector<2x8xf32>
    %30 = vector.multi_reduction <maximumf>, %29, %cst_16 [2] : vector<2x8x16xf32> to vector<2x8xf32>
    %31 = vector.shape_cast %30 : vector<2x8xf32> to vector<2x8x1xf32>
    %32 = vector.broadcast %31 : vector<2x8x1xf32> to vector<2x8x16xf32>
    %33 = arith.subf %29, %32 : vector<2x8x16xf32>
    %34 = math.exp %33 : vector<2x8x16xf32>
    %cst_17 = arith.constant dense<0.000000e+00> : vector<2x8xf32>
    %35 = vector.multi_reduction <add>, %34, %cst_17 [2] : vector<2x8x16xf32> to vector<2x8xf32>
    %36 = vector.shape_cast %35 : vector<2x8xf32> to vector<2x8x1xf32>
    %37 = tpu.reciprocal %36 {approx = true} : vector<2x8x1xf32> -> vector<2x8x1xf32>
    %38 = vector.broadcast %37 : vector<2x8x1xf32> to vector<2x8x16xf32>
    %39 = arith.mulf %34, %38 : vector<2x8x16xf32>
    "tpu.trace_start"() <{level = 10 : i32, message = "bqk,bke->bqe"}> : () -> ()
    %cst_18 = arith.constant dense<0.000000e+00> : vector<2x8x8xf32>
    %40 = tpu.matmul %39, %28, %cst_18 {dimension_numbers = #tpu.dot_dimension_numbers<[2], [1], [1], [2], [0, 0, 0, 1, 1, 2], [0], [0]>} : vector<2x8x16xf32>, vector<2x16x8xf32>, vector<2x8x8xf32> -> vector<2x8x8xf32>
    "tpu.trace_stop"() : () -> ()
    %41 = vector.extract_strided_slice %8 {offsets = [0, 0, 16], sizes = [2, 8, 8], strides = [1, 1, 1]} : vector<2x8x32xf32> to vector<2x8x8xf32>
    %42 = vector.extract_strided_slice %9 {offsets = [0, 0, 16], sizes = [2, 16, 8], strides = [1, 1, 1]} : vector<2x16x32xf32> to vector<2x16x8xf32>
    %43 = vector.extract_strided_slice %10 {offsets = [0, 0, 16], sizes = [2, 16, 8], strides = [1, 1, 1]} : vector<2x16x32xf32> to vector<2x16x8xf32>
    "tpu.trace_start"() <{level = 10 : i32, message = "bqe,bke->bqk"}> : () -> ()
    %cst_19 = arith.constant dense<0.000000e+00> : vector<2x8x16xf32>
    %44 = tpu.matmul %41, %42, %cst_19 {dimension_numbers = #tpu.dot_dimension_numbers<[2], [2], [1], [1], [0, 0, 0, 1, 1, 1], [0], [0]>} : vector<2x8x8xf32>, vector<2x16x8xf32>, vector<2x8x16xf32> -> vector<2x8x16xf32>
    "tpu.trace_stop"() : () -> ()
    %cst_20 = arith.constant dense<0xFF800000> : vector<2x8xf32>
    %45 = vector.multi_reduction <maximumf>, %44, %cst_20 [2] : vector<2x8x16xf32> to vector<2x8xf32>
    %46 = vector.shape_cast %45 : vector<2x8xf32> to vector<2x8x1xf32>
    %47 = vector.broadcast %46 : vector<2x8x1xf32> to vector<2x8x16xf32>
    %48 = arith.subf %44, %47 : vector<2x8x16xf32>
    %49 = math.exp %48 : vector<2x8x16xf32>
    %cst_21 = arith.constant dense<0.000000e+00> : vector<2x8xf32>
    %50 = vector.multi_reduction <add>, %49, %cst_21 [2] : vector<2x8x16xf32> to vector<2x8xf32>
    %51 = vector.shape_cast %50 : vector<2x8xf32> to vector<2x8x1xf32>
    %52 = tpu.reciprocal %51 {approx = true} : vector<2x8x1xf32> -> vector<2x8x1xf32>
    %53 = vector.broadcast %52 : vector<2x8x1xf32> to vector<2x8x16xf32>
    %54 = arith.mulf %49, %53 : vector<2x8x16xf32>
    "tpu.trace_start"() <{level = 10 : i32, message = "bqk,bke->bqe"}> : () -> ()
    %cst_22 = arith.constant dense<0.000000e+00> : vector<2x8x8xf32>
    %55 = tpu.matmul %54, %43, %cst_22 {dimension_numbers = #tpu.dot_dimension_numbers<[2], [1], [1], [2], [0, 0, 0, 1, 1, 2], [0], [0]>} : vector<2x8x16xf32>, vector<2x16x8xf32>, vector<2x8x8xf32> -> vector<2x8x8xf32>
    "tpu.trace_stop"() : () -> ()
    %56 = vector.extract_strided_slice %8 {offsets = [0, 0, 24], sizes = [2, 8, 8], strides = [1, 1, 1]} : vector<2x8x32xf32> to vector<2x8x8xf32>
    %57 = vector.extract_strided_slice %9 {offsets = [0, 0, 24], sizes = [2, 16, 8], strides = [1, 1, 1]} : vector<2x16x32xf32> to vector<2x16x8xf32>
    %58 = vector.extract_strided_slice %10 {offsets = [0, 0, 24], sizes = [2, 16, 8], strides = [1, 1, 1]} : vector<2x16x32xf32> to vector<2x16x8xf32>
    "tpu.trace_start"() <{level = 10 : i32, message = "bqe,bke->bqk"}> : () -> ()
    %cst_23 = arith.constant dense<0.000000e+00> : vector<2x8x16xf32>
    %59 = tpu.matmul %56, %57, %cst_23 {dimension_numbers = #tpu.dot_dimension_numbers<[2], [2], [1], [1], [0, 0, 0, 1, 1, 1], [0], [0]>} : vector<2x8x8xf32>, vector<2x16x8xf32>, vector<2x8x16xf32> -> vector<2x8x16xf32>
    "tpu.trace_stop"() : () -> ()
    %cst_24 = arith.constant dense<0xFF800000> : vector<2x8xf32>
    %60 = vector.multi_reduction <maximumf>, %59, %cst_24 [2] : vector<2x8x16xf32> to vector<2x8xf32>
    %61 = vector.shape_cast %60 : vector<2x8xf32> to vector<2x8x1xf32>
    %62 = vector.broadcast %61 : vector<2x8x1xf32> to vector<2x8x16xf32>
    %63 = arith.subf %59, %62 : vector<2x8x16xf32>
    %64 = math.exp %63 : vector<2x8x16xf32>
    %cst_25 = arith.constant dense<0.000000e+00> : vector<2x8xf32>
    %65 = vector.multi_reduction <add>, %64, %cst_25 [2] : vector<2x8x16xf32> to vector<2x8xf32>
    %66 = vector.shape_cast %65 : vector<2x8xf32> to vector<2x8x1xf32>
    %67 = tpu.reciprocal %66 {approx = true} : vector<2x8x1xf32> -> vector<2x8x1xf32>
    %68 = vector.broadcast %67 : vector<2x8x1xf32> to vector<2x8x16xf32>
    %69 = arith.mulf %64, %68 : vector<2x8x16xf32>
    "tpu.trace_start"() <{level = 10 : i32, message = "bqk,bke->bqe"}> : () -> ()
    %cst_26 = arith.constant dense<0.000000e+00> : vector<2x8x8xf32>
    %70 = tpu.matmul %69, %58, %cst_26 {dimension_numbers = #tpu.dot_dimension_numbers<[2], [1], [1], [2], [0, 0, 0, 1, 1, 2], [0], [0]>} : vector<2x8x16xf32>, vector<2x16x8xf32>, vector<2x8x8xf32> -> vector<2x8x8xf32>
    "tpu.trace_stop"() : () -> ()
    %71 = tpu.concatenate %25, %40, %55, %70 in 2 : vector<2x8x8xf32>, vector<2x8x8xf32>, vector<2x8x8xf32>, vector<2x8x8xf32> -> vector<2x8x32xf32>
    %72 = vector.shape_cast %71 : vector<2x8x32xf32> to vector<16x32xf32>
    %c0_27 = arith.constant 0 : index
    %c0_28 = arith.constant 0 : index
    %73 = vector.load %arg6[%c0_27, %c0_28] : memref<32x32xf32, #tpu.memory_space<vmem>>, vector<32x32xf32>
    %cst_29 = arith.constant dense<0.000000e+00> : vector<16x32xf32>
    %74 = tpu.matmul %72, %73, %cst_29 {dimension_numbers = #tpu.dot_dimension_numbers<[1], [0], [0], [1], [0, 0, 1, 1], [], []>} : vector<16x32xf32>, vector<32x32xf32>, vector<16x32xf32> -> vector<16x32xf32>
    %c0_30 = arith.constant 0 : index
    %c0_31 = arith.constant 0 : index
    %75 = vector.load %arg7[%c0_30, %c0_31] : memref<1x32xf32, #tpu.memory_space<vmem>>, vector<1x32xf32>
    %76 = vector.broadcast %75 : vector<1x32xf32> to vector<16x32xf32>
    %77 = arith.addf %74, %76 : vector<16x32xf32>
    %78 = arith.addf %0, %77 : vector<16x32xf32>
    %c0_32 = arith.constant 0 : index
    %c0_33 = arith.constant 0 : index
    %79 = vector.load %arg8[%c0_32, %c0_33] : memref<1x32xf32, #tpu.memory_space<vmem>>, vector<1x32xf32>
    %c0_34 = arith.constant 0 : index
    %c0_35 = arith.constant 0 : index
    %80 = vector.load %arg9[%c0_34, %c0_35] : memref<1x32xf32, #tpu.memory_space<vmem>>, vector<1x32xf32>
    %cst_36 = arith.constant dense<0.000000e+00> : vector<16xf32>
    %81 = vector.multi_reduction <add>, %78, %cst_36 [1] : vector<16x32xf32> to vector<16xf32>
    %82 = vector.shape_cast %81 : vector<16xf32> to vector<16x1xf32>
    %cst_37 = arith.constant 3.200000e+01 : f32
    %83 = vector.broadcast %cst_37 : f32 to vector<16x1xf32>
    %84 = arith.divf %82, %83 : vector<16x1xf32>
    %85 = vector.broadcast %84 : vector<16x1xf32> to vector<16x32xf32>
    %86 = arith.subf %78, %85 : vector<16x32xf32>
    %87 = arith.mulf %86, %86 : vector<16x32xf32>
    %cst_38 = arith.constant dense<0.000000e+00> : vector<16xf32>
    %88 = vector.multi_reduction <add>, %87, %cst_38 [1] : vector<16x32xf32> to vector<16xf32>
    %89 = vector.shape_cast %88 : vector<16xf32> to vector<16x1xf32>
    %cst_39 = arith.constant 3.200000e+01 : f32
    %90 = vector.broadcast %cst_39 : f32 to vector<16x1xf32>
    %91 = arith.divf %89, %90 : vector<16x1xf32>
    %92 = vector.broadcast %84 : vector<16x1xf32> to vector<16x32xf32>
    %93 = arith.subf %78, %92 : vector<16x32xf32>
    %cst_40 = arith.constant 9.99999974E-6 : f32
    %94 = vector.broadcast %cst_40 : f32 to vector<16x1xf32>
    %95 = arith.addf %91, %94 : vector<16x1xf32>
    %96 = math.rsqrt %95 : vector<16x1xf32>
    %97 = vector.broadcast %96 : vector<16x1xf32> to vector<16x32xf32>
    %98 = arith.mulf %93, %97 : vector<16x32xf32>
    %99 = vector.broadcast %79 : vector<1x32xf32> to vector<16x32xf32>
    %100 = arith.mulf %98, %99 : vector<16x32xf32>
    %101 = vector.broadcast %80 : vector<1x32xf32> to vector<16x32xf32>
    %102 = arith.addf %100, %101 : vector<16x32xf32>
    %c0_41 = arith.constant 0 : index
    %c0_42 = arith.constant 0 : index
    %103 = vector.load %arg10[%c0_41, %c0_42] : memref<32x32xf32, #tpu.memory_space<vmem>>, vector<32x32xf32>
    %cst_43 = arith.constant dense<0.000000e+00> : vector<16x32xf32>
    %104 = tpu.matmul %102, %103, %cst_43 {dimension_numbers = #tpu.dot_dimension_numbers<[1], [0], [0], [1], [0, 0, 1, 1], [], []>} : vector<16x32xf32>, vector<32x32xf32>, vector<16x32xf32> -> vector<16x32xf32>
    %c0_44 = arith.constant 0 : index
    %c0_45 = arith.constant 0 : index
    %105 = vector.load %arg11[%c0_44, %c0_45] : memref<1x32xf32, #tpu.memory_space<vmem>>, vector<1x32xf32>
    %106 = vector.broadcast %105 : vector<1x32xf32> to vector<16x32xf32>
    %107 = arith.addf %104, %106 : vector<16x32xf32>
    %cst_46 = arith.constant 0.000000e+00 : f32
    %108 = vector.broadcast %cst_46 : f32 to vector<16x32xf32>
    %109 = arith.maximumf %107, %108 : vector<16x32xf32>
    %c0_47 = arith.constant 0 : index
    %c0_48 = arith.constant 0 : index
    %110 = vector.load %arg12[%c0_47, %c0_48] : memref<32x32xf32, #tpu.memory_space<vmem>>, vector<32x32xf32>
    %cst_49 = arith.constant dense<0.000000e+00> : vector<16x32xf32>
    %111 = tpu.matmul %109, %110, %cst_49 {dimension_numbers = #tpu.dot_dimension_numbers<[1], [0], [0], [1], [0, 0, 1, 1], [], []>} : vector<16x32xf32>, vector<32x32xf32>, vector<16x32xf32> -> vector<16x32xf32>
    %c0_50 = arith.constant 0 : index
    %c0_51 = arith.constant 0 : index
    %112 = vector.load %arg13[%c0_50, %c0_51] : memref<1x32xf32, #tpu.memory_space<vmem>>, vector<1x32xf32>
    %113 = vector.broadcast %112 : vector<1x32xf32> to vector<16x32xf32>
    %114 = arith.addf %111, %113 : vector<16x32xf32>
    %115 = arith.addf %102, %114 : vector<16x32xf32>
    %c0_52 = arith.constant 0 : index
    %c0_53 = arith.constant 0 : index
    %116 = vector.load %arg14[%c0_52, %c0_53] : memref<1x32xf32, #tpu.memory_space<vmem>>, vector<1x32xf32>
    %c0_54 = arith.constant 0 : index
    %c0_55 = arith.constant 0 : index
    %117 = vector.load %arg15[%c0_54, %c0_55] : memref<1x32xf32, #tpu.memory_space<vmem>>, vector<1x32xf32>
    %cst_56 = arith.constant dense<0.000000e+00> : vector<16xf32>
    %118 = vector.multi_reduction <add>, %115, %cst_56 [1] : vector<16x32xf32> to vector<16xf32>
    %119 = vector.shape_cast %118 : vector<16xf32> to vector<16x1xf32>
    %cst_57 = arith.constant 3.200000e+01 : f32
    %120 = vector.broadcast %cst_57 : f32 to vector<16x1xf32>
    %121 = arith.divf %119, %120 : vector<16x1xf32>
    %122 = vector.broadcast %121 : vector<16x1xf32> to vector<16x32xf32>
    %123 = arith.subf %115, %122 : vector<16x32xf32>
    %124 = arith.mulf %123, %123 : vector<16x32xf32>
    %cst_58 = arith.constant dense<0.000000e+00> : vector<16xf32>
    %125 = vector.multi_reduction <add>, %124, %cst_58 [1] : vector<16x32xf32> to vector<16xf32>
    %126 = vector.shape_cast %125 : vector<16xf32> to vector<16x1xf32>
    %cst_59 = arith.constant 3.200000e+01 : f32
    %127 = vector.broadcast %cst_59 : f32 to vector<16x1xf32>
    %128 = arith.divf %126, %127 : vector<16x1xf32>
    %129 = vector.broadcast %121 : vector<16x1xf32> to vector<16x32xf32>
    %130 = arith.subf %115, %129 : vector<16x32xf32>
    %cst_60 = arith.constant 9.99999974E-6 : f32
    %131 = vector.broadcast %cst_60 : f32 to vector<16x1xf32>
    %132 = arith.addf %128, %131 : vector<16x1xf32>
    %133 = math.rsqrt %132 : vector<16x1xf32>
    %134 = vector.broadcast %133 : vector<16x1xf32> to vector<16x32xf32>
    %135 = arith.mulf %130, %134 : vector<16x32xf32>
    %136 = vector.broadcast %116 : vector<1x32xf32> to vector<16x32xf32>
    %137 = arith.mulf %135, %136 : vector<16x32xf32>
    %138 = vector.broadcast %117 : vector<1x32xf32> to vector<16x32xf32>
    %139 = arith.addf %137, %138 : vector<16x32xf32>
    %c0_61 = arith.constant 0 : index
    %c0_62 = arith.constant 0 : index
    %140 = vector.load %arg16[%c0_61, %c0_62] : memref<16x32xf32, #tpu.memory_space<vmem>>, vector<16x32xf32>
    tpu.vector_store %arg16[%c0_61, %c0_62], %139 {strides = array<i32>} : memref<16x32xf32, #tpu.memory_space<vmem>>, vector<16x32xf32>,
    return
  }
  func.func @transform_0(%arg0: i32) -> (i32, i32) {
    %c0_i32 = arith.constant 0 : i32
    %c0_i32_0 = arith.constant 0 : i32
    return %arg0, %c0_i32 : i32, i32
  }
  func.func @transform_1(%arg0: i32) -> (i32, i32) {
    %c0_i32 = arith.constant 0 : i32
    %c0_i32_0 = arith.constant 0 : i32
    return %arg0, %c0_i32 : i32, i32
  }
  func.func @transform_2(%arg0: i32) -> (i32, i32) {
    %c0_i32 = arith.constant 0 : i32
    %c0_i32_0 = arith.constant 0 : i32
    %c0_i32_1 = arith.constant 0 : i32
    return %c0_i32, %c0_i32_0 : i32, i32
  }
  func.func @transform_3(%arg0: i32) -> (i32, i32) {
    %c0_i32 = arith.constant 0 : i32
    %c0_i32_0 = arith.constant 0 : i32
    %c0_i32_1 = arith.constant 0 : i32
    return %c0_i32, %c0_i32_0 : i32, i32
  }
  func.func @transform_4(%arg0: i32) -> (i32, i32) {
    %c0_i32 = arith.constant 0 : i32
    %c0_i32_0 = arith.constant 0 : i32
    %c0_i32_1 = arith.constant 0 : i32
    return %c0_i32, %c0_i32_0 : i32, i32
  }
  func.func @transform_5(%arg0: i32) -> (i32, i32) {
    %c0_i32 = arith.constant 0 : i32
    %c0_i32_0 = arith.constant 0 : i32
    %c0_i32_1 = arith.constant 0 : i32
    return %c0_i32, %c0_i32_0 : i32, i32
  }
  func.func @transform_6(%arg0: i32) -> (i32, i32) {
    %c0_i32 = arith.constant 0 : i32
    %c0_i32_0 = arith.constant 0 : i32
    %c0_i32_1 = arith.constant 0 : i32
    return %c0_i32, %c0_i32_0 : i32, i32
  }
  func.func @transform_7(%arg0: i32) -> (i32, i32) {
    %c0_i32 = arith.constant 0 : i32
    %c0_i32_0 = arith.constant 0 : i32
    %c0_i32_1 = arith.constant 0 : i32
    return %c0_i32, %c0_i32_0 : i32, i32
  }
  func.func @transform_8(%arg0: i32) -> (i32, i32) {
    %c0_i32 = arith.constant 0 : i32
    %c0_i32_0 = arith.constant 0 : i32
    %c0_i32_1 = arith.constant 0 : i32
    return %c0_i32, %c0_i32_0 : i32, i32
  }
  func.func @transform_9(%arg0: i32) -> (i32, i32) {
    %c0_i32 = arith.constant 0 : i32
    %c0_i32_0 = arith.constant 0 : i32
    %c0_i32_1 = arith.constant 0 : i32
    return %c0_i32, %c0_i32_0 : i32, i32
  }
  func.func @transform_10(%arg0: i32) -> (i32, i32) {
    %c0_i32 = arith.constant 0 : i32
    %c0_i32_0 = arith.constant 0 : i32
    %c0_i32_1 = arith.constant 0 : i32
    return %c0_i32, %c0_i32_0 : i32, i32
  }
  func.func @transform_11(%arg0: i32) -> (i32, i32) {
    %c0_i32 = arith.constant 0 : i32
    %c0_i32_0 = arith.constant 0 : i32
    %c0_i32_1 = arith.constant 0 : i32
    return %c0_i32, %c0_i32_0 : i32, i32
  }
  func.func @transform_12(%arg0: i32) -> (i32, i32) {
    %c0_i32 = arith.constant 0 : i32
    %c0_i32_0 = arith.constant 0 : i32
    %c0_i32_1 = arith.constant 0 : i32
    return %c0_i32, %c0_i32_0 : i32, i32
  }
  func.func @transform_13(%arg0: i32) -> (i32, i32) {
    %c0_i32 = arith.constant 0 : i32
    %c0_i32_0 = arith.constant 0 : i32
    %c0_i32_1 = arith.constant 0 : i32
    return %c0_i32, %c0_i32_0 : i32, i32
  }
  func.func @transform_14(%arg0: i32) -> (i32, i32) {
    %c0_i32 = arith.constant 0 : i32
    %c0_i32_0 = arith.constant 0 : i32
    %c0_i32_1 = arith.constant 0 : i32
    return %c0_i32, %c0_i32_0 : i32, i32
  }
  func.func @transform_15(%arg0: i32) -> (i32, i32) {
    %c0_i32 = arith.constant 0 : i32
    %c0_i32_0 = arith.constant 0 : i32
    return %arg0, %c0_i32 : i32, i32
  }
}

</mosaic_0001>

<llo_original>
// kernel: tpu_custom_call.1
$region0: #{tpu_custom_call.1}
  #allocation0 [shape = 'u32[]', space=smem, size = 0x4, offset = 0x4, fixed_abs, tag = 'smem constant byte address 0x4 - core index']
  #allocation1 [shape = 'u32[144,128]{1,0:T(1,128)}', space=vmem, size = 0x12000, scoped, tag = 'internal scratch']
  %s0 = inlined_call_operand.hbm [shape: f32[16,32], index: 0, kind: input, shape index: {}]
  %s1 = inlined_call_operand.hbm [shape: f32[32,32], index: 1, kind: input, shape index: {}]
  %s2 = inlined_call_operand.hbm [shape: f32[32,32], index: 2, kind: input, shape index: {}]
  %s3 = inlined_call_operand.hbm [shape: f32[32,32], index: 3, kind: input, shape index: {}]
  %s4 = inlined_call_operand.hbm [shape: f32[32,32], index: 4, kind: input, shape index: {}]
  %s5 = inlined_call_operand.hbm [shape: f32[32,32], index: 5, kind: input, shape index: {}]
  %s6 = inlined_call_operand.vmem [shape: f32[1,32], index: 6, kind: input, shape index: {}]
  %s7 = inlined_call_operand.vmem [shape: f32[1,32], index: 7, kind: input, shape index: {}]
  %s8 = inlined_call_operand.hbm [shape: f32[1,32], index: 8, kind: input, shape index: {}]
  %s9 = inlined_call_operand.vmem [shape: f32[32,32], index: 9, kind: input, shape index: {}]
  %s10 = inlined_call_operand.vmem [shape: f32[1,32], index: 10, kind: input, shape index: {}]
  %s11 = inlined_call_operand.hbm [shape: f32[32,32], index: 11, kind: input, shape index: {}]
  %s12 = inlined_call_operand.vmem [shape: f32[1,32], index: 12, kind: input, shape index: {}]
  %s13 = inlined_call_operand.vmem [shape: f32[1,32], index: 13, kind: input, shape index: {}]
  %s14 = inlined_call_operand.vmem [shape: f32[1,32], index: 14, kind: input, shape index: {}]
  %s15 = inlined_call_operand.hbm [shape: f32[16,32], index: 15, kind: output, shape index: {}]
  %s16 = sld [smem:[#allocation0]]
  $region102: #{tpu_custom_call.1} parent=0
    _
  %s18 = ssub.s32 1, %s16
  %s19 = scalar_select 0, %s18, %s16
  $region1: #{tpu_custom_call.1} parent=0
    #allocation2 [shape = 'u8[8192]{0}', space=vmem, size = 0x2000, scoped, tag = 'input window, operand 0, single buffered']
    #allocation3 [shape = 's32[1]{0}', space=sflag, size = 0x4, scoped, tag = 'scoped memory for tpu_custom_call.1']
    #allocation4 [shape = 's32[1]{0}', space=sflag, size = 0x4, scoped, tag = 'scoped memory for tpu_custom_call.1']
    #allocation5 [shape = 'u8[16384]{0}', space=vmem, size = 0x4000, scoped, tag = 'input window, operand 1, single buffered']
    #allocation6 [shape = 's32[1]{0}', space=sflag, size = 0x4, scoped, tag = 'scoped memory for tpu_custom_call.1']
    #allocation7 [shape = 'u8[16384]{0}', space=vmem, size = 0x4000, scoped, tag = 'input window, operand 2, single buffered']
    #allocation8 [shape = 'u8[16384]{0}', space=vmem, size = 0x4000, scoped, tag = 'input window, operand 3, single buffered']
    #allocation9 [shape = 's32[1]{0}', space=sflag, size = 0x4, scoped, tag = 'scoped memory for tpu_custom_call.1']
    #allocation10 [shape = 'u8[16384]{0}', space=vmem, size = 0x4000, scoped, tag = 'input window, operand 4, single buffered']
    #allocation11 [shape = 'u8[16384]{0}', space=vmem, size = 0x4000, scoped, tag = 'input window, operand 5, single buffered']
    #allocation12 [shape = 's32[1]{0}', space=sflag, size = 0x4, scoped, tag = 'scoped memory for tpu_custom_call.1']
    #allocation13 [shape = 'u8[512]{0}', space=vmem, size = 0x400, scoped, tag = 'input window, operand 8, single buffered']
    #allocation14 [shape = 'u8[16384]{0}', space=vmem, size = 0x4000, scoped, tag = 'input window, operand 11, single buffered']
    #allocation15 [shape = 's32[1]{0}', space=sflag, size = 0x4, scoped, tag = 'scoped memory for tpu_custom_call.1']
    #allocation16 [shape = 'u8[8192]{0}', space=vmem, size = 0x2000, scoped, tag = 'output window, operand 0, single buffered']
    %20 = vsyncpa [#allocation3], 0
    %21 = vsyncpa [#allocation6], 0
    %22 = vsyncpa [#allocation9], 0
    %23 = vsyncpa [#allocation12], 0
    %24 = vsyncpa [#allocation15], 0
    %25 = vsyncpa [#allocation4], 0
    // Predicated region
    $region2: #{tpu_custom_call.1} parent=1 // pred_check
      _
    $region3: #{tpu_custom_call.1} parent=1 // pred_check_branch
      %27 = sbr.rel (0) target = $region5
    $region4: #{tpu_custom_call.1} parent=1 // pred_region
      %s29 = ssub.s32 256, 256
      %30 = vsyncadd [#allocation3], %s29
      %s31 = sshll.u32 [#allocation2], 4
      %s32 = int_to_ptr.vmem [resolvable:$true] %s31
      %37 = dma.hbm_to_vmem [thread:$0]  %s0, 256, %s32, [#allocation3], 128, 128, 8
    $region5: #{tpu_custom_call.1} parent=1 // pred_fallthru
      _
    // Predicated region
    $region6: #{tpu_custom_call.1} parent=1 // pred_check
      _
    $region7: #{tpu_custom_call.1} parent=1 // pred_check_branch
      %39 = sbr.rel (0) target = $region9
    $region8: #{tpu_custom_call.1} parent=1 // pred_region
      %s41 = ssub.s32 512, 512
      %42 = vsyncadd [#allocation6], %s41
      %s43 = sshll.u32 [#allocation5], 4
      %s44 = int_to_ptr.vmem [resolvable:$true] %s43
      %49 = dma.hbm_to_vmem [thread:$0]  %s1, 512, %s44, [#allocation6], 128, 128, 8
    $region9: #{tpu_custom_call.1} parent=1 // pred_fallthru
      _
    // Predicated region
    $region10: #{tpu_custom_call.1} parent=1 // pred_check
      _
    $region11: #{tpu_custom_call.1} parent=1 // pred_check_branch
      %51 = sbr.rel (0) target = $region13
    $region12: #{tpu_custom_call.1} parent=1 // pred_region
      %s53 = ssub.s32 512, 512
      %54 = vsyncadd [#allocation6], %s53
      %s55 = sshll.u32 [#allocation7], 4
      %s56 = int_to_ptr.vmem [resolvable:$true] %s55
      %61 = dma.hbm_to_vmem [thread:$0]  %s2, 512, %s56, [#allocation6], 128, 128, 8
    $region13: #{tpu_custom_call.1} parent=1 // pred_fallthru
      _
    // Predicated region
    $region14: #{tpu_custom_call.1} parent=1 // pred_check
      _
    $region15: #{tpu_custom_call.1} parent=1 // pred_check_branch
      %63 = sbr.rel (0) target = $region17
    $region16: #{tpu_custom_call.1} parent=1 // pred_region
      %s65 = ssub.s32 512, 512
      %66 = vsyncadd [#allocation9], %s65
      %s67 = sshll.u32 [#allocation8], 4
      %s68 = int_to_ptr.vmem [resolvable:$true] %s67
      %73 = dma.hbm_to_vmem [thread:$0]  %s3, 512, %s68, [#allocation9], 128, 128, 8
    $region17: #{tpu_custom_call.1} parent=1 // pred_fallthru
      _
    // Predicated region
    $region18: #{tpu_custom_call.1} parent=1 // pred_check
      _
    $region19: #{tpu_custom_call.1} parent=1 // pred_check_branch
      %75 = sbr.rel (0) target = $region21
    $region20: #{tpu_custom_call.1} parent=1 // pred_region
      %s77 = ssub.s32 512, 512
      %78 = vsyncadd [#allocation9], %s77
      %s79 = sshll.u32 [#allocation10], 4
      %s80 = int_to_ptr.vmem [resolvable:$true] %s79
      %85 = dma.hbm_to_vmem [thread:$0]  %s4, 512, %s80, [#allocation9], 128, 128, 8
    $region21: #{tpu_custom_call.1} parent=1 // pred_fallthru
      _
    // Predicated region
    $region22: #{tpu_custom_call.1} parent=1 // pred_check
      _
    $region23: #{tpu_custom_call.1} parent=1 // pred_check_branch
      %87 = sbr.rel (0) target = $region25
    $region24: #{tpu_custom_call.1} parent=1 // pred_region
      %s89 = ssub.s32 512, 512
      %90 = vsyncadd [#allocation12], %s89
      %s91 = sshll.u32 [#allocation11], 4
      %s92 = int_to_ptr.vmem [resolvable:$true] %s91
      %97 = dma.hbm_to_vmem [thread:$0]  %s5, 512, %s92, [#allocation12], 128, 128, 8
    $region25: #{tpu_custom_call.1} parent=1 // pred_fallthru
      _
    // Predicated region
    $region26: #{tpu_custom_call.1} parent=1 // pred_check
      _
    $region27: #{tpu_custom_call.1} parent=1 // pred_check_branch
      %99 = sbr.rel (0) target = $region29
    $region28: #{tpu_custom_call.1} parent=1 // pred_region
      _
    $region29: #{tpu_custom_call.1} parent=1 // pred_fallthru
      _
    // Predicated region
    $region30: #{tpu_custom_call.1} parent=1 // pred_check
      _
    $region31: #{tpu_custom_call.1} parent=1 // pred_check_branch
      %101 = sbr.rel (0) target = $region33
    $region32: #{tpu_custom_call.1} parent=1 // pred_region
      _
    $region33: #{tpu_custom_call.1} parent=1 // pred_fallthru
      _
    // Predicated region
    $region34: #{tpu_custom_call.1} parent=1 // pred_check
      _
    $region35: #{tpu_custom_call.1} parent=1 // pred_check_branch
      %103 = sbr.rel (0) target = $region37
    $region36: #{tpu_custom_call.1} parent=1 // pred_region
      %s105 = ssub.s32 16, 16
      %106 = vsyncadd [#allocation12], %s105
      %s108 = sshll.u32 [#allocation13], 4
      %s109 = int_to_ptr.vmem [resolvable:$true] %s108
      %111 = dma.hbm_to_vmem [thread:$0]  %s8, 16, %s109, [#allocation12]
    $region37: #{tpu_custom_call.1} parent=1 // pred_fallthru
      _
    // Predicated region
    $region38: #{tpu_custom_call.1} parent=1 // pred_check
      _
    $region39: #{tpu_custom_call.1} parent=1 // pred_check_branch
      %113 = sbr.rel (0) target = $region41
    $region40: #{tpu_custom_call.1} parent=1 // pred_region
      _
    $region41: #{tpu_custom_call.1} parent=1 // pred_fallthru
      _
    // Predicated region
    $region42: #{tpu_custom_call.1} parent=1 // pred_check
      _
    $region43: #{tpu_custom_call.1} parent=1 // pred_check_branch
      %115 = sbr.rel (0) target = $region45
    $region44: #{tpu_custom_call.1} parent=1 // pred_region
      _
    $region45: #{tpu_custom_call.1} parent=1 // pred_fallthru
      _
    // Predicated region
    $region46: #{tpu_custom_call.1} parent=1 // pred_check
      _
    $region47: #{tpu_custom_call.1} parent=1 // pred_check_branch
      %117 = sbr.rel (0) target = $region49
    $region48: #{tpu_custom_call.1} parent=1 // pred_region
      %s119 = ssub.s32 512, 512
      %120 = vsyncadd [#allocation15], %s119
      %s121 = sshll.u32 [#allocation14], 4
      %s122 = int_to_ptr.vmem [resolvable:$true] %s121
      %127 = dma.hbm_to_vmem [thread:$0]  %s11, 512, %s122, [#allocation15], 128, 128, 8
    $region49: #{tpu_custom_call.1} parent=1 // pred_fallthru
      _
    // Predicated region
    $region50: #{tpu_custom_call.1} parent=1 // pred_check
      _
    $region51: #{tpu_custom_call.1} parent=1 // pred_check_branch
      %129 = sbr.rel (0) target = $region53
    $region52: #{tpu_custom_call.1} parent=1 // pred_region
      _
    $region53: #{tpu_custom_call.1} parent=1 // pred_fallthru
      _
    // Predicated region
    $region54: #{tpu_custom_call.1} parent=1 // pred_check
      _
    $region55: #{tpu_custom_call.1} parent=1 // pred_check_branch
      %131 = sbr.rel (0) target = $region57
    $region56: #{tpu_custom_call.1} parent=1 // pred_region
      _
    $region57: #{tpu_custom_call.1} parent=1 // pred_fallthru
      _
    // Predicated region
    $region58: #{tpu_custom_call.1} parent=1 // pred_check
      _
    $region59: #{tpu_custom_call.1} parent=1 // pred_check_branch
      %133 = sbr.rel (0) target = $region61
    $region60: #{tpu_custom_call.1} parent=1 // pred_region
      _
    $region61: #{tpu_custom_call.1} parent=1 // pred_fallthru
      _
    // Predicated region
    $region62: #{tpu_custom_call.1} parent=1 // pred_check
      _
    $region63: #{tpu_custom_call.1} parent=1 // pred_check_branch
      %135 = sbr.rel (0) target = $region65
    $region64: #{tpu_custom_call.1} parent=1 // pred_region
      %136 = dma.done [#allocation3], 256
    $region65: #{tpu_custom_call.1} parent=1 // pred_fallthru
      _
    // Predicated region
    $region66: #{tpu_custom_call.1} parent=1 // pred_check
      _
    $region67: #{tpu_custom_call.1} parent=1 // pred_check_branch
      %138 = sbr.rel (0) target = $region69
    $region68: #{tpu_custom_call.1} parent=1 // pred_region
      %139 = dma.done [#allocation6], 512
    $region69: #{tpu_custom_call.1} parent=1 // pred_fallthru
      _
    // Predicated region
    $region70: #{tpu_custom_call.1} parent=1 // pred_check
      _
    $region71: #{tpu_custom_call.1} parent=1 // pred_check_branch
      %141 = sbr.rel (0) target = $region73
    $region72: #{tpu_custom_call.1} parent=1 // pred_region
      %142 = dma.done [#allocation6], 512
    $region73: #{tpu_custom_call.1} parent=1 // pred_fallthru
      _
    // Predicated region
    $region74: #{tpu_custom_call.1} parent=1 // pred_check
      _
    $region75: #{tpu_custom_call.1} parent=1 // pred_check_branch
      %144 = sbr.rel (0) target = $region77
    $region76: #{tpu_custom_call.1} parent=1 // pred_region
      %145 = dma.done [#allocation9], 512
    $region77: #{tpu_custom_call.1} parent=1 // pred_fallthru
      _
    // Predicated region
    $region78: #{tpu_custom_call.1} parent=1 // pred_check
      _
    $region79: #{tpu_custom_call.1} parent=1 // pred_check_branch
      %147 = sbr.rel (0) target = $region81
    $region80: #{tpu_custom_call.1} parent=1 // pred_region
      %148 = dma.done [#allocation9], 512
    $region81: #{tpu_custom_call.1} parent=1 // pred_fallthru
      _
    // Predicated region
    $region82: #{tpu_custom_call.1} parent=1 // pred_check
      _
    $region83: #{tpu_custom_call.1} parent=1 // pred_check_branch
      %150 = sbr.rel (0) target = $region85
    $region84: #{tpu_custom_call.1} parent=1 // pred_region
      %151 = dma.done [#allocation12], 512
    $region85: #{tpu_custom_call.1} parent=1 // pred_fallthru
      _
    // Predicated region
    $region86: #{tpu_custom_call.1} parent=1 // pred_check
      _
    $region87: #{tpu_custom_call.1} parent=1 // pred_check_branch
      %153 = sbr.rel (0) target = $region89
    $region88: #{tpu_custom_call.1} parent=1 // pred_region
      %154 = dma.done [#allocation12], 16
    $region89: #{tpu_custom_call.1} parent=1 // pred_fallthru
      _
    // Predicated region
    $region90: #{tpu_custom_call.1} parent=1 // pred_check
      _
    $region91: #{tpu_custom_call.1} parent=1 // pred_check_branch
      %156 = sbr.rel (0) target = $region93
    $region92: #{tpu_custom_call.1} parent=1 // pred_region
      %157 = dma.done [#allocation15], 512
    $region93: #{tpu_custom_call.1} parent=1 // pred_fallthru
      _
    %v158 = vld [vmem:[#allocation2] sm:$0xff]
    %v159 = vld [vmem:[#allocation2 + $0x8] sm:$0xff]
    %v160 = vld [vmem:[#allocation5] sm:$0xff]
    %v161 = vld [vmem:[#allocation5 + $0x8] sm:$0xff]
    %v162 = vld [vmem:[#allocation5 + $0x10] sm:$0xff]
    %v163 = vld [vmem:[#allocation5 + $0x18] sm:$0xff]
    %v164 = vld [vmem:[#allocation7] sm:$0xff]
    %v165 = vld [vmem:[#allocation7 + $0x8] sm:$0xff]
    %v166 = vld [vmem:[#allocation7 + $0x10] sm:$0xff]
    %v167 = vld [vmem:[#allocation7 + $0x18] sm:$0xff]
    %vm168 = vcmask 261120
    %v170 = vsel %vm168, %v158, 0
    %v173 = vsel %vm168, %v159, 0
    %175 = vmatprep.subr.mxu0 0.0
    %176 = vmatpush1.msra.mxu0 %v164
    %177 = vmatprep.subr.mxu0 0.0
    %178 = vmatpush1.msra.mxu0 %v165
    %179 = vmatprep.subr.mxu0 0.0
    %180 = vmatpush1.msra.mxu0 %v166
    %181 = vmatprep.subr.mxu0 0.0
    %182 = vmatpush1.msra.mxu0 %v167
    %183 = vmatprep.subr.mxu0 0.0
    %184 = vmatpush1.msra.mxu0 0.0
    %185 = vmatprep.subr.mxu0 0.0
    %186 = vmatpush1.msra.mxu0 0.0
    %187 = vmatprep.subr.mxu0 0.0
    %188 = vmatpush1.msra.mxu0 0.0
    %189 = vmatprep.subr.mxu0 0.0
    %190 = vmatpush1.msra.mxu0 0.0
    %191 = vmatprep.subr.mxu0 0.0
    %192 = vmatpush1.msra.mxu0 0.0
    %193 = vmatprep.subr.mxu0 0.0
    %194 = vmatpush1.msra.mxu0 0.0
    %195 = vmatprep.subr.mxu0 0.0
    %196 = vmatpush1.msra.mxu0 0.0
    %197 = vmatprep.subr.mxu0 0.0
    %198 = vmatpush1.msra.mxu0 0.0
    %199 = vmatprep.subr.mxu0 0.0
    %200 = vmatpush1.msra.mxu0 0.0
    %201 = vmatprep.subr.mxu0 0.0
    %202 = vmatpush1.msra.mxu0 0.0
    %203 = vmatprep.subr.mxu0 0.0
    %204 = vmatpush1.msra.mxu0 0.0
    %205 = vmatprep.subr.mxu0 0.0
    %206 = vmatpush1.msra.mxu0 0.0
    %207 = vmatprep.subr.mxu0 0.0
    %208 = vmatpush1.msra.mxu0 0.0
    %209 = vmatprep.subr.mxu0 0.0
    %210 = vmatpush1.msra.mxu0 0.0
    %211 = vmatprep.subr.mxu0 0.0
    %212 = vmatpush1.msra.mxu0 0.0
    %213 = vmatprep.subr.mxu0 0.0
    %214 = vmatpush1.msra.mxu0 0.0
    %215 = vmatprep.subr.mxu0 0.0
    %216 = vmatpush1.msra.mxu0 0.0
    %217 = vmatprep.subr.mxu0 0.0
    %218 = vmatpush1.msra.mxu0 0.0
    %219 = vmatprep.subr.mxu0 0.0
    %220 = vmatpush1.msra.mxu0 0.0
    %221 = vmatprep.subr.mxu0 0.0
    %222 = vmatpush1.msra.mxu0 0.0
    %223 = vmatprep.subr.mxu0 0.0
    %224 = vmatpush1.msra.mxu0 0.0
    %225 = vmatprep.subr.mxu0 0.0
    %226 = vmatpush1.msra.mxu0 0.0
    %227 = vmatprep.subr.mxu0 0.0
    %228 = vmatpush1.msra.mxu0 0.0
    %229 = vmatprep.subr.mxu0 0.0
    %230 = vmatpush1.msra.mxu0 0.0
    %231 = vmatprep.subr.mxu0 0.0
    %232 = vmatpush1.msra.mxu0 0.0
    %233 = vmatprep.subr.mxu0 0.0
    %234 = vmatpush1.msra.mxu0 0.0
    %235 = vmatprep.subr.mxu0 0.0
    %236 = vmatpush1.msra.mxu0 0.0
    %237 = vmatprep.subr.mxu0 0.0
    %238 = vmatpush1.msra.mxu0 0.0
    %239 = vmatprep.mubr.f32.mxu0 0.0
    %240 = vmatmul.mubr.f32.gmra.mrb[0].mxu0 %v170
    %v241 = vpop.f32.mrb[0].mxu0
    %v242 = vadd.f32 0.0, %v241
    %v243 = vpop.f32.mrb[0].mxu0
    %244 = vmatprep.mubr.f32.mxu0 0.0
    %245 = vmatmul.mubr.f32.gmra.mrb[0].mxu0 %v173
    %v246 = vpop.f32.mrb[0].mxu0
    %v247 = vadd.f32 0.0, %v246
    %v248 = vpop.f32.mrb[0].mxu0
    %249 = vdwg.mxu0
    %v250 = vld [vmem:[#allocation8] sm:$0xff]
    %v251 = vld [vmem:[#allocation8 + $0x8] sm:$0xff]
    %v252 = vld [vmem:[#allocation8 + $0x10] sm:$0xff]
    %v253 = vld [vmem:[#allocation8 + $0x18] sm:$0xff]
    %v255 = vsel %vm168, %v160, 0
    %v258 = vsel %vm168, %v161, 0
    %v261 = vsel %vm168, %v162, 0
    %v264 = vsel %vm168, %v163, 0
    %266 = vmatprep.subr.mxu0 0.0
    %267 = vmatpush1.msra.mxu0 %v250
    %268 = vmatprep.subr.mxu0 0.0
    %269 = vmatpush1.msra.mxu0 %v251
    %270 = vmatprep.subr.mxu0 0.0
    %271 = vmatpush1.msra.mxu0 %v252
    %272 = vmatprep.subr.mxu0 0.0
    %273 = vmatpush1.msra.mxu0 %v253
    %274 = vmatprep.subr.mxu0 0.0
    %275 = vmatpush1.msra.mxu0 0.0
    %276 = vmatprep.subr.mxu0 0.0
    %277 = vmatpush1.msra.mxu0 0.0
    %278 = vmatprep.subr.mxu0 0.0
    %279 = vmatpush1.msra.mxu0 0.0
    %280 = vmatprep.subr.mxu0 0.0
    %281 = vmatpush1.msra.mxu0 0.0
    %282 = vmatprep.subr.mxu0 0.0
    %283 = vmatpush1.msra.mxu0 0.0
    %284 = vmatprep.subr.mxu0 0.0
    %285 = vmatpush1.msra.mxu0 0.0
    %286 = vmatprep.subr.mxu0 0.0
    %287 = vmatpush1.msra.mxu0 0.0
    %288 = vmatprep.subr.mxu0 0.0
    %289 = vmatpush1.msra.mxu0 0.0
    %290 = vmatprep.subr.mxu0 0.0
    %291 = vmatpush1.msra.mxu0 0.0
    %292 = vmatprep.subr.mxu0 0.0
    %293 = vmatpush1.msra.mxu0 0.0
    %294 = vmatprep.subr.mxu0 0.0
    %295 = vmatpush1.msra.mxu0 0.0
    %296 = vmatprep.subr.mxu0 0.0
    %297 = vmatpush1.msra.mxu0 0.0
    %298 = vmatprep.subr.mxu0 0.0
    %299 = vmatpush1.msra.mxu0 0.0
    %300 = vmatprep.subr.mxu0 0.0
    %301 = vmatpush1.msra.mxu0 0.0
    %302 = vmatprep.subr.mxu0 0.0
    %303 = vmatpush1.msra.mxu0 0.0
    %304 = vmatprep.subr.mxu0 0.0
    %305 = vmatpush1.msra.mxu0 0.0
    %306 = vmatprep.subr.mxu0 0.0
    %307 = vmatpush1.msra.mxu0 0.0
    %308 = vmatprep.subr.mxu0 0.0
    %309 = vmatpush1.msra.mxu0 0.0
    %310 = vmatprep.subr.mxu0 0.0
    %311 = vmatpush1.msra.mxu0 0.0
    %312 = vmatprep.subr.mxu0 0.0
    %313 = vmatpush1.msra.mxu0 0.0
    %314 = vmatprep.subr.mxu0 0.0
    %315 = vmatpush1.msra.mxu0 0.0
    %316 = vmatprep.subr.mxu0 0.0
    %317 = vmatpush1.msra.mxu0 0.0
    %318 = vmatprep.subr.mxu0 0.0
    %319 = vmatpush1.msra.mxu0 0.0
    %320 = vmatprep.subr.mxu0 0.0
    %321 = vmatpush1.msra.mxu0 0.0
    %322 = vmatprep.subr.mxu0 0.0
    %323 = vmatpush1.msra.mxu0 0.0
    %324 = vmatprep.subr.mxu0 0.0
    %325 = vmatpush1.msra.mxu0 0.0
    %326 = vmatprep.subr.mxu0 0.0
    %327 = vmatpush1.msra.mxu0 0.0
    %328 = vmatprep.subr.mxu0 0.0
    %329 = vmatpush1.msra.mxu0 0.0
    %330 = vmatprep.mubr.f32.mxu0 0.0
    %331 = vmatmul.mubr.f32.gmra.mrb[0].mxu0 %v255
    %v332 = vpop.f32.mrb[0].mxu0
    %v333 = vadd.f32 0.0, %v332
    %v334 = vpop.f32.mrb[0].mxu0
    %335 = vmatprep.mubr.f32.mxu0 0.0
    %336 = vmatmul.mubr.f32.gmra.mrb[0].mxu0 %v258
    %v337 = vpop.f32.mrb[0].mxu0
    %v338 = vadd.f32 0.0, %v337
    %v339 = vpop.f32.mrb[0].mxu0
    %340 = vmatprep.mubr.f32.mxu0 0.0
    %341 = vmatmul.mubr.f32.gmra.mrb[0].mxu0 %v261
    %v342 = vpop.f32.mrb[0].mxu0
    %v343 = vadd.f32 0.0, %v342
    %v344 = vpop.f32.mrb[0].mxu0
    %345 = vmatprep.mubr.f32.mxu0 0.0
    %346 = vmatmul.mubr.f32.gmra.mrb[0].mxu0 %v264
    %v347 = vpop.f32.mrb[0].mxu0
    %v348 = vadd.f32 0.0, %v347
    %v349 = vpop.f32.mrb[0].mxu0
    %350 = vdwg.mxu0
    %v351 = vld [vmem:[#allocation10] sm:$0xff]
    %v352 = vld [vmem:[#allocation10 + $0x8] sm:$0xff]
    %v353 = vld [vmem:[#allocation10 + $0x10] sm:$0xff]
    %v354 = vld [vmem:[#allocation10 + $0x18] sm:$0xff]
    %355 = vmatprep.subr.mxu0 0.0
    %356 = vmatpush1.msra.mxu0 %v351
    %357 = vmatprep.subr.mxu0 0.0
    %358 = vmatpush1.msra.mxu0 %v352
    %359 = vmatprep.subr.mxu0 0.0
    %360 = vmatpush1.msra.mxu0 %v353
    %361 = vmatprep.subr.mxu0 0.0
    %362 = vmatpush1.msra.mxu0 %v354
    %363 = vmatprep.subr.mxu0 0.0
    %364 = vmatpush1.msra.mxu0 0.0
    %365 = vmatprep.subr.mxu0 0.0
    %366 = vmatpush1.msra.mxu0 0.0
    %367 = vmatprep.subr.mxu0 0.0
    %368 = vmatpush1.msra.mxu0 0.0
    %369 = vmatprep.subr.mxu0 0.0
    %370 = vmatpush1.msra.mxu0 0.0
    %371 = vmatprep.subr.mxu0 0.0
    %372 = vmatpush1.msra.mxu0 0.0
    %373 = vmatprep.subr.mxu0 0.0
    %374 = vmatpush1.msra.mxu0 0.0
    %375 = vmatprep.subr.mxu0 0.0
    %376 = vmatpush1.msra.mxu0 0.0
    %377 = vmatprep.subr.mxu0 0.0
    %378 = vmatpush1.msra.mxu0 0.0
    %379 = vmatprep.subr.mxu0 0.0
    %380 = vmatpush1.msra.mxu0 0.0
    %381 = vmatprep.subr.mxu0 0.0
    %382 = vmatpush1.msra.mxu0 0.0
    %383 = vmatprep.subr.mxu0 0.0
    %384 = vmatpush1.msra.mxu0 0.0
    %385 = vmatprep.subr.mxu0 0.0
    %386 = vmatpush1.msra.mxu0 0.0
    %387 = vmatprep.subr.mxu0 0.0
    %388 = vmatpush1.msra.mxu0 0.0
    %389 = vmatprep.subr.mxu0 0.0
    %390 = vmatpush1.msra.mxu0 0.0
    %391 = vmatprep.subr.mxu0 0.0
    %392 = vmatpush1.msra.mxu0 0.0
    %393 = vmatprep.subr.mxu0 0.0
    %394 = vmatpush1.msra.mxu0 0.0
    %395 = vmatprep.subr.mxu0 0.0
    %396 = vmatpush1.msra.mxu0 0.0
    %397 = vmatprep.subr.mxu0 0.0
    %398 = vmatpush1.msra.mxu0 0.0
    %399 = vmatprep.subr.mxu0 0.0
    %400 = vmatpush1.msra.mxu0 0.0
    %401 = vmatprep.subr.mxu0 0.0
    %402 = vmatpush1.msra.mxu0 0.0
    %403 = vmatprep.subr.mxu0 0.0
    %404 = vmatpush1.msra.mxu0 0.0
    %405 = vmatprep.subr.mxu0 0.0
    %406 = vmatpush1.msra.mxu0 0.0
    %407 = vmatprep.subr.mxu0 0.0
    %408 = vmatpush1.msra.mxu0 0.0
    %409 = vmatprep.subr.mxu0 0.0
    %410 = vmatpush1.msra.mxu0 0.0
    %411 = vmatprep.subr.mxu0 0.0
    %412 = vmatpush1.msra.mxu0 0.0
    %413 = vmatprep.subr.mxu0 0.0
    %414 = vmatpush1.msra.mxu0 0.0
    %415 = vmatprep.subr.mxu0 0.0
    %416 = vmatpush1.msra.mxu0 0.0
    %417 = vmatprep.subr.mxu0 0.0
    %418 = vmatpush1.msra.mxu0 0.0
    %419 = vmatprep.mubr.f32.mxu0 0.0
    %420 = vmatmul.mubr.f32.gmra.mrb[0].mxu0 %v255
    %v421 = vpop.f32.mrb[0].mxu0
    %v422 = vadd.f32 0.0, %v421
    %v423 = vpop.f32.mrb[0].mxu0
    %424 = vmatprep.mubr.f32.mxu0 0.0
    %425 = vmatmul.mubr.f32.gmra.mrb[0].mxu0 %v258
    %v426 = vpop.f32.mrb[0].mxu0
    %v427 = vadd.f32 0.0, %v426
    %v428 = vpop.f32.mrb[0].mxu0
    %429 = vmatprep.mubr.f32.mxu0 0.0
    %430 = vmatmul.mubr.f32.gmra.mrb[0].mxu0 %v261
    %v431 = vpop.f32.mrb[0].mxu0
    %v432 = vadd.f32 0.0, %v431
    %v433 = vpop.f32.mrb[0].mxu0
    %434 = vmatprep.mubr.f32.mxu0 0.0
    %435 = vmatmul.mubr.f32.gmra.mrb[0].mxu0 %v264
    %v436 = vpop.f32.mrb[0].mxu0
    %v437 = vadd.f32 0.0, %v436
    %v438 = vpop.f32.mrb[0].mxu0
    %439 = vdwg.mxu0
    %vm440 = vcmask 64512
    %v442 = vsel %vm440, %v242, 0
    %v445 = vsel %vm440, %v333, 0
    %v448 = vsel %vm440, %v338, 0
    %450 = vmatprep.subr.mxu0 0.0
    %451 = vmatpush1.xpose.msra.mxu0 %v445
    %452 = vmatprep.subr.mxu0 0.0
    %453 = vmatpush1.xpose.msra.mxu0 %v448
    %454 = vmatprep.subr.mxu0 0.0
    %455 = vmatpush1.xpose.msra.mxu0 0.0
    %456 = vmatprep.subr.mxu0 0.0
    %457 = vmatpush1.xpose.msra.mxu0 0.0
    %458 = vmatprep.subr.mxu0 0.0
    %459 = vmatpush1.xpose.msra.mxu0 0.0
    %460 = vmatprep.subr.mxu0 0.0
    %461 = vmatpush1.xpose.msra.mxu0 0.0
    %462 = vmatprep.subr.mxu0 0.0
    %463 = vmatpush1.xpose.msra.mxu0 0.0
    %464 = vmatprep.subr.mxu0 0.0
    %465 = vmatpush1.xpose.msra.mxu0 0.0
    %466 = vmatprep.subr.mxu0 0.0
    %467 = vmatpush1.xpose.msra.mxu0 0.0
    %468 = vmatprep.subr.mxu0 0.0
    %469 = vmatpush1.xpose.msra.mxu0 0.0
    %470 = vmatprep.subr.mxu0 0.0
    %471 = vmatpush1.xpose.msra.mxu0 0.0
    %472 = vmatprep.subr.mxu0 0.0
    %473 = vmatpush1.xpose.msra.mxu0 0.0
    %474 = vmatprep.subr.mxu0 0.0
    %475 = vmatpush1.xpose.msra.mxu0 0.0
    %476 = vmatprep.subr.mxu0 0.0
    %477 = vmatpush1.xpose.msra.mxu0 0.0
    %478 = vmatprep.subr.mxu0 0.0
    %479 = vmatpush1.xpose.msra.mxu0 0.0
    %480 = vmatprep.subr.mxu0 0.0
    %481 = vmatpush1.xpose.msra.mxu0 0.0
    %482 = vmatprep.subr.mxu0 0.0
    %483 = vmatpush1.xpose.msra.mxu0 0.0
    %484 = vmatprep.subr.mxu0 0.0
    %485 = vmatpush1.xpose.msra.mxu0 0.0
    %486 = vmatprep.subr.mxu0 0.0
    %487 = vmatpush1.xpose.msra.mxu0 0.0
    %488 = vmatprep.subr.mxu0 0.0
    %489 = vmatpush1.xpose.msra.mxu0 0.0
    %490 = vmatprep.subr.mxu0 0.0
    %491 = vmatpush1.xpose.msra.mxu0 0.0
    %492 = vmatprep.subr.mxu0 0.0
    %493 = vmatpush1.xpose.msra.mxu0 0.0
    %494 = vmatprep.subr.mxu0 0.0
    %495 = vmatpush1.xpose.msra.mxu0 0.0
    %496 = vmatprep.subr.mxu0 0.0
    %497 = vmatpush1.xpose.msra.mxu0 0.0
    %498 = vmatprep.subr.mxu0 0.0
    %499 = vmatpush1.xpose.msra.mxu0 0.0
    %500 = vmatprep.subr.mxu0 0.0
    %501 = vmatpush1.xpose.msra.mxu0 0.0
    %502 = vmatprep.subr.mxu0 0.0
    %503 = vmatpush1.xpose.msra.mxu0 0.0
    %504 = vmatprep.subr.mxu0 0.0
    %505 = vmatpush1.xpose.msra.mxu0 0.0
    %506 = vmatprep.subr.mxu0 0.0
    %507 = vmatpush1.xpose.msra.mxu0 0.0
    %508 = vmatprep.subr.mxu0 0.0
    %509 = vmatpush1.xpose.msra.mxu0 0.0
    %510 = vmatprep.subr.mxu0 0.0
    %511 = vmatpush1.xpose.msra.mxu0 0.0
    %512 = vmatprep.subr.mxu0 0.0
    %513 = vmatpush1.xpose.msra.mxu0 0.0
    %514 = vmatprep.mubr.f32.mxu0 0.0
    %515 = vmatmul.mubr.f32.gmra.mrb[0].mxu0 %v442
    %v516 = vpop.f32.mrb[0].mxu0
    %v517 = vadd.f32 0.0, %v516
    %v518 = vpop.f32.mrb[0].mxu0
    %519 = vdwg.mxu0
    %v521 = vsel %vm440, %v247, 0
    %v524 = vsel %vm440, %v343, 0
    %v527 = vsel %vm440, %v348, 0
    %529 = vmatprep.subr.mxu0 0.0
    %530 = vmatpush1.xpose.msra.mxu0 %v524
    %531 = vmatprep.subr.mxu0 0.0
    %532 = vmatpush1.xpose.msra.mxu0 %v527
    %533 = vmatprep.subr.mxu0 0.0
    %534 = vmatpush1.xpose.msra.mxu0 0.0
    %535 = vmatprep.subr.mxu0 0.0
    %536 = vmatpush1.xpose.msra.mxu0 0.0
    %537 = vmatprep.subr.mxu0 0.0
    %538 = vmatpush1.xpose.msra.mxu0 0.0
    %539 = vmatprep.subr.mxu0 0.0
    %540 = vmatpush1.xpose.msra.mxu0 0.0
    %541 = vmatprep.subr.mxu0 0.0
    %542 = vmatpush1.xpose.msra.mxu0 0.0
    %543 = vmatprep.subr.mxu0 0.0
    %544 = vmatpush1.xpose.msra.mxu0 0.0
    %545 = vmatprep.subr.mxu0 0.0
    %546 = vmatpush1.xpose.msra.mxu0 0.0
    %547 = vmatprep.subr.mxu0 0.0
    %548 = vmatpush1.xpose.msra.mxu0 0.0
    %549 = vmatprep.subr.mxu0 0.0
    %550 = vmatpush1.xpose.msra.mxu0 0.0
    %551 = vmatprep.subr.mxu0 0.0
    %552 = vmatpush1.xpose.msra.mxu0 0.0
    %553 = vmatprep.subr.mxu0 0.0
    %554 = vmatpush1.xpose.msra.mxu0 0.0
    %555 = vmatprep.subr.mxu0 0.0
    %556 = vmatpush1.xpose.msra.mxu0 0.0
    %557 = vmatprep.subr.mxu0 0.0
    %558 = vmatpush1.xpose.msra.mxu0 0.0
    %559 = vmatprep.subr.mxu0 0.0
    %560 = vmatpush1.xpose.msra.mxu0 0.0
    %561 = vmatprep.subr.mxu0 0.0
    %562 = vmatpush1.xpose.msra.mxu0 0.0
    %563 = vmatprep.subr.mxu0 0.0
    %564 = vmatpush1.xpose.msra.mxu0 0.0
    %565 = vmatprep.subr.mxu0 0.0
    %566 = vmatpush1.xpose.msra.mxu0 0.0
    %567 = vmatprep.subr.mxu0 0.0
    %568 = vmatpush1.xpose.msra.mxu0 0.0
    %569 = vmatprep.subr.mxu0 0.0
    %570 = vmatpush1.xpose.msra.mxu0 0.0
    %571 = vmatprep.subr.mxu0 0.0
    %572 = vmatpush1.xpose.msra.mxu0 0.0
    %573 = vmatprep.subr.mxu0 0.0
    %574 = vmatpush1.xpose.msra.mxu0 0.0
    %575 = vmatprep.subr.mxu0 0.0
    %576 = vmatpush1.xpose.msra.mxu0 0.0
    %577 = vmatprep.subr.mxu0 0.0
    %578 = vmatpush1.xpose.msra.mxu0 0.0
    %579 = vmatprep.subr.mxu0 0.0
    %580 = vmatpush1.xpose.msra.mxu0 0.0
    %581 = vmatprep.subr.mxu0 0.0
    %582 = vmatpush1.xpose.msra.mxu0 0.0
    %583 = vmatprep.subr.mxu0 0.0
    %584 = vmatpush1.xpose.msra.mxu0 0.0
    %585 = vmatprep.subr.mxu0 0.0
    %586 = vmatpush1.xpose.msra.mxu0 0.0
    %587 = vmatprep.subr.mxu0 0.0
    %588 = vmatpush1.xpose.msra.mxu0 0.0
    %589 = vmatprep.subr.mxu0 0.0
    %590 = vmatpush1.xpose.msra.mxu0 0.0
    %591 = vmatprep.subr.mxu0 0.0
    %592 = vmatpush1.xpose.msra.mxu0 0.0
    %593 = vmatprep.mubr.f32.mxu0 0.0
    %594 = vmatmul.mubr.f32.gmra.mrb[0].mxu0 %v521
    %v595 = vpop.f32.mrb[0].mxu0
    %v596 = vadd.f32 0.0, %v595
    %v597 = vpop.f32.mrb[0].mxu0
    %598 = vdwg.mxu0
    %vm599 = vcmask 130048
    %v600 = vsel %vm599, %v517, -inf
    %601 = vmax.xlane.f32.xlu0 %v600
    %v602 = vpop.xlane.xlu0 %601
    %v603 = vsel %vm599, %v596, -inf
    %604 = vmax.xlane.f32.xlu0 %v603
    %v605 = vpop.xlane.xlu0 %604
    %v606 = vsub.f32 %v517, %v602
    %v607 = vsub.f32 %v596, %v605
    %v608 = vmul.f32 %v606, 1.442695
    %v609 = vpow.pop %v608
    %v610 = vmul.f32 %v607, 1.442695
    %v611 = vpow.pop %v610
    %v612 = vsel %vm599, %v609, 0.0
    %613 = vadd.xlane.f32.xlu0 %v612
    %v614 = vpop.xlane.xlu0 %613
    %v615 = vsel %vm599, %v611, 0.0
    %616 = vadd.xlane.f32.xlu0 %v615
    %v617 = vpop.xlane.xlu0 %616
    %v618 = vrcp.pop %v614
    %v619 = vrcp.pop %v617
    %v620 = vmul.f32 %v609, %v618
    %v621 = vmul.f32 %v611, %v619
    %v623 = vsel %vm599, %v620, 0
    %625 = vmatprep.subr.mxu0 0.0
    %626 = vmatpush1.msra.mxu0 %v422
    %627 = vmatprep.subr.mxu0 0.0
    %628 = vmatpush1.msra.mxu0 %v427
    %629 = vmatprep.subr.mxu0 0.0
    %630 = vmatpush1.msra.mxu0 0.0
    %631 = vmatprep.subr.mxu0 0.0
    %632 = vmatpush1.msra.mxu0 0.0
    %633 = vmatprep.subr.mxu0 0.0
    %634 = vmatpush1.msra.mxu0 0.0
    %635 = vmatprep.subr.mxu0 0.0
    %636 = vmatpush1.msra.mxu0 0.0
    %637 = vmatprep.subr.mxu0 0.0
    %638 = vmatpush1.msra.mxu0 0.0
    %639 = vmatprep.subr.mxu0 0.0
    %640 = vmatpush1.msra.mxu0 0.0
    %641 = vmatprep.subr.mxu0 0.0
    %642 = vmatpush1.msra.mxu0 0.0
    %643 = vmatprep.subr.mxu0 0.0
    %644 = vmatpush1.msra.mxu0 0.0
    %645 = vmatprep.subr.mxu0 0.0
    %646 = vmatpush1.msra.mxu0 0.0
    %647 = vmatprep.subr.mxu0 0.0
    %648 = vmatpush1.msra.mxu0 0.0
    %649 = vmatprep.subr.mxu0 0.0
    %650 = vmatpush1.msra.mxu0 0.0
    %651 = vmatprep.subr.mxu0 0.0
    %652 = vmatpush1.msra.mxu0 0.0
    %653 = vmatprep.subr.mxu0 0.0
    %654 = vmatpush1.msra.mxu0 0.0
    %655 = vmatprep.subr.mxu0 0.0
    %656 = vmatpush1.msra.mxu0 0.0
    %657 = vmatprep.subr.mxu0 0.0
    %658 = vmatpush1.msra.mxu0 0.0
    %659 = vmatprep.subr.mxu0 0.0
    %660 = vmatpush1.msra.mxu0 0.0
    %661 = vmatprep.subr.mxu0 0.0
    %662 = vmatpush1.msra.mxu0 0.0
    %663 = vmatprep.subr.mxu0 0.0
    %664 = vmatpush1.msra.mxu0 0.0
    %665 = vmatprep.subr.mxu0 0.0
    %666 = vmatpush1.msra.mxu0 0.0
    %667 = vmatprep.subr.mxu0 0.0
    %668 = vmatpush1.msra.mxu0 0.0
    %669 = vmatprep.subr.mxu0 0.0
    %670 = vmatpush1.msra.mxu0 0.0
    %671 = vmatprep.subr.mxu0 0.0
    %672 = vmatpush1.msra.mxu0 0.0
    %673 = vmatprep.subr.mxu0 0.0
    %674 = vmatpush1.msra.mxu0 0.0
    %675 = vmatprep.subr.mxu0 0.0
    %676 = vmatpush1.msra.mxu0 0.0
    %677 = vmatprep.subr.mxu0 0.0
    %678 = vmatpush1.msra.mxu0 0.0
    %679 = vmatprep.subr.mxu0 0.0
    %680 = vmatpush1.msra.mxu0 0.0
    %681 = vmatprep.subr.mxu0 0.0
    %682 = vmatpush1.msra.mxu0 0.0
    %683 = vmatprep.subr.mxu0 0.0
    %684 = vmatpush1.msra.mxu0 0.0
    %685 = vmatprep.subr.mxu0 0.0
    %686 = vmatpush1.msra.mxu0 0.0
    %687 = vmatprep.subr.mxu0 0.0
    %688 = vmatpush1.msra.mxu0 0.0
    %689 = vmatprep.mubr.f32.mxu0 0.0
    %690 = vmatmul.mubr.f32.gmra.mrb[0].mxu0 %v623
    %v691 = vpop.f32.mrb[0].mxu0
    %v692 = vadd.f32 0.0, %v691
    %v693 = vpop.f32.mrb[0].mxu0
    %694 = vdwg.mxu0
    %v696 = vsel %vm599, %v621, 0
    %698 = vmatprep.subr.mxu0 0.0
    %699 = vmatpush1.msra.mxu0 %v432
    %700 = vmatprep.subr.mxu0 0.0
    %701 = vmatpush1.msra.mxu0 %v437
    %702 = vmatprep.subr.mxu0 0.0
    %703 = vmatpush1.msra.mxu0 0.0
    %704 = vmatprep.subr.mxu0 0.0
    %705 = vmatpush1.msra.mxu0 0.0
    %706 = vmatprep.subr.mxu0 0.0
    %707 = vmatpush1.msra.mxu0 0.0
    %708 = vmatprep.subr.mxu0 0.0
    %709 = vmatpush1.msra.mxu0 0.0
    %710 = vmatprep.subr.mxu0 0.0
    %711 = vmatpush1.msra.mxu0 0.0
    %712 = vmatprep.subr.mxu0 0.0
    %713 = vmatpush1.msra.mxu0 0.0
    %714 = vmatprep.subr.mxu0 0.0
    %715 = vmatpush1.msra.mxu0 0.0
    %716 = vmatprep.subr.mxu0 0.0
    %717 = vmatpush1.msra.mxu0 0.0
    %718 = vmatprep.subr.mxu0 0.0
    %719 = vmatpush1.msra.mxu0 0.0
    %720 = vmatprep.subr.mxu0 0.0
    %721 = vmatpush1.msra.mxu0 0.0
    %722 = vmatprep.subr.mxu0 0.0
    %723 = vmatpush1.msra.mxu0 0.0
    %724 = vmatprep.subr.mxu0 0.0
    %725 = vmatpush1.msra.mxu0 0.0
    %726 = vmatprep.subr.mxu0 0.0
    %727 = vmatpush1.msra.mxu0 0.0
    %728 = vmatprep.subr.mxu0 0.0
    %729 = vmatpush1.msra.mxu0 0.0
    %730 = vmatprep.subr.mxu0 0.0
    %731 = vmatpush1.msra.mxu0 0.0
    %732 = vmatprep.subr.mxu0 0.0
    %733 = vmatpush1.msra.mxu0 0.0
    %734 = vmatprep.subr.mxu0 0.0
    %735 = vmatpush1.msra.mxu0 0.0
    %736 = vmatprep.subr.mxu0 0.0
    %737 = vmatpush1.msra.mxu0 0.0
    %738 = vmatprep.subr.mxu0 0.0
    %739 = vmatpush1.msra.mxu0 0.0
    %740 = vmatprep.subr.mxu0 0.0
    %741 = vmatpush1.msra.mxu0 0.0
    %742 = vmatprep.subr.mxu0 0.0
    %743 = vmatpush1.msra.mxu0 0.0
    %744 = vmatprep.subr.mxu0 0.0
    %745 = vmatpush1.msra.mxu0 0.0
    %746 = vmatprep.subr.mxu0 0.0
    %747 = vmatpush1.msra.mxu0 0.0
    %748 = vmatprep.subr.mxu0 0.0
    %749 = vmatpush1.msra.mxu0 0.0
    %750 = vmatprep.subr.mxu0 0.0
    %751 = vmatpush1.msra.mxu0 0.0
    %752 = vmatprep.subr.mxu0 0.0
    %753 = vmatpush1.msra.mxu0 0.0
    %754 = vmatprep.subr.mxu0 0.0
    %755 = vmatpush1.msra.mxu0 0.0
    %756 = vmatprep.subr.mxu0 0.0
    %757 = vmatpush1.msra.mxu0 0.0
    %758 = vmatprep.subr.mxu0 0.0
    %759 = vmatpush1.msra.mxu0 0.0
    %760 = vmatprep.subr.mxu0 0.0
    %761 = vmatpush1.msra.mxu0 0.0
    %762 = vmatprep.mubr.f32.mxu0 0.0
    %763 = vmatmul.mubr.f32.gmra.mrb[0].mxu0 %v696
    %v764 = vpop.f32.mrb[0].mxu0
    %v765 = vadd.f32 0.0, %v764
    %v766 = vpop.f32.mrb[0].mxu0
    %767 = vdwg.mxu0
    %768 = vrot.lane.b32.xlu0 %v242, 120
    %v769 = vpop.permute.xlu0 %768
    %770 = vrot.lane.b32.xlu0 %v333, 120
    %v771 = vpop.permute.xlu0 %770
    %772 = vrot.lane.b32.xlu0 %v338, 120
    %v773 = vpop.permute.xlu0 %772
    %v774 = vsel %vm440, %v769, 0
    %v776 = vsel %vm440, %v771, 0
    %v778 = vsel %vm440, %v773, 0
    %780 = vmatprep.subr.mxu0 0.0
    %781 = vmatpush1.xpose.msra.mxu0 %v776
    %782 = vmatprep.subr.mxu0 0.0
    %783 = vmatpush1.xpose.msra.mxu0 %v778
    %784 = vmatprep.subr.mxu0 0.0
    %785 = vmatpush1.xpose.msra.mxu0 0.0
    %786 = vmatprep.subr.mxu0 0.0
    %787 = vmatpush1.xpose.msra.mxu0 0.0
    %788 = vmatprep.subr.mxu0 0.0
    %789 = vmatpush1.xpose.msra.mxu0 0.0
    %790 = vmatprep.subr.mxu0 0.0
    %791 = vmatpush1.xpose.msra.mxu0 0.0
    %792 = vmatprep.subr.mxu0 0.0
    %793 = vmatpush1.xpose.msra.mxu0 0.0
    %794 = vmatprep.subr.mxu0 0.0
    %795 = vmatpush1.xpose.msra.mxu0 0.0
    %796 = vmatprep.subr.mxu0 0.0
    %797 = vmatpush1.xpose.msra.mxu0 0.0
    %798 = vmatprep.subr.mxu0 0.0
    %799 = vmatpush1.xpose.msra.mxu0 0.0
    %800 = vmatprep.subr.mxu0 0.0
    %801 = vmatpush1.xpose.msra.mxu0 0.0
    %802 = vmatprep.subr.mxu0 0.0
    %803 = vmatpush1.xpose.msra.mxu0 0.0
    %804 = vmatprep.subr.mxu0 0.0
    %805 = vmatpush1.xpose.msra.mxu0 0.0
    %806 = vmatprep.subr.mxu0 0.0
    %807 = vmatpush1.xpose.msra.mxu0 0.0
    %808 = vmatprep.subr.mxu0 0.0
    %809 = vmatpush1.xpose.msra.mxu0 0.0
    %810 = vmatprep.subr.mxu0 0.0
    %811 = vmatpush1.xpose.msra.mxu0 0.0
    %812 = vmatprep.subr.mxu0 0.0
    %813 = vmatpush1.xpose.msra.mxu0 0.0
    %814 = vmatprep.subr.mxu0 0.0
    %815 = vmatpush1.xpose.msra.mxu0 0.0
    %816 = vmatprep.subr.mxu0 0.0
    %817 = vmatpush1.xpose.msra.mxu0 0.0
    %818 = vmatprep.subr.mxu0 0.0
    %819 = vmatpush1.xpose.msra.mxu0 0.0
    %820 = vmatprep.subr.mxu0 0.0
    %821 = vmatpush1.xpose.msra.mxu0 0.0
    %822 = vmatprep.subr.mxu0 0.0
    %823 = vmatpush1.xpose.msra.mxu0 0.0
    %824 = vmatprep.subr.mxu0 0.0
    %825 = vmatpush1.xpose.msra.mxu0 0.0
    %826 = vmatprep.subr.mxu0 0.0
    %827 = vmatpush1.xpose.msra.mxu0 0.0
    %828 = vmatprep.subr.mxu0 0.0
    %829 = vmatpush1.xpose.msra.mxu0 0.0
    %830 = vmatprep.subr.mxu0 0.0
    %831 = vmatpush1.xpose.msra.mxu0 0.0
    %832 = vmatprep.subr.mxu0 0.0
    %833 = vmatpush1.xpose.msra.mxu0 0.0
    %834 = vmatprep.subr.mxu0 0.0
    %835 = vmatpush1.xpose.msra.mxu0 0.0
    %836 = vmatprep.subr.mxu0 0.0
    %837 = vmatpush1.xpose.msra.mxu0 0.0
    %838 = vmatprep.subr.mxu0 0.0
    %839 = vmatpush1.xpose.msra.mxu0 0.0
    %840 = vmatprep.subr.mxu0 0.0
    %841 = vmatpush1.xpose.msra.mxu0 0.0
    %842 = vmatprep.subr.mxu0 0.0
    %843 = vmatpush1.xpose.msra.mxu0 0.0
    %844 = vmatprep.mubr.f32.mxu0 0.0
    %845 = vmatmul.mubr.f32.gmra.mrb[0].mxu0 %v774
    %v846 = vpop.f32.mrb[0].mxu0
    %v847 = vadd.f32 0.0, %v846
    %v848 = vpop.f32.mrb[0].mxu0
    %849 = vdwg.mxu0
    %850 = vrot.lane.b32.xlu0 %v247, 120
    %v851 = vpop.permute.xlu0 %850
    %852 = vrot.lane.b32.xlu0 %v343, 120
    %v853 = vpop.permute.xlu0 %852
    %854 = vrot.lane.b32.xlu0 %v348, 120
    %v855 = vpop.permute.xlu0 %854
    %v856 = vsel %vm440, %v851, 0
    %v858 = vsel %vm440, %v853, 0
    %v860 = vsel %vm440, %v855, 0
    %862 = vmatprep.subr.mxu0 0.0
    %863 = vmatpush1.xpose.msra.mxu0 %v858
    %864 = vmatprep.subr.mxu0 0.0
    %865 = vmatpush1.xpose.msra.mxu0 %v860
    %866 = vmatprep.subr.mxu0 0.0
    %867 = vmatpush1.xpose.msra.mxu0 0.0
    %868 = vmatprep.subr.mxu0 0.0
    %869 = vmatpush1.xpose.msra.mxu0 0.0
    %870 = vmatprep.subr.mxu0 0.0
    %871 = vmatpush1.xpose.msra.mxu0 0.0
    %872 = vmatprep.subr.mxu0 0.0
    %873 = vmatpush1.xpose.msra.mxu0 0.0
    %874 = vmatprep.subr.mxu0 0.0
    %875 = vmatpush1.xpose.msra.mxu0 0.0
    %876 = vmatprep.subr.mxu0 0.0
    %877 = vmatpush1.xpose.msra.mxu0 0.0
    %878 = vmatprep.subr.mxu0 0.0
    %879 = vmatpush1.xpose.msra.mxu0 0.0
    %880 = vmatprep.subr.mxu0 0.0
    %881 = vmatpush1.xpose.msra.mxu0 0.0
    %882 = vmatprep.subr.mxu0 0.0
    %883 = vmatpush1.xpose.msra.mxu0 0.0
    %884 = vmatprep.subr.mxu0 0.0
    %885 = vmatpush1.xpose.msra.mxu0 0.0
    %886 = vmatprep.subr.mxu0 0.0
    %887 = vmatpush1.xpose.msra.mxu0 0.0
    %888 = vmatprep.subr.mxu0 0.0
    %889 = vmatpush1.xpose.msra.mxu0 0.0
    %890 = vmatprep.subr.mxu0 0.0
    %891 = vmatpush1.xpose.msra.mxu0 0.0
    %892 = vmatprep.subr.mxu0 0.0
    %893 = vmatpush1.xpose.msra.mxu0 0.0
    %894 = vmatprep.subr.mxu0 0.0
    %895 = vmatpush1.xpose.msra.mxu0 0.0
    %896 = vmatprep.subr.mxu0 0.0
    %897 = vmatpush1.xpose.msra.mxu0 0.0
    %898 = vmatprep.subr.mxu0 0.0
    %899 = vmatpush1.xpose.msra.mxu0 0.0
    %900 = vmatprep.subr.mxu0 0.0
    %901 = vmatpush1.xpose.msra.mxu0 0.0
    %902 = vmatprep.subr.mxu0 0.0
    %903 = vmatpush1.xpose.msra.mxu0 0.0
    %904 = vmatprep.subr.mxu0 0.0
    %905 = vmatpush1.xpose.msra.mxu0 0.0
    %906 = vmatprep.subr.mxu0 0.0
    %907 = vmatpush1.xpose.msra.mxu0 0.0
    %908 = vmatprep.subr.mxu0 0.0
    %909 = vmatpush1.xpose.msra.mxu0 0.0
    %910 = vmatprep.subr.mxu0 0.0
    %911 = vmatpush1.xpose.msra.mxu0 0.0
    %912 = vmatprep.subr.mxu0 0.0
    %913 = vmatpush1.xpose.msra.mxu0 0.0
    %914 = vmatprep.subr.mxu0 0.0
    %915 = vmatpush1.xpose.msra.mxu0 0.0
    %916 = vmatprep.subr.mxu0 0.0
    %917 = vmatpush1.xpose.msra.mxu0 0.0
    %918 = vmatprep.subr.mxu0 0.0
    %919 = vmatpush1.xpose.msra.mxu0 0.0
    %920 = vmatprep.subr.mxu0 0.0
    %921 = vmatpush1.xpose.msra.mxu0 0.0
    %922 = vmatprep.subr.mxu0 0.0
    %923 = vmatpush1.xpose.msra.mxu0 0.0
    %924 = vmatprep.subr.mxu0 0.0
    %925 = vmatpush1.xpose.msra.mxu0 0.0
    %926 = vmatprep.mubr.f32.mxu0 0.0
    %927 = vmatmul.mubr.f32.gmra.mrb[0].mxu0 %v856
    %v928 = vpop.f32.mrb[0].mxu0
    %v929 = vadd.f32 0.0, %v928
    %v930 = vpop.f32.mrb[0].mxu0
    %931 = vdwg.mxu0
    %v932 = vsel %vm599, %v847, -inf
    %933 = vmax.xlane.f32.xlu0 %v932
    %v934 = vpop.xlane.xlu0 %933
    %v935 = vsel %vm599, %v929, -inf
    %936 = vmax.xlane.f32.xlu0 %v935
    %v937 = vpop.xlane.xlu0 %936
    %v938 = vsub.f32 %v847, %v934
    %v939 = vsub.f32 %v929, %v937
    %v940 = vmul.f32 %v938, 1.442695
    %v941 = vpow.pop %v940
    %v942 = vmul.f32 %v939, 1.442695
    %v943 = vpow.pop %v942
    %v944 = vsel %vm599, %v941, 0.0
    %945 = vadd.xlane.f32.xlu0 %v944
    %v946 = vpop.xlane.xlu0 %945
    %v947 = vsel %vm599, %v943, 0.0
    %948 = vadd.xlane.f32.xlu0 %v947
    %v949 = vpop.xlane.xlu0 %948
    %v950 = vrcp.pop %v946
    %v951 = vrcp.pop %v949
    %v952 = vmul.f32 %v941, %v950
    %v953 = vmul.f32 %v943, %v951
    %956 = vrot.lane.b32.xlu0 %v422, 120
    %v957 = vpop.permute.xlu0 %956
    %958 = vrot.lane.b32.xlu0 %v427, 120
    %v959 = vpop.permute.xlu0 %958
    %v963 = vsel %vm599, %v952, 0
    %965 = vmatprep.subr.mxu0 0.0
    %966 = vmatpush1.msra.mxu0 %v957
    %967 = vmatprep.subr.mxu0 0.0
    %968 = vmatpush1.msra.mxu0 %v959
    %969 = vmatprep.subr.mxu0 0.0
    %970 = vmatpush1.msra.mxu0 0.0
    %971 = vmatprep.subr.mxu0 0.0
    %972 = vmatpush1.msra.mxu0 0.0
    %973 = vmatprep.subr.mxu0 0.0
    %974 = vmatpush1.msra.mxu0 0.0
    %975 = vmatprep.subr.mxu0 0.0
    %976 = vmatpush1.msra.mxu0 0.0
    %977 = vmatprep.subr.mxu0 0.0
    %978 = vmatpush1.msra.mxu0 0.0
    %979 = vmatprep.subr.mxu0 0.0
    %980 = vmatpush1.msra.mxu0 0.0
    %981 = vmatprep.subr.mxu0 0.0
    %982 = vmatpush1.msra.mxu0 0.0
    %983 = vmatprep.subr.mxu0 0.0
    %984 = vmatpush1.msra.mxu0 0.0
    %985 = vmatprep.subr.mxu0 0.0
    %986 = vmatpush1.msra.mxu0 0.0
    %987 = vmatprep.subr.mxu0 0.0
    %988 = vmatpush1.msra.mxu0 0.0
    %989 = vmatprep.subr.mxu0 0.0
    %990 = vmatpush1.msra.mxu0 0.0
    %991 = vmatprep.subr.mxu0 0.0
    %992 = vmatpush1.msra.mxu0 0.0
    %993 = vmatprep.subr.mxu0 0.0
    %994 = vmatpush1.msra.mxu0 0.0
    %995 = vmatprep.subr.mxu0 0.0
    %996 = vmatpush1.msra.mxu0 0.0
    %997 = vmatprep.subr.mxu0 0.0
    %998 = vmatpush1.msra.mxu0 0.0
    %999 = vmatprep.subr.mxu0 0.0
    %1000 = vmatpush1.msra.mxu0 0.0
    %1001 = vmatprep.subr.mxu0 0.0
    %1002 = vmatpush1.msra.mxu0 0.0
    %1003 = vmatprep.subr.mxu0 0.0
    %1004 = vmatpush1.msra.mxu0 0.0
    %1005 = vmatprep.subr.mxu0 0.0
    %1006 = vmatpush1.msra.mxu0 0.0
    %1007 = vmatprep.subr.mxu0 0.0
    %1008 = vmatpush1.msra.mxu0 0.0
    %1009 = vmatprep.subr.mxu0 0.0
    %1010 = vmatpush1.msra.mxu0 0.0
    %1011 = vmatprep.subr.mxu0 0.0
    %1012 = vmatpush1.msra.mxu0 0.0
    %1013 = vmatprep.subr.mxu0 0.0
    %1014 = vmatpush1.msra.mxu0 0.0
    %1015 = vmatprep.subr.mxu0 0.0
    %1016 = vmatpush1.msra.mxu0 0.0
    %1017 = vmatprep.subr.mxu0 0.0
    %1018 = vmatpush1.msra.mxu0 0.0
    %1019 = vmatprep.subr.mxu0 0.0
    %1020 = vmatpush1.msra.mxu0 0.0
    %1021 = vmatprep.subr.mxu0 0.0
    %1022 = vmatpush1.msra.mxu0 0.0
    %1023 = vmatprep.subr.mxu0 0.0
    %1024 = vmatpush1.msra.mxu0 0.0
    %1025 = vmatprep.subr.mxu0 0.0
    %1026 = vmatpush1.msra.mxu0 0.0
    %1027 = vmatprep.subr.mxu0 0.0
    %1028 = vmatpush1.msra.mxu0 0.0
    %1029 = vmatprep.mubr.f32.mxu0 0.0
    %1030 = vmatmul.mubr.f32.gmra.mrb[0].mxu0 %v963
    %v1031 = vpop.f32.mrb[0].mxu0
    %v1032 = vadd.f32 0.0, %v1031
    %v1033 = vpop.f32.mrb[0].mxu0
    %1034 = vdwg.mxu0
    %1037 = vrot.lane.b32.xlu0 %v432, 120
    %v1038 = vpop.permute.xlu0 %1037
    %1039 = vrot.lane.b32.xlu0 %v437, 120
    %v1040 = vpop.permute.xlu0 %1039
    %v1044 = vsel %vm599, %v953, 0
    %1046 = vmatprep.subr.mxu0 0.0
    %1047 = vmatpush1.msra.mxu0 %v1038
    %1048 = vmatprep.subr.mxu0 0.0
    %1049 = vmatpush1.msra.mxu0 %v1040
    %1050 = vmatprep.subr.mxu0 0.0
    %1051 = vmatpush1.msra.mxu0 0.0
    %1052 = vmatprep.subr.mxu0 0.0
    %1053 = vmatpush1.msra.mxu0 0.0
    %1054 = vmatprep.subr.mxu0 0.0
    %1055 = vmatpush1.msra.mxu0 0.0
    %1056 = vmatprep.subr.mxu0 0.0
    %1057 = vmatpush1.msra.mxu0 0.0
    %1058 = vmatprep.subr.mxu0 0.0
    %1059 = vmatpush1.msra.mxu0 0.0
    %1060 = vmatprep.subr.mxu0 0.0
    %1061 = vmatpush1.msra.mxu0 0.0
    %1062 = vmatprep.subr.mxu0 0.0
    %1063 = vmatpush1.msra.mxu0 0.0
    %1064 = vmatprep.subr.mxu0 0.0
    %1065 = vmatpush1.msra.mxu0 0.0
    %1066 = vmatprep.subr.mxu0 0.0
    %1067 = vmatpush1.msra.mxu0 0.0
    %1068 = vmatprep.subr.mxu0 0.0
    %1069 = vmatpush1.msra.mxu0 0.0
    %1070 = vmatprep.subr.mxu0 0.0
    %1071 = vmatpush1.msra.mxu0 0.0
    %1072 = vmatprep.subr.mxu0 0.0
    %1073 = vmatpush1.msra.mxu0 0.0
    %1074 = vmatprep.subr.mxu0 0.0
    %1075 = vmatpush1.msra.mxu0 0.0
    %1076 = vmatprep.subr.mxu0 0.0
    %1077 = vmatpush1.msra.mxu0 0.0
    %1078 = vmatprep.subr.mxu0 0.0
    %1079 = vmatpush1.msra.mxu0 0.0
    %1080 = vmatprep.subr.mxu0 0.0
    %1081 = vmatpush1.msra.mxu0 0.0
    %1082 = vmatprep.subr.mxu0 0.0
    %1083 = vmatpush1.msra.mxu0 0.0
    %1084 = vmatprep.subr.mxu0 0.0
    %1085 = vmatpush1.msra.mxu0 0.0
    %1086 = vmatprep.subr.mxu0 0.0
    %1087 = vmatpush1.msra.mxu0 0.0
    %1088 = vmatprep.subr.mxu0 0.0
    %1089 = vmatpush1.msra.mxu0 0.0
    %1090 = vmatprep.subr.mxu0 0.0
    %1091 = vmatpush1.msra.mxu0 0.0
    %1092 = vmatprep.subr.mxu0 0.0
    %1093 = vmatpush1.msra.mxu0 0.0
    %1094 = vmatprep.subr.mxu0 0.0
    %1095 = vmatpush1.msra.mxu0 0.0
    %1096 = vmatprep.subr.mxu0 0.0
    %1097 = vmatpush1.msra.mxu0 0.0
    %1098 = vmatprep.subr.mxu0 0.0
    %1099 = vmatpush1.msra.mxu0 0.0
    %1100 = vmatprep.subr.mxu0 0.0
    %1101 = vmatpush1.msra.mxu0 0.0
    %1102 = vmatprep.subr.mxu0 0.0
    %1103 = vmatpush1.msra.mxu0 0.0
    %1104 = vmatprep.subr.mxu0 0.0
    %1105 = vmatpush1.msra.mxu0 0.0
    %1106 = vmatprep.subr.mxu0 0.0
    %1107 = vmatpush1.msra.mxu0 0.0
    %1108 = vmatprep.subr.mxu0 0.0
    %1109 = vmatpush1.msra.mxu0 0.0
    %1110 = vmatprep.mubr.f32.mxu0 0.0
    %1111 = vmatmul.mubr.f32.gmra.mrb[0].mxu0 %v1044
    %v1112 = vpop.f32.mrb[0].mxu0
    %v1113 = vadd.f32 0.0, %v1112
    %v1114 = vpop.f32.mrb[0].mxu0
    %1115 = vdwg.mxu0
    %1116 = vrot.lane.b32.xlu0 %v242, 112
    %v1117 = vpop.permute.xlu0 %1116
    %1118 = vrot.lane.b32.xlu0 %v333, 112
    %v1119 = vpop.permute.xlu0 %1118
    %1120 = vrot.lane.b32.xlu0 %v338, 112
    %v1121 = vpop.permute.xlu0 %1120
    %v1122 = vsel %vm440, %v1117, 0
    %v1124 = vsel %vm440, %v1119, 0
    %v1126 = vsel %vm440, %v1121, 0
    %1128 = vmatprep.subr.mxu0 0.0
    %1129 = vmatpush1.xpose.msra.mxu0 %v1124
    %1130 = vmatprep.subr.mxu0 0.0
    %1131 = vmatpush1.xpose.msra.mxu0 %v1126
    %1132 = vmatprep.subr.mxu0 0.0
    %1133 = vmatpush1.xpose.msra.mxu0 0.0
    %1134 = vmatprep.subr.mxu0 0.0
    %1135 = vmatpush1.xpose.msra.mxu0 0.0
    %1136 = vmatprep.subr.mxu0 0.0
    %1137 = vmatpush1.xpose.msra.mxu0 0.0
    %1138 = vmatprep.subr.mxu0 0.0
    %1139 = vmatpush1.xpose.msra.mxu0 0.0
    %1140 = vmatprep.subr.mxu0 0.0
    %1141 = vmatpush1.xpose.msra.mxu0 0.0
    %1142 = vmatprep.subr.mxu0 0.0
    %1143 = vmatpush1.xpose.msra.mxu0 0.0
    %1144 = vmatprep.subr.mxu0 0.0
    %1145 = vmatpush1.xpose.msra.mxu0 0.0
    %1146 = vmatprep.subr.mxu0 0.0
    %1147 = vmatpush1.xpose.msra.mxu0 0.0
    %1148 = vmatprep.subr.mxu0 0.0
    %1149 = vmatpush1.xpose.msra.mxu0 0.0
    %1150 = vmatprep.subr.mxu0 0.0
    %1151 = vmatpush1.xpose.msra.mxu0 0.0
    %1152 = vmatprep.subr.mxu0 0.0
    %1153 = vmatpush1.xpose.msra.mxu0 0.0
    %1154 = vmatprep.subr.mxu0 0.0
    %1155 = vmatpush1.xpose.msra.mxu0 0.0
    %1156 = vmatprep.subr.mxu0 0.0
    %1157 = vmatpush1.xpose.msra.mxu0 0.0
    %1158 = vmatprep.subr.mxu0 0.0
    %1159 = vmatpush1.xpose.msra.mxu0 0.0
    %1160 = vmatprep.subr.mxu0 0.0
    %1161 = vmatpush1.xpose.msra.mxu0 0.0
    %1162 = vmatprep.subr.mxu0 0.0
    %1163 = vmatpush1.xpose.msra.mxu0 0.0
    %1164 = vmatprep.subr.mxu0 0.0
    %1165 = vmatpush1.xpose.msra.mxu0 0.0
    %1166 = vmatprep.subr.mxu0 0.0
    %1167 = vmatpush1.xpose.msra.mxu0 0.0
    %1168 = vmatprep.subr.mxu0 0.0
    %1169 = vmatpush1.xpose.msra.mxu0 0.0
    %1170 = vmatprep.subr.mxu0 0.0
    %1171 = vmatpush1.xpose.msra.mxu0 0.0
    %1172 = vmatprep.subr.mxu0 0.0
    %1173 = vmatpush1.xpose.msra.mxu0 0.0
    %1174 = vmatprep.subr.mxu0 0.0
    %1175 = vmatpush1.xpose.msra.mxu0 0.0
    %1176 = vmatprep.subr.mxu0 0.0
    %1177 = vmatpush1.xpose.msra.mxu0 0.0
    %1178 = vmatprep.subr.mxu0 0.0
    %1179 = vmatpush1.xpose.msra.mxu0 0.0
    %1180 = vmatprep.subr.mxu0 0.0
    %1181 = vmatpush1.xpose.msra.mxu0 0.0
    %1182 = vmatprep.subr.mxu0 0.0
    %1183 = vmatpush1.xpose.msra.mxu0 0.0
    %1184 = vmatprep.subr.mxu0 0.0
    %1185 = vmatpush1.xpose.msra.mxu0 0.0
    %1186 = vmatprep.subr.mxu0 0.0
    %1187 = vmatpush1.xpose.msra.mxu0 0.0
    %1188 = vmatprep.subr.mxu0 0.0
    %1189 = vmatpush1.xpose.msra.mxu0 0.0
    %1190 = vmatprep.subr.mxu0 0.0
    %1191 = vmatpush1.xpose.msra.mxu0 0.0
    %1192 = vmatprep.mubr.f32.mxu0 0.0
    %1193 = vmatmul.mubr.f32.gmra.mrb[0].mxu0 %v1122
    %v1194 = vpop.f32.mrb[0].mxu0
    %v1195 = vadd.f32 0.0, %v1194
    %v1196 = vpop.f32.mrb[0].mxu0
    %1197 = vdwg.mxu0
    %1198 = vrot.lane.b32.xlu0 %v247, 112
    %v1199 = vpop.permute.xlu0 %1198
    %1200 = vrot.lane.b32.xlu0 %v343, 112
    %v1201 = vpop.permute.xlu0 %1200
    %1202 = vrot.lane.b32.xlu0 %v348, 112
    %v1203 = vpop.permute.xlu0 %1202
    %v1204 = vsel %vm440, %v1199, 0
    %v1206 = vsel %vm440, %v1201, 0
    %v1208 = vsel %vm440, %v1203, 0
    %1210 = vmatprep.subr.mxu0 0.0
    %1211 = vmatpush1.xpose.msra.mxu0 %v1206
    %1212 = vmatprep.subr.mxu0 0.0
    %1213 = vmatpush1.xpose.msra.mxu0 %v1208
    %1214 = vmatprep.subr.mxu0 0.0
    %1215 = vmatpush1.xpose.msra.mxu0 0.0
    %1216 = vmatprep.subr.mxu0 0.0
    %1217 = vmatpush1.xpose.msra.mxu0 0.0
    %1218 = vmatprep.subr.mxu0 0.0
    %1219 = vmatpush1.xpose.msra.mxu0 0.0
    %1220 = vmatprep.subr.mxu0 0.0
    %1221 = vmatpush1.xpose.msra.mxu0 0.0
    %1222 = vmatprep.subr.mxu0 0.0
    %1223 = vmatpush1.xpose.msra.mxu0 0.0
    %1224 = vmatprep.subr.mxu0 0.0
    %1225 = vmatpush1.xpose.msra.mxu0 0.0
    %1226 = vmatprep.subr.mxu0 0.0
    %1227 = vmatpush1.xpose.msra.mxu0 0.0
    %1228 = vmatprep.subr.mxu0 0.0
    %1229 = vmatpush1.xpose.msra.mxu0 0.0
    %1230 = vmatprep.subr.mxu0 0.0
    %1231 = vmatpush1.xpose.msra.mxu0 0.0
    %1232 = vmatprep.subr.mxu0 0.0
    %1233 = vmatpush1.xpose.msra.mxu0 0.0
    %1234 = vmatprep.subr.mxu0 0.0
    %1235 = vmatpush1.xpose.msra.mxu0 0.0
    %1236 = vmatprep.subr.mxu0 0.0
    %1237 = vmatpush1.xpose.msra.mxu0 0.0
    %1238 = vmatprep.subr.mxu0 0.0
    %1239 = vmatpush1.xpose.msra.mxu0 0.0
    %1240 = vmatprep.subr.mxu0 0.0
    %1241 = vmatpush1.xpose.msra.mxu0 0.0
    %1242 = vmatprep.subr.mxu0 0.0
    %1243 = vmatpush1.xpose.msra.mxu0 0.0
    %1244 = vmatprep.subr.mxu0 0.0
    %1245 = vmatpush1.xpose.msra.mxu0 0.0
    %1246 = vmatprep.subr.mxu0 0.0
    %1247 = vmatpush1.xpose.msra.mxu0 0.0
    %1248 = vmatprep.subr.mxu0 0.0
    %1249 = vmatpush1.xpose.msra.mxu0 0.0
    %1250 = vmatprep.subr.mxu0 0.0
    %1251 = vmatpush1.xpose.msra.mxu0 0.0
    %1252 = vmatprep.subr.mxu0 0.0
    %1253 = vmatpush1.xpose.msra.mxu0 0.0
    %1254 = vmatprep.subr.mxu0 0.0
    %1255 = vmatpush1.xpose.msra.mxu0 0.0
    %1256 = vmatprep.subr.mxu0 0.0
    %1257 = vmatpush1.xpose.msra.mxu0 0.0
    %1258 = vmatprep.subr.mxu0 0.0
    %1259 = vmatpush1.xpose.msra.mxu0 0.0
    %1260 = vmatprep.subr.mxu0 0.0
    %1261 = vmatpush1.xpose.msra.mxu0 0.0
    %1262 = vmatprep.subr.mxu0 0.0
    %1263 = vmatpush1.xpose.msra.mxu0 0.0
    %1264 = vmatprep.subr.mxu0 0.0
    %1265 = vmatpush1.xpose.msra.mxu0 0.0
    %1266 = vmatprep.subr.mxu0 0.0
    %1267 = vmatpush1.xpose.msra.mxu0 0.0
    %1268 = vmatprep.subr.mxu0 0.0
    %1269 = vmatpush1.xpose.msra.mxu0 0.0
    %1270 = vmatprep.subr.mxu0 0.0
    %1271 = vmatpush1.xpose.msra.mxu0 0.0
    %1272 = vmatprep.subr.mxu0 0.0
    %1273 = vmatpush1.xpose.msra.mxu0 0.0
    %1274 = vmatprep.mubr.f32.mxu0 0.0
    %1275 = vmatmul.mubr.f32.gmra.mrb[0].mxu0 %v1204
    %v1276 = vpop.f32.mrb[0].mxu0
    %v1277 = vadd.f32 0.0, %v1276
    %v1278 = vpop.f32.mrb[0].mxu0
    %1279 = vdwg.mxu0
    %v1280 = vsel %vm599, %v1195, -inf
    %1281 = vmax.xlane.f32.xlu0 %v1280
    %v1282 = vpop.xlane.xlu0 %1281
    %v1283 = vsel %vm599, %v1277, -inf
    %1284 = vmax.xlane.f32.xlu0 %v1283
    %v1285 = vpop.xlane.xlu0 %1284
    %v1286 = vsub.f32 %v1195, %v1282
    %v1287 = vsub.f32 %v1277, %v1285
    %v1288 = vmul.f32 %v1286, 1.442695
    %v1289 = vpow.pop %v1288
    %v1290 = vmul.f32 %v1287, 1.442695
    %v1291 = vpow.pop %v1290
    %v1292 = vsel %vm599, %v1289, 0.0
    %1293 = vadd.xlane.f32.xlu0 %v1292
    %v1294 = vpop.xlane.xlu0 %1293
    %v1295 = vsel %vm599, %v1291, 0.0
    %1296 = vadd.xlane.f32.xlu0 %v1295
    %v1297 = vpop.xlane.xlu0 %1296
    %v1298 = vrcp.pop %v1294
    %v1299 = vrcp.pop %v1297
    %v1300 = vmul.f32 %v1289, %v1298
    %v1301 = vmul.f32 %v1291, %v1299
    %1302 = vrot.lane.b32.xlu0 %v422, 112
    %v1303 = vpop.permute.xlu0 %1302
    %1304 = vrot.lane.b32.xlu0 %v427, 112
    %v1305 = vpop.permute.xlu0 %1304
    %v1309 = vsel %vm599, %v1300, 0
    %1311 = vmatprep.subr.mxu0 0.0
    %1312 = vmatpush1.msra.mxu0 %v1303
    %1313 = vmatprep.subr.mxu0 0.0
    %1314 = vmatpush1.msra.mxu0 %v1305
    %1315 = vmatprep.subr.mxu0 0.0
    %1316 = vmatpush1.msra.mxu0 0.0
    %1317 = vmatprep.subr.mxu0 0.0
    %1318 = vmatpush1.msra.mxu0 0.0
    %1319 = vmatprep.subr.mxu0 0.0
    %1320 = vmatpush1.msra.mxu0 0.0
    %1321 = vmatprep.subr.mxu0 0.0
    %1322 = vmatpush1.msra.mxu0 0.0
    %1323 = vmatprep.subr.mxu0 0.0
    %1324 = vmatpush1.msra.mxu0 0.0
    %1325 = vmatprep.subr.mxu0 0.0
    %1326 = vmatpush1.msra.mxu0 0.0
    %1327 = vmatprep.subr.mxu0 0.0
    %1328 = vmatpush1.msra.mxu0 0.0
    %1329 = vmatprep.subr.mxu0 0.0
    %1330 = vmatpush1.msra.mxu0 0.0
    %1331 = vmatprep.subr.mxu0 0.0
    %1332 = vmatpush1.msra.mxu0 0.0
    %1333 = vmatprep.subr.mxu0 0.0
    %1334 = vmatpush1.msra.mxu0 0.0
    %1335 = vmatprep.subr.mxu0 0.0
    %1336 = vmatpush1.msra.mxu0 0.0
    %1337 = vmatprep.subr.mxu0 0.0
    %1338 = vmatpush1.msra.mxu0 0.0
    %1339 = vmatprep.subr.mxu0 0.0
    %1340 = vmatpush1.msra.mxu0 0.0
    %1341 = vmatprep.subr.mxu0 0.0
    %1342 = vmatpush1.msra.mxu0 0.0
    %1343 = vmatprep.subr.mxu0 0.0
    %1344 = vmatpush1.msra.mxu0 0.0
    %1345 = vmatprep.subr.mxu0 0.0
    %1346 = vmatpush1.msra.mxu0 0.0
    %1347 = vmatprep.subr.mxu0 0.0
    %1348 = vmatpush1.msra.mxu0 0.0
    %1349 = vmatprep.subr.mxu0 0.0
    %1350 = vmatpush1.msra.mxu0 0.0
    %1351 = vmatprep.subr.mxu0 0.0
    %1352 = vmatpush1.msra.mxu0 0.0
    %1353 = vmatprep.subr.mxu0 0.0
    %1354 = vmatpush1.msra.mxu0 0.0
    %1355 = vmatprep.subr.mxu0 0.0
    %1356 = vmatpush1.msra.mxu0 0.0
    %1357 = vmatprep.subr.mxu0 0.0
    %1358 = vmatpush1.msra.mxu0 0.0
    %1359 = vmatprep.subr.mxu0 0.0
    %1360 = vmatpush1.msra.mxu0 0.0
    %1361 = vmatprep.subr.mxu0 0.0
    %1362 = vmatpush1.msra.mxu0 0.0
    %1363 = vmatprep.subr.mxu0 0.0
    %1364 = vmatpush1.msra.mxu0 0.0
    %1365 = vmatprep.subr.mxu0 0.0
    %1366 = vmatpush1.msra.mxu0 0.0
    %1367 = vmatprep.subr.mxu0 0.0
    %1368 = vmatpush1.msra.mxu0 0.0
    %1369 = vmatprep.subr.mxu0 0.0
    %1370 = vmatpush1.msra.mxu0 0.0
    %1371 = vmatprep.subr.mxu0 0.0
    %1372 = vmatpush1.msra.mxu0 0.0
    %1373 = vmatprep.subr.mxu0 0.0
    %1374 = vmatpush1.msra.mxu0 0.0
    %1375 = vmatprep.mubr.f32.mxu0 0.0
    %1376 = vmatmul.mubr.f32.gmra.mrb[0].mxu0 %v1309
    %v1377 = vpop.f32.mrb[0].mxu0
    %v1378 = vadd.f32 0.0, %v1377
    %v1379 = vpop.f32.mrb[0].mxu0
    %1380 = vdwg.mxu0
    %1381 = vrot.lane.b32.xlu0 %v432, 112
    %v1382 = vpop.permute.xlu0 %1381
    %1383 = vrot.lane.b32.xlu0 %v437, 112
    %v1384 = vpop.permute.xlu0 %1383
    %v1388 = vsel %vm599, %v1301, 0
    %1390 = vmatprep.subr.mxu0 0.0
    %1391 = vmatpush1.msra.mxu0 %v1382
    %1392 = vmatprep.subr.mxu0 0.0
    %1393 = vmatpush1.msra.mxu0 %v1384
    %1394 = vmatprep.subr.mxu0 0.0
    %1395 = vmatpush1.msra.mxu0 0.0
    %1396 = vmatprep.subr.mxu0 0.0
    %1397 = vmatpush1.msra.mxu0 0.0
    %1398 = vmatprep.subr.mxu0 0.0
    %1399 = vmatpush1.msra.mxu0 0.0
    %1400 = vmatprep.subr.mxu0 0.0
    %1401 = vmatpush1.msra.mxu0 0.0
    %1402 = vmatprep.subr.mxu0 0.0
    %1403 = vmatpush1.msra.mxu0 0.0
    %1404 = vmatprep.subr.mxu0 0.0
    %1405 = vmatpush1.msra.mxu0 0.0
    %1406 = vmatprep.subr.mxu0 0.0
    %1407 = vmatpush1.msra.mxu0 0.0
    %1408 = vmatprep.subr.mxu0 0.0
    %1409 = vmatpush1.msra.mxu0 0.0
    %1410 = vmatprep.subr.mxu0 0.0
    %1411 = vmatpush1.msra.mxu0 0.0
    %1412 = vmatprep.subr.mxu0 0.0
    %1413 = vmatpush1.msra.mxu0 0.0
    %1414 = vmatprep.subr.mxu0 0.0
    %1415 = vmatpush1.msra.mxu0 0.0
    %1416 = vmatprep.subr.mxu0 0.0
    %1417 = vmatpush1.msra.mxu0 0.0
    %1418 = vmatprep.subr.mxu0 0.0
    %1419 = vmatpush1.msra.mxu0 0.0
    %1420 = vmatprep.subr.mxu0 0.0
    %1421 = vmatpush1.msra.mxu0 0.0
    %1422 = vmatprep.subr.mxu0 0.0
    %1423 = vmatpush1.msra.mxu0 0.0
    %1424 = vmatprep.subr.mxu0 0.0
    %1425 = vmatpush1.msra.mxu0 0.0
    %1426 = vmatprep.subr.mxu0 0.0
    %1427 = vmatpush1.msra.mxu0 0.0
    %1428 = vmatprep.subr.mxu0 0.0
    %1429 = vmatpush1.msra.mxu0 0.0
    %1430 = vmatprep.subr.mxu0 0.0
    %1431 = vmatpush1.msra.mxu0 0.0
    %1432 = vmatprep.subr.mxu0 0.0
    %1433 = vmatpush1.msra.mxu0 0.0
    %1434 = vmatprep.subr.mxu0 0.0
    %1435 = vmatpush1.msra.mxu0 0.0
    %1436 = vmatprep.subr.mxu0 0.0
    %1437 = vmatpush1.msra.mxu0 0.0
    %1438 = vmatprep.subr.mxu0 0.0
    %1439 = vmatpush1.msra.mxu0 0.0
    %1440 = vmatprep.subr.mxu0 0.0
    %1441 = vmatpush1.msra.mxu0 0.0
    %1442 = vmatprep.subr.mxu0 0.0
    %1443 = vmatpush1.msra.mxu0 0.0
    %1444 = vmatprep.subr.mxu0 0.0
    %1445 = vmatpush1.msra.mxu0 0.0
    %1446 = vmatprep.subr.mxu0 0.0
    %1447 = vmatpush1.msra.mxu0 0.0
    %1448 = vmatprep.subr.mxu0 0.0
    %1449 = vmatpush1.msra.mxu0 0.0
    %1450 = vmatprep.subr.mxu0 0.0
    %1451 = vmatpush1.msra.mxu0 0.0
    %1452 = vmatprep.subr.mxu0 0.0
    %1453 = vmatpush1.msra.mxu0 0.0
    %1454 = vmatprep.mubr.f32.mxu0 0.0
    %1455 = vmatmul.mubr.f32.gmra.mrb[0].mxu0 %v1388
    %v1456 = vpop.f32.mrb[0].mxu0
    %v1457 = vadd.f32 0.0, %v1456
    %v1458 = vpop.f32.mrb[0].mxu0
    %1459 = vdwg.mxu0
    %1460 = vrot.lane.b32.xlu0 %v242, 104
    %v1461 = vpop.permute.xlu0 %1460
    %1462 = vrot.lane.b32.xlu0 %v333, 104
    %v1463 = vpop.permute.xlu0 %1462
    %1464 = vrot.lane.b32.xlu0 %v338, 104
    %v1465 = vpop.permute.xlu0 %1464
    %v1466 = vsel %vm440, %v1461, 0
    %v1468 = vsel %vm440, %v1463, 0
    %v1470 = vsel %vm440, %v1465, 0
    %1472 = vmatprep.subr.mxu0 0.0
    %1473 = vmatpush1.xpose.msra.mxu0 %v1468
    %1474 = vmatprep.subr.mxu0 0.0
    %1475 = vmatpush1.xpose.msra.mxu0 %v1470
    %1476 = vmatprep.subr.mxu0 0.0
    %1477 = vmatpush1.xpose.msra.mxu0 0.0
    %1478 = vmatprep.subr.mxu0 0.0
    %1479 = vmatpush1.xpose.msra.mxu0 0.0
    %1480 = vmatprep.subr.mxu0 0.0
    %1481 = vmatpush1.xpose.msra.mxu0 0.0
    %1482 = vmatprep.subr.mxu0 0.0
    %1483 = vmatpush1.xpose.msra.mxu0 0.0
    %1484 = vmatprep.subr.mxu0 0.0
    %1485 = vmatpush1.xpose.msra.mxu0 0.0
    %1486 = vmatprep.subr.mxu0 0.0
    %1487 = vmatpush1.xpose.msra.mxu0 0.0
    %1488 = vmatprep.subr.mxu0 0.0
    %1489 = vmatpush1.xpose.msra.mxu0 0.0
    %1490 = vmatprep.subr.mxu0 0.0
    %1491 = vmatpush1.xpose.msra.mxu0 0.0
    %1492 = vmatprep.subr.mxu0 0.0
    %1493 = vmatpush1.xpose.msra.mxu0 0.0
    %1494 = vmatprep.subr.mxu0 0.0
    %1495 = vmatpush1.xpose.msra.mxu0 0.0
    %1496 = vmatprep.subr.mxu0 0.0
    %1497 = vmatpush1.xpose.msra.mxu0 0.0
    %1498 = vmatprep.subr.mxu0 0.0
    %1499 = vmatpush1.xpose.msra.mxu0 0.0
    %1500 = vmatprep.subr.mxu0 0.0
    %1501 = vmatpush1.xpose.msra.mxu0 0.0
    %1502 = vmatprep.subr.mxu0 0.0
    %1503 = vmatpush1.xpose.msra.mxu0 0.0
    %1504 = vmatprep.subr.mxu0 0.0
    %1505 = vmatpush1.xpose.msra.mxu0 0.0
    %1506 = vmatprep.subr.mxu0 0.0
    %1507 = vmatpush1.xpose.msra.mxu0 0.0
    %1508 = vmatprep.subr.mxu0 0.0
    %1509 = vmatpush1.xpose.msra.mxu0 0.0
    %1510 = vmatprep.subr.mxu0 0.0
    %1511 = vmatpush1.xpose.msra.mxu0 0.0
    %1512 = vmatprep.subr.mxu0 0.0
    %1513 = vmatpush1.xpose.msra.mxu0 0.0
    %1514 = vmatprep.subr.mxu0 0.0
    %1515 = vmatpush1.xpose.msra.mxu0 0.0
    %1516 = vmatprep.subr.mxu0 0.0
    %1517 = vmatpush1.xpose.msra.mxu0 0.0
    %1518 = vmatprep.subr.mxu0 0.0
    %1519 = vmatpush1.xpose.msra.mxu0 0.0
    %1520 = vmatprep.subr.mxu0 0.0
    %1521 = vmatpush1.xpose.msra.mxu0 0.0
    %1522 = vmatprep.subr.mxu0 0.0
    %1523 = vmatpush1.xpose.msra.mxu0 0.0
    %1524 = vmatprep.subr.mxu0 0.0
    %1525 = vmatpush1.xpose.msra.mxu0 0.0
    %1526 = vmatprep.subr.mxu0 0.0
    %1527 = vmatpush1.xpose.msra.mxu0 0.0
    %1528 = vmatprep.subr.mxu0 0.0
    %1529 = vmatpush1.xpose.msra.mxu0 0.0
    %1530 = vmatprep.subr.mxu0 0.0
    %1531 = vmatpush1.xpose.msra.mxu0 0.0
    %1532 = vmatprep.subr.mxu0 0.0
    %1533 = vmatpush1.xpose.msra.mxu0 0.0
    %1534 = vmatprep.subr.mxu0 0.0
    %1535 = vmatpush1.xpose.msra.mxu0 0.0
    %1536 = vmatprep.mubr.f32.mxu0 0.0
    %1537 = vmatmul.mubr.f32.gmra.mrb[0].mxu0 %v1466
    %v1538 = vpop.f32.mrb[0].mxu0
    %v1539 = vadd.f32 0.0, %v1538
    %v1540 = vpop.f32.mrb[0].mxu0
    %1541 = vdwg.mxu0
    %1542 = vrot.lane.b32.xlu0 %v247, 104
    %v1543 = vpop.permute.xlu0 %1542
    %1544 = vrot.lane.b32.xlu0 %v343, 104
    %v1545 = vpop.permute.xlu0 %1544
    %1546 = vrot.lane.b32.xlu0 %v348, 104
    %v1547 = vpop.permute.xlu0 %1546
    %v1548 = vsel %vm440, %v1543, 0
    %v1550 = vsel %vm440, %v1545, 0
    %v1552 = vsel %vm440, %v1547, 0
    %1554 = vmatprep.subr.mxu0 0.0
    %1555 = vmatpush1.xpose.msra.mxu0 %v1550
    %1556 = vmatprep.subr.mxu0 0.0
    %1557 = vmatpush1.xpose.msra.mxu0 %v1552
    %1558 = vmatprep.subr.mxu0 0.0
    %1559 = vmatpush1.xpose.msra.mxu0 0.0
    %1560 = vmatprep.subr.mxu0 0.0
    %1561 = vmatpush1.xpose.msra.mxu0 0.0
    %1562 = vmatprep.subr.mxu0 0.0
    %1563 = vmatpush1.xpose.msra.mxu0 0.0
    %1564 = vmatprep.subr.mxu0 0.0
    %1565 = vmatpush1.xpose.msra.mxu0 0.0
    %1566 = vmatprep.subr.mxu0 0.0
    %1567 = vmatpush1.xpose.msra.mxu0 0.0
    %1568 = vmatprep.subr.mxu0 0.0
    %1569 = vmatpush1.xpose.msra.mxu0 0.0
    %1570 = vmatprep.subr.mxu0 0.0
    %1571 = vmatpush1.xpose.msra.mxu0 0.0
    %1572 = vmatprep.subr.mxu0 0.0
    %1573 = vmatpush1.xpose.msra.mxu0 0.0
    %1574 = vmatprep.subr.mxu0 0.0
    %1575 = vmatpush1.xpose.msra.mxu0 0.0
    %1576 = vmatprep.subr.mxu0 0.0
    %1577 = vmatpush1.xpose.msra.mxu0 0.0
    %1578 = vmatprep.subr.mxu0 0.0
    %1579 = vmatpush1.xpose.msra.mxu0 0.0
    %1580 = vmatprep.subr.mxu0 0.0
    %1581 = vmatpush1.xpose.msra.mxu0 0.0
    %1582 = vmatprep.subr.mxu0 0.0
    %1583 = vmatpush1.xpose.msra.mxu0 0.0
    %1584 = vmatprep.subr.mxu0 0.0
    %1585 = vmatpush1.xpose.msra.mxu0 0.0
    %1586 = vmatprep.subr.mxu0 0.0
    %1587 = vmatpush1.xpose.msra.mxu0 0.0
    %1588 = vmatprep.subr.mxu0 0.0
    %1589 = vmatpush1.xpose.msra.mxu0 0.0
    %1590 = vmatprep.subr.mxu0 0.0
    %1591 = vmatpush1.xpose.msra.mxu0 0.0
    %1592 = vmatprep.subr.mxu0 0.0
    %1593 = vmatpush1.xpose.msra.mxu0 0.0
    %1594 = vmatprep.subr.mxu0 0.0
    %1595 = vmatpush1.xpose.msra.mxu0 0.0
    %1596 = vmatprep.subr.mxu0 0.0
    %1597 = vmatpush1.xpose.msra.mxu0 0.0
    %1598 = vmatprep.subr.mxu0 0.0
    %1599 = vmatpush1.xpose.msra.mxu0 0.0
    %1600 = vmatprep.subr.mxu0 0.0
    %1601 = vmatpush1.xpose.msra.mxu0 0.0
    %1602 = vmatprep.subr.mxu0 0.0
    %1603 = vmatpush1.xpose.msra.mxu0 0.0
    %1604 = vmatprep.subr.mxu0 0.0
    %1605 = vmatpush1.xpose.msra.mxu0 0.0
    %1606 = vmatprep.subr.mxu0 0.0
    %1607 = vmatpush1.xpose.msra.mxu0 0.0
    %1608 = vmatprep.subr.mxu0 0.0
    %1609 = vmatpush1.xpose.msra.mxu0 0.0
    %1610 = vmatprep.subr.mxu0 0.0
    %1611 = vmatpush1.xpose.msra.mxu0 0.0
    %1612 = vmatprep.subr.mxu0 0.0
    %1613 = vmatpush1.xpose.msra.mxu0 0.0
    %1614 = vmatprep.subr.mxu0 0.0
    %1615 = vmatpush1.xpose.msra.mxu0 0.0
    %1616 = vmatprep.subr.mxu0 0.0
    %1617 = vmatpush1.xpose.msra.mxu0 0.0
    %1618 = vmatprep.mubr.f32.mxu0 0.0
    %1619 = vmatmul.mubr.f32.gmra.mrb[0].mxu0 %v1548
    %v1620 = vpop.f32.mrb[0].mxu0
    %v1621 = vadd.f32 0.0, %v1620
    %v1622 = vpop.f32.mrb[0].mxu0
    %1623 = vdwg.mxu0
    %v1624 = vsel %vm599, %v1539, -inf
    %1625 = vmax.xlane.f32.xlu0 %v1624
    %v1626 = vpop.xlane.xlu0 %1625
    %v1627 = vsel %vm599, %v1621, -inf
    %1628 = vmax.xlane.f32.xlu0 %v1627
    %v1629 = vpop.xlane.xlu0 %1628
    %v1630 = vsub.f32 %v1539, %v1626
    %v1631 = vsub.f32 %v1621, %v1629
    %v1632 = vmul.f32 %v1630, 1.442695
    %v1633 = vpow.pop %v1632
    %v1634 = vmul.f32 %v1631, 1.442695
    %v1635 = vpow.pop %v1634
    %v1636 = vsel %vm599, %v1633, 0.0
    %1637 = vadd.xlane.f32.xlu0 %v1636
    %v1638 = vpop.xlane.xlu0 %1637
    %v1639 = vsel %vm599, %v1635, 0.0
    %1640 = vadd.xlane.f32.xlu0 %v1639
    %v1641 = vpop.xlane.xlu0 %1640
    %v1642 = vrcp.pop %v1638
    %v1643 = vrcp.pop %v1641
    %v1644 = vmul.f32 %v1633, %v1642
    %v1645 = vmul.f32 %v1635, %v1643
    %1646 = vrot.lane.b32.xlu0 %v422, 104
    %v1647 = vpop.permute.xlu0 %1646
    %1648 = vrot.lane.b32.xlu0 %v427, 104
    %v1649 = vpop.permute.xlu0 %1648
    %v1653 = vsel %vm599, %v1644, 0
    %1655 = vmatprep.subr.mxu0 0.0
    %1656 = vmatpush1.msra.mxu0 %v1647
    %1657 = vmatprep.subr.mxu0 0.0
    %1658 = vmatpush1.msra.mxu0 %v1649
    %1659 = vmatprep.subr.mxu0 0.0
    %1660 = vmatpush1.msra.mxu0 0.0
    %1661 = vmatprep.subr.mxu0 0.0
    %1662 = vmatpush1.msra.mxu0 0.0
    %1663 = vmatprep.subr.mxu0 0.0
    %1664 = vmatpush1.msra.mxu0 0.0
    %1665 = vmatprep.subr.mxu0 0.0
    %1666 = vmatpush1.msra.mxu0 0.0
    %1667 = vmatprep.subr.mxu0 0.0
    %1668 = vmatpush1.msra.mxu0 0.0
    %1669 = vmatprep.subr.mxu0 0.0
    %1670 = vmatpush1.msra.mxu0 0.0
    %1671 = vmatprep.subr.mxu0 0.0
    %1672 = vmatpush1.msra.mxu0 0.0
    %1673 = vmatprep.subr.mxu0 0.0
    %1674 = vmatpush1.msra.mxu0 0.0
    %1675 = vmatprep.subr.mxu0 0.0
    %1676 = vmatpush1.msra.mxu0 0.0
    %1677 = vmatprep.subr.mxu0 0.0
    %1678 = vmatpush1.msra.mxu0 0.0
    %1679 = vmatprep.subr.mxu0 0.0
    %1680 = vmatpush1.msra.mxu0 0.0
    %1681 = vmatprep.subr.mxu0 0.0
    %1682 = vmatpush1.msra.mxu0 0.0
    %1683 = vmatprep.subr.mxu0 0.0
    %1684 = vmatpush1.msra.mxu0 0.0
    %1685 = vmatprep.subr.mxu0 0.0
    %1686 = vmatpush1.msra.mxu0 0.0
    %1687 = vmatprep.subr.mxu0 0.0
    %1688 = vmatpush1.msra.mxu0 0.0
    %1689 = vmatprep.subr.mxu0 0.0
    %1690 = vmatpush1.msra.mxu0 0.0
    %1691 = vmatprep.subr.mxu0 0.0
    %1692 = vmatpush1.msra.mxu0 0.0
    %1693 = vmatprep.subr.mxu0 0.0
    %1694 = vmatpush1.msra.mxu0 0.0
    %1695 = vmatprep.subr.mxu0 0.0
    %1696 = vmatpush1.msra.mxu0 0.0
    %1697 = vmatprep.subr.mxu0 0.0
    %1698 = vmatpush1.msra.mxu0 0.0
    %1699 = vmatprep.subr.mxu0 0.0
    %1700 = vmatpush1.msra.mxu0 0.0
    %1701 = vmatprep.subr.mxu0 0.0
    %1702 = vmatpush1.msra.mxu0 0.0
    %1703 = vmatprep.subr.mxu0 0.0
    %1704 = vmatpush1.msra.mxu0 0.0
    %1705 = vmatprep.subr.mxu0 0.0
    %1706 = vmatpush1.msra.mxu0 0.0
    %1707 = vmatprep.subr.mxu0 0.0
    %1708 = vmatpush1.msra.mxu0 0.0
    %1709 = vmatprep.subr.mxu0 0.0
    %1710 = vmatpush1.msra.mxu0 0.0
    %1711 = vmatprep.subr.mxu0 0.0
    %1712 = vmatpush1.msra.mxu0 0.0
    %1713 = vmatprep.subr.mxu0 0.0
    %1714 = vmatpush1.msra.mxu0 0.0
    %1715 = vmatprep.subr.mxu0 0.0
    %1716 = vmatpush1.msra.mxu0 0.0
    %1717 = vmatprep.subr.mxu0 0.0
    %1718 = vmatpush1.msra.mxu0 0.0
    %1719 = vmatprep.mubr.f32.mxu0 0.0
    %1720 = vmatmul.mubr.f32.gmra.mrb[0].mxu0 %v1653
    %v1721 = vpop.f32.mrb[0].mxu0
    %v1722 = vadd.f32 0.0, %v1721
    %v1723 = vpop.f32.mrb[0].mxu0
    %1724 = vdwg.mxu0
    %1725 = vrot.lane.b32.xlu0 %v432, 104
    %v1726 = vpop.permute.xlu0 %1725
    %1727 = vrot.lane.b32.xlu0 %v437, 104
    %v1728 = vpop.permute.xlu0 %1727
    %v1732 = vsel %vm599, %v1645, 0
    %1734 = vmatprep.subr.mxu0 0.0
    %1735 = vmatpush1.msra.mxu0 %v1726
    %1736 = vmatprep.subr.mxu0 0.0
    %1737 = vmatpush1.msra.mxu0 %v1728
    %1738 = vmatprep.subr.mxu0 0.0
    %1739 = vmatpush1.msra.mxu0 0.0
    %1740 = vmatprep.subr.mxu0 0.0
    %1741 = vmatpush1.msra.mxu0 0.0
    %1742 = vmatprep.subr.mxu0 0.0
    %1743 = vmatpush1.msra.mxu0 0.0
    %1744 = vmatprep.subr.mxu0 0.0
    %1745 = vmatpush1.msra.mxu0 0.0
    %1746 = vmatprep.subr.mxu0 0.0
    %1747 = vmatpush1.msra.mxu0 0.0
    %1748 = vmatprep.subr.mxu0 0.0
    %1749 = vmatpush1.msra.mxu0 0.0
    %1750 = vmatprep.subr.mxu0 0.0
    %1751 = vmatpush1.msra.mxu0 0.0
    %1752 = vmatprep.subr.mxu0 0.0
    %1753 = vmatpush1.msra.mxu0 0.0
    %1754 = vmatprep.subr.mxu0 0.0
    %1755 = vmatpush1.msra.mxu0 0.0
    %1756 = vmatprep.subr.mxu0 0.0
    %1757 = vmatpush1.msra.mxu0 0.0
    %1758 = vmatprep.subr.mxu0 0.0
    %1759 = vmatpush1.msra.mxu0 0.0
    %1760 = vmatprep.subr.mxu0 0.0
    %1761 = vmatpush1.msra.mxu0 0.0
    %1762 = vmatprep.subr.mxu0 0.0
    %1763 = vmatpush1.msra.mxu0 0.0
    %1764 = vmatprep.subr.mxu0 0.0
    %1765 = vmatpush1.msra.mxu0 0.0
    %1766 = vmatprep.subr.mxu0 0.0
    %1767 = vmatpush1.msra.mxu0 0.0
    %1768 = vmatprep.subr.mxu0 0.0
    %1769 = vmatpush1.msra.mxu0 0.0
    %1770 = vmatprep.subr.mxu0 0.0
    %1771 = vmatpush1.msra.mxu0 0.0
    %1772 = vmatprep.subr.mxu0 0.0
    %1773 = vmatpush1.msra.mxu0 0.0
    %1774 = vmatprep.subr.mxu0 0.0
    %1775 = vmatpush1.msra.mxu0 0.0
    %1776 = vmatprep.subr.mxu0 0.0
    %1777 = vmatpush1.msra.mxu0 0.0
    %1778 = vmatprep.subr.mxu0 0.0
    %1779 = vmatpush1.msra.mxu0 0.0
    %1780 = vmatprep.subr.mxu0 0.0
    %1781 = vmatpush1.msra.mxu0 0.0
    %1782 = vmatprep.subr.mxu0 0.0
    %1783 = vmatpush1.msra.mxu0 0.0
    %1784 = vmatprep.subr.mxu0 0.0
    %1785 = vmatpush1.msra.mxu0 0.0
    %1786 = vmatprep.subr.mxu0 0.0
    %1787 = vmatpush1.msra.mxu0 0.0
    %1788 = vmatprep.subr.mxu0 0.0
    %1789 = vmatpush1.msra.mxu0 0.0
    %1790 = vmatprep.subr.mxu0 0.0
    %1791 = vmatpush1.msra.mxu0 0.0
    %1792 = vmatprep.subr.mxu0 0.0
    %1793 = vmatpush1.msra.mxu0 0.0
    %1794 = vmatprep.subr.mxu0 0.0
    %1795 = vmatpush1.msra.mxu0 0.0
    %1796 = vmatprep.subr.mxu0 0.0
    %1797 = vmatpush1.msra.mxu0 0.0
    %1798 = vmatprep.mubr.f32.mxu0 0.0
    %1799 = vmatmul.mubr.f32.gmra.mrb[0].mxu0 %v1732
    %v1800 = vpop.f32.mrb[0].mxu0
    %v1801 = vadd.f32 0.0, %v1800
    %v1802 = vpop.f32.mrb[0].mxu0
    %1803 = vdwg.mxu0
    %1806 = vrot.lane.b32.xlu0 %v1032, 8
    %v1807 = vpop.permute.xlu0 %1806
    %1808 = vrot.lane.b32.xlu0 %v1113, 8
    %v1809 = vpop.permute.xlu0 %1808
    %1814 = vrot.lane.b32.xlu0 %v1378, 16
    %v1815 = vpop.permute.xlu0 %1814
    %1816 = vrot.lane.b32.xlu0 %v1457, 16
    %v1817 = vpop.permute.xlu0 %1816
    %1822 = vrot.lane.b32.xlu0 %v1722, 24
    %v1823 = vpop.permute.xlu0 %1822
    %1824 = vrot.lane.b32.xlu0 %v1801, 24
    %v1825 = vpop.permute.xlu0 %1824
    %v1828 = vsel %vm440, %v692, %v1807
    %v1829 = vsel %vm440, %v765, %v1809
    %v1830 = vsel %vm599, %v1828, %v1815
    %v1831 = vsel %vm599, %v1829, %v1817
    %vm1832 = vcmask 195584
    %v1833 = vsel %vm1832, %v1830, %v1823
    %v1834 = vsel %vm1832, %v1831, %v1825
    %v1835 = vld [vmem:[#allocation11] sm:$0xff]
    %v1836 = vld [vmem:[#allocation11 + $0x8] sm:$0xff]
    %v1837 = vld [vmem:[#allocation11 + $0x10] sm:$0xff]
    %v1838 = vld [vmem:[#allocation11 + $0x18] sm:$0xff]
    %v1839 = vld [vmem:[%s6] sm:$0x1]
    %v1841 = vlaneseq
    %v1842 = vshrl.u32 %v1841, 7
    %v1843 = vsub.s32 0, %v1842
    %v1844 = vrot.slane %v1839, %v1843
    %v1847 = vsel %vm168, %v1833, 0
    %v1850 = vsel %vm168, %v1834, 0
    %1852 = vmatprep.subr.mxu0 0.0
    %1853 = vmatpush1.msra.mxu0 %v1835
    %1854 = vmatprep.subr.mxu0 0.0
    %1855 = vmatpush1.msra.mxu0 %v1836
    %1856 = vmatprep.subr.mxu0 0.0
    %1857 = vmatpush1.msra.mxu0 %v1837
    %1858 = vmatprep.subr.mxu0 0.0
    %1859 = vmatpush1.msra.mxu0 %v1838
    %1860 = vmatprep.subr.mxu0 0.0
    %1861 = vmatpush1.msra.mxu0 0.0
    %1862 = vmatprep.subr.mxu0 0.0
    %1863 = vmatpush1.msra.mxu0 0.0
    %1864 = vmatprep.subr.mxu0 0.0
    %1865 = vmatpush1.msra.mxu0 0.0
    %1866 = vmatprep.subr.mxu0 0.0
    %1867 = vmatpush1.msra.mxu0 0.0
    %1868 = vmatprep.subr.mxu0 0.0
    %1869 = vmatpush1.msra.mxu0 0.0
    %1870 = vmatprep.subr.mxu0 0.0
    %1871 = vmatpush1.msra.mxu0 0.0
    %1872 = vmatprep.subr.mxu0 0.0
    %1873 = vmatpush1.msra.mxu0 0.0
    %1874 = vmatprep.subr.mxu0 0.0
    %1875 = vmatpush1.msra.mxu0 0.0
    %1876 = vmatprep.subr.mxu0 0.0
    %1877 = vmatpush1.msra.mxu0 0.0
    %1878 = vmatprep.subr.mxu0 0.0
    %1879 = vmatpush1.msra.mxu0 0.0
    %1880 = vmatprep.subr.mxu0 0.0
    %1881 = vmatpush1.msra.mxu0 0.0
    %1882 = vmatprep.subr.mxu0 0.0
    %1883 = vmatpush1.msra.mxu0 0.0
    %1884 = vmatprep.subr.mxu0 0.0
    %1885 = vmatpush1.msra.mxu0 0.0
    %1886 = vmatprep.subr.mxu0 0.0
    %1887 = vmatpush1.msra.mxu0 0.0
    %1888 = vmatprep.subr.mxu0 0.0
    %1889 = vmatpush1.msra.mxu0 0.0
    %1890 = vmatprep.subr.mxu0 0.0
    %1891 = vmatpush1.msra.mxu0 0.0
    %1892 = vmatprep.subr.mxu0 0.0
    %1893 = vmatpush1.msra.mxu0 0.0
    %1894 = vmatprep.subr.mxu0 0.0
    %1895 = vmatpush1.msra.mxu0 0.0
    %1896 = vmatprep.subr.mxu0 0.0
    %1897 = vmatpush1.msra.mxu0 0.0
    %1898 = vmatprep.subr.mxu0 0.0
    %1899 = vmatpush1.msra.mxu0 0.0
    %1900 = vmatprep.subr.mxu0 0.0
    %1901 = vmatpush1.msra.mxu0 0.0
    %1902 = vmatprep.subr.mxu0 0.0
    %1903 = vmatpush1.msra.mxu0 0.0
    %1904 = vmatprep.subr.mxu0 0.0
    %1905 = vmatpush1.msra.mxu0 0.0
    %1906 = vmatprep.subr.mxu0 0.0
    %1907 = vmatpush1.msra.mxu0 0.0
    %1908 = vmatprep.subr.mxu0 0.0
    %1909 = vmatpush1.msra.mxu0 0.0
    %1910 = vmatprep.subr.mxu0 0.0
    %1911 = vmatpush1.msra.mxu0 0.0
    %1912 = vmatprep.subr.mxu0 0.0
    %1913 = vmatpush1.msra.mxu0 0.0
    %1914 = vmatprep.subr.mxu0 0.0
    %1915 = vmatpush1.msra.mxu0 0.0
    %1916 = vmatprep.mubr.f32.mxu0 0.0
    %1917 = vmatmul.mubr.f32.gmra.mrb[0].mxu0 %v1847
    %v1918 = vpop.f32.mrb[0].mxu0
    %v1919 = vadd.f32 %v1844, %v1918
    %v1920 = vpop.f32.mrb[0].mxu0
    %1921 = vmatprep.mubr.f32.mxu0 0.0
    %1922 = vmatmul.mubr.f32.gmra.mrb[0].mxu0 %v1850
    %v1923 = vpop.f32.mrb[0].mxu0
    %v1924 = vadd.f32 %v1844, %v1923
    %v1925 = vpop.f32.mrb[0].mxu0
    %1926 = vdwg.mxu0
    %v1927 = vadd.f32 %v158, %v1919
    %v1928 = vadd.f32 %v159, %v1924
    %v1929 = vld [vmem:[%s7] sm:$0x1]
    %v1930 = vld [vmem:[#allocation13] sm:$0x1]
    %v1931 = vsel %vm168, %v1927, 0.0
    %1932 = vadd.xlane.f32.xlu0 %v1931
    %v1933 = vpop.xlane.xlu0 %1932
    %v1934 = vsel %vm168, %v1928, 0.0
    %1935 = vadd.xlane.f32.xlu0 %v1934
    %v1936 = vpop.xlane.xlu0 %1935
    %v1937 = vrcp.pop 32.0
    %v1938 = vmul.f32 %v1933, %v1937
    %v1939 = vmul.f32 %v1936, %v1937
    %v1940 = vsub.f32 %v1927, %v1938
    %v1941 = vsub.f32 %v1928, %v1939
    %v1942 = vmul.f32 %v1940, %v1940
    %v1943 = vmul.f32 %v1941, %v1941
    %v1944 = vsel %vm168, %v1942, 0.0
    %1945 = vadd.xlane.f32.xlu0 %v1944
    %v1946 = vpop.xlane.xlu0 %1945
    %v1947 = vsel %vm168, %v1943, 0.0
    %1948 = vadd.xlane.f32.xlu0 %v1947
    %v1949 = vpop.xlane.xlu0 %1948
    %v1950 = vmul.f32 %v1946, %v1937
    %v1951 = vmul.f32 %v1949, %v1937
    %v1952 = vadd.f32 %v1950, 1e-05
    %v1953 = vadd.f32 %v1951, 1e-05
    %v1954 = vrsqrt.pop %v1952
    %v1955 = vrsqrt.pop %v1953
    %v1956 = vmul.f32 %v1940, %v1954
    %v1957 = vmul.f32 %v1941, %v1955
    %v1959 = vlaneseq
    %v1960 = vshrl.u32 %v1959, 7
    %v1961 = vsub.s32 0, %v1960
    %v1962 = vrot.slane %v1929, %v1961
    %v1964 = vmul.f32 %v1956, %v1962
    %v1965 = vmul.f32 %v1957, %v1962
    %v1967 = vlaneseq
    %v1968 = vshrl.u32 %v1967, 7
    %v1969 = vsub.s32 0, %v1968
    %v1970 = vrot.slane %v1930, %v1969
    %v1972 = vadd.f32 %v1964, %v1970
    %v1973 = vadd.f32 %v1965, %v1970
    %v1974 = vld [vmem:[%s9] sm:$0xff]
    %v1975 = vld [vmem:[%s9 + $0x8] sm:$0xff]
    %v1976 = vld [vmem:[%s9 + $0x10] sm:$0xff]
    %v1977 = vld [vmem:[%s9 + $0x18] sm:$0xff]
    %v1978 = vld [vmem:[%s10] sm:$0x1]
    %v1980 = vlaneseq
    %v1981 = vshrl.u32 %v1980, 7
    %v1982 = vsub.s32 0, %v1981
    %v1983 = vrot.slane %v1978, %v1982
    %v1986 = vsel %vm168, %v1972, 0
    %v1989 = vsel %vm168, %v1973, 0
    %1991 = vmatprep.subr.mxu0 0.0
    %1992 = vmatpush1.msra.mxu0 %v1974
    %1993 = vmatprep.subr.mxu0 0.0
    %1994 = vmatpush1.msra.mxu0 %v1975
    %1995 = vmatprep.subr.mxu0 0.0
    %1996 = vmatpush1.msra.mxu0 %v1976
    %1997 = vmatprep.subr.mxu0 0.0
    %1998 = vmatpush1.msra.mxu0 %v1977
    %1999 = vmatprep.subr.mxu0 0.0
    %2000 = vmatpush1.msra.mxu0 0.0
    %2001 = vmatprep.subr.mxu0 0.0
    %2002 = vmatpush1.msra.mxu0 0.0
    %2003 = vmatprep.subr.mxu0 0.0
    %2004 = vmatpush1.msra.mxu0 0.0
    %2005 = vmatprep.subr.mxu0 0.0
    %2006 = vmatpush1.msra.mxu0 0.0
    %2007 = vmatprep.subr.mxu0 0.0
    %2008 = vmatpush1.msra.mxu0 0.0
    %2009 = vmatprep.subr.mxu0 0.0
    %2010 = vmatpush1.msra.mxu0 0.0
    %2011 = vmatprep.subr.mxu0 0.0
    %2012 = vmatpush1.msra.mxu0 0.0
    %2013 = vmatprep.subr.mxu0 0.0
    %2014 = vmatpush1.msra.mxu0 0.0
    %2015 = vmatprep.subr.mxu0 0.0
    %2016 = vmatpush1.msra.mxu0 0.0
    %2017 = vmatprep.subr.mxu0 0.0
    %2018 = vmatpush1.msra.mxu0 0.0
    %2019 = vmatprep.subr.mxu0 0.0
    %2020 = vmatpush1.msra.mxu0 0.0
    %2021 = vmatprep.subr.mxu0 0.0
    %2022 = vmatpush1.msra.mxu0 0.0
    %2023 = vmatprep.subr.mxu0 0.0
    %2024 = vmatpush1.msra.mxu0 0.0
    %2025 = vmatprep.subr.mxu0 0.0
    %2026 = vmatpush1.msra.mxu0 0.0
    %2027 = vmatprep.subr.mxu0 0.0
    %2028 = vmatpush1.msra.mxu0 0.0
    %2029 = vmatprep.subr.mxu0 0.0
    %2030 = vmatpush1.msra.mxu0 0.0
    %2031 = vmatprep.subr.mxu0 0.0
    %2032 = vmatpush1.msra.mxu0 0.0
    %2033 = vmatprep.subr.mxu0 0.0
    %2034 = vmatpush1.msra.mxu0 0.0
    %2035 = vmatprep.subr.mxu0 0.0
    %2036 = vmatpush1.msra.mxu0 0.0
    %2037 = vmatprep.subr.mxu0 0.0
    %2038 = vmatpush1.msra.mxu0 0.0
    %2039 = vmatprep.subr.mxu0 0.0
    %2040 = vmatpush1.msra.mxu0 0.0
    %2041 = vmatprep.subr.mxu0 0.0
    %2042 = vmatpush1.msra.mxu0 0.0
    %2043 = vmatprep.subr.mxu0 0.0
    %2044 = vmatpush1.msra.mxu0 0.0
    %2045 = vmatprep.subr.mxu0 0.0
    %2046 = vmatpush1.msra.mxu0 0.0
    %2047 = vmatprep.subr.mxu0 0.0
    %2048 = vmatpush1.msra.mxu0 0.0
    %2049 = vmatprep.subr.mxu0 0.0
    %2050 = vmatpush1.msra.mxu0 0.0
    %2051 = vmatprep.subr.mxu0 0.0
    %2052 = vmatpush1.msra.mxu0 0.0
    %2053 = vmatprep.subr.mxu0 0.0
    %2054 = vmatpush1.msra.mxu0 0.0
    %2055 = vmatprep.mubr.f32.mxu0 0.0
    %2056 = vmatmul.mubr.f32.gmra.mrb[0].mxu0 %v1986
    %v2057 = vpop.f32.mrb[0].mxu0
    %v2058 = vadd.f32 %v1983, %v2057
    %v2059 = vpop.f32.mrb[0].mxu0
    %2060 = vmatprep.mubr.f32.mxu0 0.0
    %2061 = vmatmul.mubr.f32.gmra.mrb[0].mxu0 %v1989
    %v2062 = vpop.f32.mrb[0].mxu0
    %v2063 = vadd.f32 %v1983, %v2062
    %v2064 = vpop.f32.mrb[0].mxu0
    %2065 = vdwg.mxu0
    %v2066 = vmax.f32 %v2058, 0.0
    %v2067 = vmax.f32 %v2063, 0.0
    %v2068 = vld [vmem:[#allocation14] sm:$0xff]
    %v2069 = vld [vmem:[#allocation14 + $0x8] sm:$0xff]
    %v2070 = vld [vmem:[#allocation14 + $0x10] sm:$0xff]
    %v2071 = vld [vmem:[#allocation14 + $0x18] sm:$0xff]
    %v2072 = vld [vmem:[%s12] sm:$0x1]
    %v2074 = vlaneseq
    %v2075 = vshrl.u32 %v2074, 7
    %v2076 = vsub.s32 0, %v2075
    %v2077 = vrot.slane %v2072, %v2076
    %v2080 = vsel %vm168, %v2066, 0
    %v2083 = vsel %vm168, %v2067, 0
    %2085 = vmatprep.subr.mxu0 0.0
    %2086 = vmatpush1.msra.mxu0 %v2068
    %2087 = vmatprep.subr.mxu0 0.0
    %2088 = vmatpush1.msra.mxu0 %v2069
    %2089 = vmatprep.subr.mxu0 0.0
    %2090 = vmatpush1.msra.mxu0 %v2070
    %2091 = vmatprep.subr.mxu0 0.0
    %2092 = vmatpush1.msra.mxu0 %v2071
    %2093 = vmatprep.subr.mxu0 0.0
    %2094 = vmatpush1.msra.mxu0 0.0
    %2095 = vmatprep.subr.mxu0 0.0
    %2096 = vmatpush1.msra.mxu0 0.0
    %2097 = vmatprep.subr.mxu0 0.0
    %2098 = vmatpush1.msra.mxu0 0.0
    %2099 = vmatprep.subr.mxu0 0.0
    %2100 = vmatpush1.msra.mxu0 0.0
    %2101 = vmatprep.subr.mxu0 0.0
    %2102 = vmatpush1.msra.mxu0 0.0
    %2103 = vmatprep.subr.mxu0 0.0
    %2104 = vmatpush1.msra.mxu0 0.0
    %2105 = vmatprep.subr.mxu0 0.0
    %2106 = vmatpush1.msra.mxu0 0.0
    %2107 = vmatprep.subr.mxu0 0.0
    %2108 = vmatpush1.msra.mxu0 0.0
    %2109 = vmatprep.subr.mxu0 0.0
    %2110 = vmatpush1.msra.mxu0 0.0
    %2111 = vmatprep.subr.mxu0 0.0
    %2112 = vmatpush1.msra.mxu0 0.0
    %2113 = vmatprep.subr.mxu0 0.0
    %2114 = vmatpush1.msra.mxu0 0.0
    %2115 = vmatprep.subr.mxu0 0.0
    %2116 = vmatpush1.msra.mxu0 0.0
    %2117 = vmatprep.subr.mxu0 0.0
    %2118 = vmatpush1.msra.mxu0 0.0
    %2119 = vmatprep.subr.mxu0 0.0
    %2120 = vmatpush1.msra.mxu0 0.0
    %2121 = vmatprep.subr.mxu0 0.0
    %2122 = vmatpush1.msra.mxu0 0.0
    %2123 = vmatprep.subr.mxu0 0.0
    %2124 = vmatpush1.msra.mxu0 0.0
    %2125 = vmatprep.subr.mxu0 0.0
    %2126 = vmatpush1.msra.mxu0 0.0
    %2127 = vmatprep.subr.mxu0 0.0
    %2128 = vmatpush1.msra.mxu0 0.0
    %2129 = vmatprep.subr.mxu0 0.0
    %2130 = vmatpush1.msra.mxu0 0.0
    %2131 = vmatprep.subr.mxu0 0.0
    %2132 = vmatpush1.msra.mxu0 0.0
    %2133 = vmatprep.subr.mxu0 0.0
    %2134 = vmatpush1.msra.mxu0 0.0
    %2135 = vmatprep.subr.mxu0 0.0
    %2136 = vmatpush1.msra.mxu0 0.0
    %2137 = vmatprep.subr.mxu0 0.0
    %2138 = vmatpush1.msra.mxu0 0.0
    %2139 = vmatprep.subr.mxu0 0.0
    %2140 = vmatpush1.msra.mxu0 0.0
    %2141 = vmatprep.subr.mxu0 0.0
    %2142 = vmatpush1.msra.mxu0 0.0
    %2143 = vmatprep.subr.mxu0 0.0
    %2144 = vmatpush1.msra.mxu0 0.0
    %2145 = vmatprep.subr.mxu0 0.0
    %2146 = vmatpush1.msra.mxu0 0.0
    %2147 = vmatprep.subr.mxu0 0.0
    %2148 = vmatpush1.msra.mxu0 0.0
    %2149 = vmatprep.mubr.f32.mxu0 0.0
    %2150 = vmatmul.mubr.f32.gmra.mrb[0].mxu0 %v2080
    %v2151 = vpop.f32.mrb[0].mxu0
    %v2152 = vadd.f32 %v2077, %v2151
    %v2153 = vpop.f32.mrb[0].mxu0
    %2154 = vmatprep.mubr.f32.mxu0 0.0
    %2155 = vmatmul.mubr.f32.gmra.mrb[0].mxu0 %v2083
    %v2156 = vpop.f32.mrb[0].mxu0
    %v2157 = vadd.f32 %v2077, %v2156
    %v2158 = vpop.f32.mrb[0].mxu0
    %2159 = vdwg.mxu0
    %v2160 = vadd.f32 %v1972, %v2152
    %v2161 = vadd.f32 %v1973, %v2157
    %v2162 = vld [vmem:[%s13] sm:$0x1]
    %v2163 = vld [vmem:[%s14] sm:$0x1]
    %v2164 = vsel %vm168, %v2160, 0.0
    %2165 = vadd.xlane.f32.xlu0 %v2164
    %v2166 = vpop.xlane.xlu0 %2165
    %v2167 = vsel %vm168, %v2161, 0.0
    %2168 = vadd.xlane.f32.xlu0 %v2167
    %v2169 = vpop.xlane.xlu0 %2168
    %v2170 = vmul.f32 %v2166, %v1937
    %v2171 = vmul.f32 %v2169, %v1937
    %v2172 = vsub.f32 %v2160, %v2170
    %v2173 = vsub.f32 %v2161, %v2171
    %v2174 = vmul.f32 %v2172, %v2172
    %v2175 = vmul.f32 %v2173, %v2173
    %v2176 = vsel %vm168, %v2174, 0.0
    %2177 = vadd.xlane.f32.xlu0 %v2176
    %v2178 = vpop.xlane.xlu0 %2177
    %v2179 = vsel %vm168, %v2175, 0.0
    %2180 = vadd.xlane.f32.xlu0 %v2179
    %v2181 = vpop.xlane.xlu0 %2180
    %v2182 = vmul.f32 %v2178, %v1937
    %v2183 = vmul.f32 %v2181, %v1937
    %v2184 = vadd.f32 %v2182, 1e-05
    %v2185 = vadd.f32 %v2183, 1e-05
    %v2186 = vrsqrt.pop %v2184
    %v2187 = vrsqrt.pop %v2185
    %v2188 = vmul.f32 %v2172, %v2186
    %v2189 = vmul.f32 %v2173, %v2187
    %v2191 = vlaneseq
    %v2192 = vshrl.u32 %v2191, 7
    %v2193 = vsub.s32 0, %v2192
    %v2194 = vrot.slane %v2162, %v2193
    %v2196 = vmul.f32 %v2188, %v2194
    %v2197 = vmul.f32 %v2189, %v2194
    %v2199 = vlaneseq
    %v2200 = vshrl.u32 %v2199, 7
    %v2201 = vsub.s32 0, %v2200
    %v2202 = vrot.slane %v2163, %v2201
    %v2204 = vadd.f32 %v2196, %v2202
    %v2205 = vadd.f32 %v2197, %v2202
    %2206 = vst.msk [vmem:[#allocation16] sm:$0xff] %vm168, %v2204
    %2207 = vst.msk [vmem:[#allocation16 + $0x8] sm:$0xff] %vm168, %v2205
    // Predicated region
    $region94: #{tpu_custom_call.1} parent=1 // pred_check
      _
    $region95: #{tpu_custom_call.1} parent=1 // pred_check_branch
      %2209 = sbr.rel (0) target = $region97
    $region96: #{tpu_custom_call.1} parent=1 // pred_region
      %s2211 = ssub.s32 256, 256
      %2212 = vsyncadd [#allocation4], %s2211
      %s2213 = sshll.u32 [#allocation16], 4
      %s2214 = int_to_ptr.vmem [resolvable:$true] %s2213
      %2219 = dma.vmem_to_hbm [thread:$0]  %s2214, 256, %s15, [#allocation4], 128, 128, 8
    $region97: #{tpu_custom_call.1} parent=1 // pred_fallthru
      _
    // Predicated region
    $region98: #{tpu_custom_call.1} parent=1 // pred_check
      _
    $region99: #{tpu_custom_call.1} parent=1 // pred_check_branch
      %2221 = sbr.rel (0) target = $region101
    $region100: #{tpu_custom_call.1} parent=1 // pred_region
      %2222 = dma.done [#allocation4], 256
    $region101: #{tpu_custom_call.1} parent=1 // pred_fallthru
      _
    %2223 = vsyncpa [#allocation3], 1
    %2224 = vsyncpa [#allocation6], 1
    %2225 = vsyncpa [#allocation9], 1
    %2226 = vsyncpa [#allocation12], 1
    %2227 = vsyncpa [#allocation15], 1
    %2228 = vsyncpa [#allocation4], 1

// kernel: tpu_custom_call.1
$region0: #{tpu_custom_call.1}
  #allocation0 [shape = 'u32[]', space=smem, size = 0x4, offset = 0x4, fixed_abs, tag = 'smem constant byte address 0x4 - core index']
  #allocation1 [shape = 'u32[144,128]{1,0:T(1,128)}', space=vmem, size = 0x12000, scoped, tag = 'internal scratch']
  %s0 = inlined_call_operand.hbm [shape: f32[16,32], index: 0, kind: input, shape index: {}]
  %s1 = inlined_call_operand.hbm [shape: f32[32,32], index: 1, kind: input, shape index: {}]
  %s2 = inlined_call_operand.hbm [shape: f32[32,32], index: 2, kind: input, shape index: {}]
  %s3 = inlined_call_operand.hbm [shape: f32[32,32], index: 3, kind: input, shape index: {}]
  %s4 = inlined_call_operand.hbm [shape: f32[32,32], index: 4, kind: input, shape index: {}]
  %s5 = inlined_call_operand.hbm [shape: f32[32,32], index: 5, kind: input, shape index: {}]
  %s6 = inlined_call_operand.vmem [shape: f32[1,32], index: 6, kind: input, shape index: {}]
  %s7 = inlined_call_operand.vmem [shape: f32[1,32], index: 7, kind: input, shape index: {}]
  %s8 = inlined_call_operand.hbm [shape: f32[1,32], index: 8, kind: input, shape index: {}]
  %s9 = inlined_call_operand.vmem [shape: f32[32,32], index: 9, kind: input, shape index: {}]
  %s10 = inlined_call_operand.vmem [shape: f32[1,32], index: 10, kind: input, shape index: {}]
  %s11 = inlined_call_operand.hbm [shape: f32[32,32], index: 11, kind: input, shape index: {}]
  %s12 = inlined_call_operand.vmem [shape: f32[1,32], index: 12, kind: input, shape index: {}]
  %s13 = inlined_call_operand.vmem [shape: f32[1,32], index: 13, kind: input, shape index: {}]
  %s14 = inlined_call_operand.vmem [shape: f32[1,32], index: 14, kind: input, shape index: {}]
  %s15 = inlined_call_operand.hbm [shape: f32[16,32], index: 15, kind: output, shape index: {}]
  %s16 = sld [smem:[#allocation0]]
  $region102: #{tpu_custom_call.1} parent=0
    _
  %s18 = ssub.s32 1, %s16
  %s19 = scalar_select 0, %s18, %s16
  $region1: #{tpu_custom_call.1} parent=0
    #allocation2 [shape = 'u8[8192]{0}', space=vmem, size = 0x2000, scoped, tag = 'input window, operand 0, single buffered']
    #allocation3 [shape = 's32[1]{0}', space=sflag, size = 0x4, scoped, tag = 'scoped memory for tpu_custom_call.1']
    #allocation4 [shape = 's32[1]{0}', space=sflag, size = 0x4, scoped, tag = 'scoped memory for tpu_custom_call.1']
    #allocation5 [shape = 'u8[16384]{0}', space=vmem, size = 0x4000, scoped, tag = 'input window, operand 1, single buffered']
    #allocation6 [shape = 's32[1]{0}', space=sflag, size = 0x4, scoped, tag = 'scoped memory for tpu_custom_call.1']
    #allocation7 [shape = 'u8[16384]{0}', space=vmem, size = 0x4000, scoped, tag = 'input window, operand 2, single buffered']
    #allocation8 [shape = 'u8[16384]{0}', space=vmem, size = 0x4000, scoped, tag = 'input window, operand 3, single buffered']
    #allocation9 [shape = 's32[1]{0}', space=sflag, size = 0x4, scoped, tag = 'scoped memory for tpu_custom_call.1']
    #allocation10 [shape = 'u8[16384]{0}', space=vmem, size = 0x4000, scoped, tag = 'input window, operand 4, single buffered']
    #allocation11 [shape = 'u8[16384]{0}', space=vmem, size = 0x4000, scoped, tag = 'input window, operand 5, single buffered']
    #allocation12 [shape = 's32[1]{0}', space=sflag, size = 0x4, scoped, tag = 'scoped memory for tpu_custom_call.1']
    #allocation13 [shape = 'u8[512]{0}', space=vmem, size = 0x400, scoped, tag = 'input window, operand 8, single buffered']
    #allocation14 [shape = 'u8[16384]{0}', space=vmem, size = 0x4000, scoped, tag = 'input window, operand 11, single buffered']
    #allocation15 [shape = 's32[1]{0}', space=sflag, size = 0x4, scoped, tag = 'scoped memory for tpu_custom_call.1']
    #allocation16 [shape = 'u8[8192]{0}', space=vmem, size = 0x2000, scoped, tag = 'output window, operand 0, single buffered']
    %20 = vsyncpa [#allocation3], 0
    %21 = vsyncpa [#allocation6], 0
    %22 = vsyncpa [#allocation9], 0
    %23 = vsyncpa [#allocation12], 0
    %24 = vsyncpa [#allocation15], 0
    %25 = vsyncpa [#allocation4], 0
    // Predicated region
    $region2: #{tpu_custom_call.1} parent=1 // pred_check
      _
    $region3: #{tpu_custom_call.1} parent=1 // pred_check_branch
      %27 = sbr.rel (0) target = $region5
    $region4: #{tpu_custom_call.1} parent=1 // pred_region
      %s29 = ssub.s32 256, 256
      %30 = vsyncadd [#allocation3], %s29
      %s31 = sshll.u32 [#allocation2], 4
      %s32 = int_to_ptr.vmem [resolvable:$true] %s31
      %37 = dma.hbm_to_vmem [thread:$0]  %s0, 256, %s32, [#allocation3], 128, 128, 8
    $region5: #{tpu_custom_call.1} parent=1 // pred_fallthru
      _
    // Predicated region
    $region6: #{tpu_custom_call.1} parent=1 // pred_check
      _
    $region7: #{tpu_custom_call.1} parent=1 // pred_check_branch
      %39 = sbr.rel (0) target = $region9
    $region8: #{tpu_custom_call.1} parent=1 // pred_region
      %s41 = ssub.s32 512, 512
      %42 = vsyncadd [#allocation6], %s41
      %s43 = sshll.u32 [#allocation5], 4
      %s44 = int_to_ptr.vmem [resolvable:$true] %s43
      %49 = dma.hbm_to_vmem [thread:$0]  %s1, 512, %s44, [#allocation6], 128, 128, 8
    $region9: #{tpu_custom_call.1} parent=1 // pred_fallthru
      _
    // Predicated region
    $region10: #{tpu_custom_call.1} parent=1 // pred_check
      _
    $region11: #{tpu_custom_call.1} parent=1 // pred_check_branch
      %51 = sbr.rel (0) target = $region13
    $region12: #{tpu_custom_call.1} parent=1 // pred_region
      %s53 = ssub.s32 512, 512
      %54 = vsyncadd [#allocation6], %s53
      %s55 = sshll.u32 [#allocation7], 4
      %s56 = int_to_ptr.vmem [resolvable:$true] %s55
      %61 = dma.hbm_to_vmem [thread:$0]  %s2, 512, %s56, [#allocation6], 128, 128, 8
    $region13: #{tpu_custom_call.1} parent=1 // pred_fallthru
      _
    // Predicated region
    $region14: #{tpu_custom_call.1} parent=1 // pred_check
      _
    $region15: #{tpu_custom_call.1} parent=1 // pred_check_branch
      %63 = sbr.rel (0) target = $region17
    $region16: #{tpu_custom_call.1} parent=1 // pred_region
      %s65 = ssub.s32 512, 512
      %66 = vsyncadd [#allocation9], %s65
      %s67 = sshll.u32 [#allocation8], 4
      %s68 = int_to_ptr.vmem [resolvable:$true] %s67
      %73 = dma.hbm_to_vmem [thread:$0]  %s3, 512, %s68, [#allocation9], 128, 128, 8
    $region17: #{tpu_custom_call.1} parent=1 // pred_fallthru
      _
    // Predicated region
    $region18: #{tpu_custom_call.1} parent=1 // pred_check
      _
    $region19: #{tpu_custom_call.1} parent=1 // pred_check_branch
      %75 = sbr.rel (0) target = $region21
    $region20: #{tpu_custom_call.1} parent=1 // pred_region
      %s77 = ssub.s32 512, 512
      %78 = vsyncadd [#allocation9], %s77
      %s79 = sshll.u32 [#allocation10], 4
      %s80 = int_to_ptr.vmem [resolvable:$true] %s79
      %85 = dma.hbm_to_vmem [thread:$0]  %s4, 512, %s80, [#allocation9], 128, 128, 8
    $region21: #{tpu_custom_call.1} parent=1 // pred_fallthru
      _
    // Predicated region
    $region22: #{tpu_custom_call.1} parent=1 // pred_check
      _
    $region23: #{tpu_custom_call.1} parent=1 // pred_check_branch
      %87 = sbr.rel (0) target = $region25
    $region24: #{tpu_custom_call.1} parent=1 // pred_region
      %s89 = ssub.s32 512, 512
      %90 = vsyncadd [#allocation12], %s89
      %s91 = sshll.u32 [#allocation11], 4
      %s92 = int_to_ptr.vmem [resolvable:$true] %s91
      %97 = dma.hbm_to_vmem [thread:$0]  %s5, 512, %s92, [#allocation12], 128, 128, 8
    $region25: #{tpu_custom_call.1} parent=1 // pred_fallthru
      _
    // Predicated region
    $region26: #{tpu_custom_call.1} parent=1 // pred_check
      _
    $region27: #{tpu_custom_call.1} parent=1 // pred_check_branch
      %99 = sbr.rel (0) target = $region29
    $region28: #{tpu_custom_call.1} parent=1 // pred_region
      _
    $region29: #{tpu_custom_call.1} parent=1 // pred_fallthru
      _
    // Predicated region
    $region30: #{tpu_custom_call.1} parent=1 // pred_check
      _
    $region31: #{tpu_custom_call.1} parent=1 // pred_check_branch
      %101 = sbr.rel (0) target = $region33
    $region32: #{tpu_custom_call.1} parent=1 // pred_region
      _
    $region33: #{tpu_custom_call.1} parent=1 // pred_fallthru
      _
    // Predicated region
    $region34: #{tpu_custom_call.1} parent=1 // pred_check
      _
    $region35: #{tpu_custom_call.1} parent=1 // pred_check_branch
      %103 = sbr.rel (0) target = $region37
    $region36: #{tpu_custom_call.1} parent=1 // pred_region
      %s105 = ssub.s32 16, 16
      %106 = vsyncadd [#allocation12], %s105
      %s108 = sshll.u32 [#allocation13], 4
      %s109 = int_to_ptr.vmem [resolvable:$true] %s108
      %111 = dma.hbm_to_vmem [thread:$0]  %s8, 16, %s109, [#allocation12]
    $region37: #{tpu_custom_call.1} parent=1 // pred_fallthru
      _
    // Predicated region
    $region38: #{tpu_custom_call.1} parent=1 // pred_check
      _
    $region39: #{tpu_custom_call.1} parent=1 // pred_check_branch
      %113 = sbr.rel (0) target = $region41
    $region40: #{tpu_custom_call.1} parent=1 // pred_region
      _
    $region41: #{tpu_custom_call.1} parent=1 // pred_fallthru
      _
    // Predicated region
    $region42: #{tpu_custom_call.1} parent=1 // pred_check
      _
    $region43: #{tpu_custom_call.1} parent=1 // pred_check_branch
      %115 = sbr.rel (0) target = $region45
    $region44: #{tpu_custom_call.1} parent=1 // pred_region
      _
    $region45: #{tpu_custom_call.1} parent=1 // pred_fallthru
      _
    // Predicated region
    $region46: #{tpu_custom_call.1} parent=1 // pred_check
      _
    $region47: #{tpu_custom_call.1} parent=1 // pred_check_branch
      %117 = sbr.rel (0) target = $region49
    $region48: #{tpu_custom_call.1} parent=1 // pred_region
      %s119 = ssub.s32 512, 512
      %120 = vsyncadd [#allocation15], %s119
      %s121 = sshll.u32 [#allocation14], 4
      %s122 = int_to_ptr.vmem [resolvable:$true] %s121
      %127 = dma.hbm_to_vmem [thread:$0]  %s11, 512, %s122, [#allocation15], 128, 128, 8
    $region49: #{tpu_custom_call.1} parent=1 // pred_fallthru
      _
    // Predicated region
    $region50: #{tpu_custom_call.1} parent=1 // pred_check
      _
    $region51: #{tpu_custom_call.1} parent=1 // pred_check_branch
      %129 = sbr.rel (0) target = $region53
    $region52: #{tpu_custom_call.1} parent=1 // pred_region
      _
    $region53: #{tpu_custom_call.1} parent=1 // pred_fallthru
      _
    // Predicated region
    $region54: #{tpu_custom_call.1} parent=1 // pred_check
      _
    $region55: #{tpu_custom_call.1} parent=1 // pred_check_branch
      %131 = sbr.rel (0) target = $region57
    $region56: #{tpu_custom_call.1} parent=1 // pred_region
      _
    $region57: #{tpu_custom_call.1} parent=1 // pred_fallthru
      _
    // Predicated region
    $region58: #{tpu_custom_call.1} parent=1 // pred_check
      _
    $region59: #{tpu_custom_call.1} parent=1 // pred_check_branch
      %133 = sbr.rel (0) target = $region61
    $region60: #{tpu_custom_call.1} parent=1 // pred_region
      _
    $region61: #{tpu_custom_call.1} parent=1 // pred_fallthru
      _
    // Predicated region
    $region62: #{tpu_custom_call.1} parent=1 // pred_check
      _
    $region63: #{tpu_custom_call.1} parent=1 // pred_check_branch
      %135 = sbr.rel (0) target = $region65
    $region64: #{tpu_custom_call.1} parent=1 // pred_region
      %136 = dma.done [#allocation3], 256
    $region65: #{tpu_custom_call.1} parent=1 // pred_fallthru
      _
    // Predicated region
    $region66: #{tpu_custom_call.1} parent=1 // pred_check
      _
    $region67: #{tpu_custom_call.1} parent=1 // pred_check_branch
      %138 = sbr.rel (0) target = $region69
    $region68: #{tpu_custom_call.1} parent=1 // pred_region
      %139 = dma.done [#allocation6], 512
    $region69: #{tpu_custom_call.1} parent=1 // pred_fallthru
      _
    // Predicated region
    $region70: #{tpu_custom_call.1} parent=1 // pred_check
      _
    $region71: #{tpu_custom_call.1} parent=1 // pred_check_branch
      %141 = sbr.rel (0) target = $region73
    $region72: #{tpu_custom_call.1} parent=1 // pred_region
      %142 = dma.done [#allocation6], 512
    $region73: #{tpu_custom_call.1} parent=1 // pred_fallthru
      _
    // Predicated region
    $region74: #{tpu_custom_call.1} parent=1 // pred_check
      _
    $region75: #{tpu_custom_call.1} parent=1 // pred_check_branch
      %144 = sbr.rel (0) target = $region77
    $region76: #{tpu_custom_call.1} parent=1 // pred_region
      %145 = dma.done [#allocation9], 512
    $region77: #{tpu_custom_call.1} parent=1 // pred_fallthru
      _
    // Predicated region
    $region78: #{tpu_custom_call.1} parent=1 // pred_check
      _
    $region79: #{tpu_custom_call.1} parent=1 // pred_check_branch
      %147 = sbr.rel (0) target = $region81
    $region80: #{tpu_custom_call.1} parent=1 // pred_region
      %148 = dma.done [#allocation9], 512
    $region81: #{tpu_custom_call.1} parent=1 // pred_fallthru
      _
    // Predicated region
    $region82: #{tpu_custom_call.1} parent=1 // pred_check
      _
    $region83: #{tpu_custom_call.1} parent=1 // pred_check_branch
      %150 = sbr.rel (0) target = $region85
    $region84: #{tpu_custom_call.1} parent=1 // pred_region
      %151 = dma.done [#allocation12], 512
    $region85: #{tpu_custom_call.1} parent=1 // pred_fallthru
      _
    // Predicated region
    $region86: #{tpu_custom_call.1} parent=1 // pred_check
      _
    $region87: #{tpu_custom_call.1} parent=1 // pred_check_branch
      %153 = sbr.rel (0) target = $region89
    $region88: #{tpu_custom_call.1} parent=1 // pred_region
      %154 = dma.done [#allocation12], 16
    $region89: #{tpu_custom_call.1} parent=1 // pred_fallthru
      _
    // Predicated region
    $region90: #{tpu_custom_call.1} parent=1 // pred_check
      _
    $region91: #{tpu_custom_call.1} parent=1 // pred_check_branch
      %156 = sbr.rel (0) target = $region93
    $region92: #{tpu_custom_call.1} parent=1 // pred_region
      %157 = dma.done [#allocation15], 512
    $region93: #{tpu_custom_call.1} parent=1 // pred_fallthru
      _
    %v158 = vld [vmem:[#allocation2] sm:$0xff]
    %v159 = vld [vmem:[#allocation2 + $0x8] sm:$0xff]
    %v160 = vld [vmem:[#allocation5] sm:$0xff]
    %v161 = vld [vmem:[#allocation5 + $0x8] sm:$0xff]
    %v162 = vld [vmem:[#allocation5 + $0x10] sm:$0xff]
    %v163 = vld [vmem:[#allocation5 + $0x18] sm:$0xff]
    %v164 = vld [vmem:[#allocation7] sm:$0xff]
    %v165 = vld [vmem:[#allocation7 + $0x8] sm:$0xff]
    %v166 = vld [vmem:[#allocation7 + $0x10] sm:$0xff]
    %v167 = vld [vmem:[#allocation7 + $0x18] sm:$0xff]
    %vm168 = vcmask 261120
    %v170 = vsel %vm168, %v158, 0
    %v173 = vsel %vm168, %v159, 0
    %175 = vmatprep.subr.mxu0 0.0
    %176 = vmatpush1.msra.mxu0 %v164
    %177 = vmatprep.subr.mxu0 0.0
    %178 = vmatpush1.msra.mxu0 %v165
    %179 = vmatprep.subr.mxu0 0.0
    %180 = vmatpush1.msra.mxu0 %v166
    %181 = vmatprep.subr.mxu0 0.0
    %182 = vmatpush1.msra.mxu0 %v167
    %183 = vmatprep.subr.mxu0 0.0
    %184 = vmatpush1.msra.mxu0 0.0
    %185 = vmatprep.subr.mxu0 0.0
    %186 = vmatpush1.msra.mxu0 0.0
    %187 = vmatprep.subr.mxu0 0.0
    %188 = vmatpush1.msra.mxu0 0.0
    %189 = vmatprep.subr.mxu0 0.0
    %190 = vmatpush1.msra.mxu0 0.0
    %191 = vmatprep.subr.mxu0 0.0
    %192 = vmatpush1.msra.mxu0 0.0
    %193 = vmatprep.subr.mxu0 0.0
    %194 = vmatpush1.msra.mxu0 0.0
    %195 = vmatprep.subr.mxu0 0.0
    %196 = vmatpush1.msra.mxu0 0.0
    %197 = vmatprep.subr.mxu0 0.0
    %198 = vmatpush1.msra.mxu0 0.0
    %199 = vmatprep.subr.mxu0 0.0
    %200 = vmatpush1.msra.mxu0 0.0
    %201 = vmatprep.subr.mxu0 0.0
    %202 = vmatpush1.msra.mxu0 0.0
    %203 = vmatprep.subr.mxu0 0.0
    %204 = vmatpush1.msra.mxu0 0.0
    %205 = vmatprep.subr.mxu0 0.0
    %206 = vmatpush1.msra.mxu0 0.0
    %207 = vmatprep.subr.mxu0 0.0
    %208 = vmatpush1.msra.mxu0 0.0
    %209 = vmatprep.subr.mxu0 0.0
    %210 = vmatpush1.msra.mxu0 0.0
    %211 = vmatprep.subr.mxu0 0.0
    %212 = vmatpush1.msra.mxu0 0.0
    %213 = vmatprep.subr.mxu0 0.0
    %214 = vmatpush1.msra.mxu0 0.0
    %215 = vmatprep.subr.mxu0 0.0
    %216 = vmatpush1.msra.mxu0 0.0
    %217 = vmatprep.subr.mxu0 0.0
    %218 = vmatpush1.msra.mxu0 0.0
    %219 = vmatprep.subr.mxu0 0.0
    %220 = vmatpush1.msra.mxu0 0.0
    %221 = vmatprep.subr.mxu0 0.0
    %222 = vmatpush1.msra.mxu0 0.0
    %223 = vmatprep.subr.mxu0 0.0
    %224 = vmatpush1.msra.mxu0 0.0
    %225 = vmatprep.subr.mxu0 0.0
    %226 = vmatpush1.msra.mxu0 0.0
    %227 = vmatprep.subr.mxu0 0.0
    %228 = vmatpush1.msra.mxu0 0.0
    %229 = vmatprep.subr.mxu0 0.0
    %230 = vmatpush1.msra.mxu0 0.0
    %231 = vmatprep.subr.mxu0 0.0
    %232 = vmatpush1.msra.mxu0 0.0
    %233 = vmatprep.subr.mxu0 0.0
    %234 = vmatpush1.msra.mxu0 0.0
    %235 = vmatprep.subr.mxu0 0.0
    %236 = vmatpush1.msra.mxu0 0.0
    %237 = vmatprep.subr.mxu0 0.0
    %238 = vmatpush1.msra.mxu0 0.0
    %239 = vmatprep.mubr.f32.mxu0 0.0
    %240 = vmatmul.mubr.f32.gmra.mrb[0].mxu0 %v170
    %v241 = vpop.f32.mrb[0].mxu0
    %v242 = vadd.f32 0.0, %v241
    %v243 = vpop.f32.mrb[0].mxu0
    %244 = vmatprep.mubr.f32.mxu0 0.0
    %245 = vmatmul.mubr.f32.gmra.mrb[0].mxu0 %v173
    %v246 = vpop.f32.mrb[0].mxu0
    %v247 = vadd.f32 0.0, %v246
    %v248 = vpop.f32.mrb[0].mxu0
    %249 = vdwg.mxu0
    %v250 = vld [vmem:[#allocation8] sm:$0xff]
    %v251 = vld [vmem:[#allocation8 + $0x8] sm:$0xff]
    %v252 = vld [vmem:[#allocation8 + $0x10] sm:$0xff]
    %v253 = vld [vmem:[#allocation8 + $0x18] sm:$0xff]
    %v255 = vsel %vm168, %v160, 0
    %v258 = vsel %vm168, %v161, 0
    %v261 = vsel %vm168, %v162, 0
    %v264 = vsel %vm168, %v163, 0
    %266 = vmatprep.subr.mxu0 0.0
    %267 = vmatpush1.msra.mxu0 %v250
    %268 = vmatprep.subr.mxu0 0.0
    %269 = vmatpush1.msra.mxu0 %v251
    %270 = vmatprep.subr.mxu0 0.0
    %271 = vmatpush1.msra.mxu0 %v252
    %272 = vmatprep.subr.mxu0 0.0
    %273 = vmatpush1.msra.mxu0 %v253
    %274 = vmatprep.subr.mxu0 0.0
    %275 = vmatpush1.msra.mxu0 0.0
    %276 = vmatprep.subr.mxu0 0.0
    %277 = vmatpush1.msra.mxu0 0.0
    %278 = vmatprep.subr.mxu0 0.0
    %279 = vmatpush1.msra.mxu0 0.0
    %280 = vmatprep.subr.mxu0 0.0
    %281 = vmatpush1.msra.mxu0 0.0
    %282 = vmatprep.subr.mxu0 0.0
    %283 = vmatpush1.msra.mxu0 0.0
    %284 = vmatprep.subr.mxu0 0.0
    %285 = vmatpush1.msra.mxu0 0.0
    %286 = vmatprep.subr.mxu0 0.0
    %287 = vmatpush1.msra.mxu0 0.0
    %288 = vmatprep.subr.mxu0 0.0
    %289 = vmatpush1.msra.mxu0 0.0
    %290 = vmatprep.subr.mxu0 0.0
    %291 = vmatpush1.msra.mxu0 0.0
    %292 = vmatprep.subr.mxu0 0.0
    %293 = vmatpush1.msra.mxu0 0.0
    %294 = vmatprep.subr.mxu0 0.0
    %295 = vmatpush1.msra.mxu0 0.0
    %296 = vmatprep.subr.mxu0 0.0
    %297 = vmatpush1.msra.mxu0 0.0
    %298 = vmatprep.subr.mxu0 0.0
    %299 = vmatpush1.msra.mxu0 0.0
    %300 = vmatprep.subr.mxu0 0.0
    %301 = vmatpush1.msra.mxu0 0.0
    %302 = vmatprep.subr.mxu0 0.0
    %303 = vmatpush1.msra.mxu0 0.0
    %304 = vmatprep.subr.mxu0 0.0
    %305 = vmatpush1.msra.mxu0 0.0
    %306 = vmatprep.subr.mxu0 0.0
    %307 = vmatpush1.msra.mxu0 0.0
    %308 = vmatprep.subr.mxu0 0.0
    %309 = vmatpush1.msra.mxu0 0.0
    %310 = vmatprep.subr.mxu0 0.0
    %311 = vmatpush1.msra.mxu0 0.0
    %312 = vmatprep.subr.mxu0 0.0
    %313 = vmatpush1.msra.mxu0 0.0
    %314 = vmatprep.subr.mxu0 0.0
    %315 = vmatpush1.msra.mxu0 0.0
    %316 = vmatprep.subr.mxu0 0.0
    %317 = vmatpush1.msra.mxu0 0.0
    %318 = vmatprep.subr.mxu0 0.0
    %319 = vmatpush1.msra.mxu0 0.0
    %320 = vmatprep.subr.mxu0 0.0
    %321 = vmatpush1.msra.mxu0 0.0
    %322 = vmatprep.subr.mxu0 0.0
    %323 = vmatpush1.msra.mxu0 0.0
    %324 = vmatprep.subr.mxu0 0.0
    %325 = vmatpush1.msra.mxu0 0.0
    %326 = vmatprep.subr.mxu0 0.0
    %327 = vmatpush1.msra.mxu0 0.0
    %328 = vmatprep.subr.mxu0 0.0
    %329 = vmatpush1.msra.mxu0 0.0
    %330 = vmatprep.mubr.f32.mxu0 0.0
    %331 = vmatmul.mubr.f32.gmra.mrb[0].mxu0 %v255
    %v332 = vpop.f32.mrb[0].mxu0
    %v333 = vadd.f32 0.0, %v332
    %v334 = vpop.f32.mrb[0].mxu0
    %335 = vmatprep.mubr.f32.mxu0 0.0
    %336 = vmatmul.mubr.f32.gmra.mrb[0].mxu0 %v258
    %v337 = vpop.f32.mrb[0].mxu0
    %v338 = vadd.f32 0.0, %v337
    %v339 = vpop.f32.mrb[0].mxu0
    %340 = vmatprep.mubr.f32.mxu0 0.0
    %341 = vmatmul.mubr.f32.gmra.mrb[0].mxu0 %v261
    %v342 = vpop.f32.mrb[0].mxu0
    %v343 = vadd.f32 0.0, %v342
    %v344 = vpop.f32.mrb[0].mxu0
    %345 = vmatprep.mubr.f32.mxu0 0.0
    %346 = vmatmul.mubr.f32.gmra.mrb[0].mxu0 %v264
    %v347 = vpop.f32.mrb[0].mxu0
    %v348 = vadd.f32 0.0, %v347
    %v349 = vpop.f32.mrb[0].mxu0
    %350 = vdwg.mxu0
    %v351 = vld [vmem:[#allocation10] sm:$0xff]
    %v352 = vld [vmem:[#allocation10 + $0x8] sm:$0xff]
    %v353 = vld [vmem:[#allocation10 + $0x10] sm:$0xff]
    %v354 = vld [vmem:[#allocation10 + $0x18] sm:$0xff]
    %355 = vmatprep.subr.mxu0 0.0
    %356 = vmatpush1.msra.mxu0 %v351
    %357 = vmatprep.subr.mxu0 0.0
    %358 = vmatpush1.msra.mxu0 %v352
    %359 = vmatprep.subr.mxu0 0.0
    %360 = vmatpush1.msra.mxu0 %v353
    %361 = vmatprep.subr.mxu0 0.0
    %362 = vmatpush1.msra.mxu0 %v354
    %363 = vmatprep.subr.mxu0 0.0
    %364 = vmatpush1.msra.mxu0 0.0
    %365 = vmatprep.subr.mxu0 0.0
    %366 = vmatpush1.msra.mxu0 0.0
    %367 = vmatprep.subr.mxu0 0.0
    %368 = vmatpush1.msra.mxu0 0.0
    %369 = vmatprep.subr.mxu0 0.0
    %370 = vmatpush1.msra.mxu0 0.0
    %371 = vmatprep.subr.mxu0 0.0
    %372 = vmatpush1.msra.mxu0 0.0
    %373 = vmatprep.subr.mxu0 0.0
    %374 = vmatpush1.msra.mxu0 0.0
    %375 = vmatprep.subr.mxu0 0.0
    %376 = vmatpush1.msra.mxu0 0.0
    %377 = vmatprep.subr.mxu0 0.0
    %378 = vmatpush1.msra.mxu0 0.0
    %379 = vmatprep.subr.mxu0 0.0
    %380 = vmatpush1.msra.mxu0 0.0
    %381 = vmatprep.subr.mxu0 0.0
    %382 = vmatpush1.msra.mxu0 0.0
    %383 = vmatprep.subr.mxu0 0.0
    %384 = vmatpush1.msra.mxu0 0.0
    %385 = vmatprep.subr.mxu0 0.0
    %386 = vmatpush1.msra.mxu0 0.0
    %387 = vmatprep.subr.mxu0 0.0
    %388 = vmatpush1.msra.mxu0 0.0
    %389 = vmatprep.subr.mxu0 0.0
    %390 = vmatpush1.msra.mxu0 0.0
    %391 = vmatprep.subr.mxu0 0.0
    %392 = vmatpush1.msra.mxu0 0.0
    %393 = vmatprep.subr.mxu0 0.0
    %394 = vmatpush1.msra.mxu0 0.0
    %395 = vmatprep.subr.mxu0 0.0
    %396 = vmatpush1.msra.mxu0 0.0
    %397 = vmatprep.subr.mxu0 0.0
    %398 = vmatpush1.msra.mxu0 0.0
    %399 = vmatprep.subr.mxu0 0.0
    %400 = vmatpush1.msra.mxu0 0.0
    %401 = vmatprep.subr.mxu0 0.0
    %402 = vmatpush1.msra.mxu0 0.0
    %403 = vmatprep.subr.mxu0 0.0
    %404 = vmatpush1.msra.mxu0 0.0
    %405 = vmatprep.subr.mxu0 0.0
    %406 = vmatpush1.msra.mxu0 0.0
    %407 = vmatprep.subr.mxu0 0.0
    %408 = vmatpush1.msra.mxu0 0.0
    %409 = vmatprep.subr.mxu0 0.0
    %410 = vmatpush1.msra.mxu0 0.0
    %411 = vmatprep.subr.mxu0 0.0
    %412 = vmatpush1.msra.mxu0 0.0
    %413 = vmatprep.subr.mxu0 0.0
    %414 = vmatpush1.msra.mxu0 0.0
    %415 = vmatprep.subr.mxu0 0.0
    %416 = vmatpush1.msra.mxu0 0.0
    %417 = vmatprep.subr.mxu0 0.0
    %418 = vmatpush1.msra.mxu0 0.0
    %419 = vmatprep.mubr.f32.mxu0 0.0
    %420 = vmatmul.mubr.f32.gmra.mrb[0].mxu0 %v255
    %v421 = vpop.f32.mrb[0].mxu0
    %v422 = vadd.f32 0.0, %v421
    %v423 = vpop.f32.mrb[0].mxu0
    %424 = vmatprep.mubr.f32.mxu0 0.0
    %425 = vmatmul.mubr.f32.gmra.mrb[0].mxu0 %v258
    %v426 = vpop.f32.mrb[0].mxu0
    %v427 = vadd.f32 0.0, %v426
    %v428 = vpop.f32.mrb[0].mxu0
    %429 = vmatprep.mubr.f32.mxu0 0.0
    %430 = vmatmul.mubr.f32.gmra.mrb[0].mxu0 %v261
    %v431 = vpop.f32.mrb[0].mxu0
    %v432 = vadd.f32 0.0, %v431
    %v433 = vpop.f32.mrb[0].mxu0
    %434 = vmatprep.mubr.f32.mxu0 0.0
    %435 = vmatmul.mubr.f32.gmra.mrb[0].mxu0 %v264
    %v436 = vpop.f32.mrb[0].mxu0
    %v437 = vadd.f32 0.0, %v436
    %v438 = vpop.f32.mrb[0].mxu0
    %439 = vdwg.mxu0
    %vm440 = vcmask 64512
    %v442 = vsel %vm440, %v242, 0
    %v445 = vsel %vm440, %v333, 0
    %v448 = vsel %vm440, %v338, 0
    %450 = vmatprep.subr.mxu0 0.0
    %451 = vmatpush1.xpose.msra.mxu0 %v445
    %452 = vmatprep.subr.mxu0 0.0
    %453 = vmatpush1.xpose.msra.mxu0 %v448
    %454 = vmatprep.subr.mxu0 0.0
    %455 = vmatpush1.xpose.msra.mxu0 0.0
    %456 = vmatprep.subr.mxu0 0.0
    %457 = vmatpush1.xpose.msra.mxu0 0.0
    %458 = vmatprep.subr.mxu0 0.0
    %459 = vmatpush1.xpose.msra.mxu0 0.0
    %460 = vmatprep.subr.mxu0 0.0
    %461 = vmatpush1.xpose.msra.mxu0 0.0
    %462 = vmatprep.subr.mxu0 0.0
    %463 = vmatpush1.xpose.msra.mxu0 0.0
    %464 = vmatprep.subr.mxu0 0.0
    %465 = vmatpush1.xpose.msra.mxu0 0.0
    %466 = vmatprep.subr.mxu0 0.0
    %467 = vmatpush1.xpose.msra.mxu0 0.0
    %468 = vmatprep.subr.mxu0 0.0
    %469 = vmatpush1.xpose.msra.mxu0 0.0
    %470 = vmatprep.subr.mxu0 0.0
    %471 = vmatpush1.xpose.msra.mxu0 0.0
    %472 = vmatprep.subr.mxu0 0.0
    %473 = vmatpush1.xpose.msra.mxu0 0.0
    %474 = vmatprep.subr.mxu0 0.0
    %475 = vmatpush1.xpose.msra.mxu0 0.0
    %476 = vmatprep.subr.mxu0 0.0
    %477 = vmatpush1.xpose.msra.mxu0 0.0
    %478 = vmatprep.subr.mxu0 0.0
    %479 = vmatpush1.xpose.msra.mxu0 0.0
    %480 = vmatprep.subr.mxu0 0.0
    %481 = vmatpush1.xpose.msra.mxu0 0.0
    %482 = vmatprep.subr.mxu0 0.0
    %483 = vmatpush1.xpose.msra.mxu0 0.0
    %484 = vmatprep.subr.mxu0 0.0
    %485 = vmatpush1.xpose.msra.mxu0 0.0
    %486 = vmatprep.subr.mxu0 0.0
    %487 = vmatpush1.xpose.msra.mxu0 0.0
    %488 = vmatprep.subr.mxu0 0.0
    %489 = vmatpush1.xpose.msra.mxu0 0.0
    %490 = vmatprep.subr.mxu0 0.0
    %491 = vmatpush1.xpose.msra.mxu0 0.0
    %492 = vmatprep.subr.mxu0 0.0
    %493 = vmatpush1.xpose.msra.mxu0 0.0
    %494 = vmatprep.subr.mxu0 0.0
    %495 = vmatpush1.xpose.msra.mxu0 0.0
    %496 = vmatprep.subr.mxu0 0.0
    %497 = vmatpush1.xpose.msra.mxu0 0.0
    %498 = vmatprep.subr.mxu0 0.0
    %499 = vmatpush1.xpose.msra.mxu0 0.0
    %500 = vmatprep.subr.mxu0 0.0
    %501 = vmatpush1.xpose.msra.mxu0 0.0
    %502 = vmatprep.subr.mxu0 0.0
    %503 = vmatpush1.xpose.msra.mxu0 0.0
    %504 = vmatprep.subr.mxu0 0.0
    %505 = vmatpush1.xpose.msra.mxu0 0.0
    %506 = vmatprep.subr.mxu0 0.0
    %507 = vmatpush1.xpose.msra.mxu0 0.0
    %508 = vmatprep.subr.mxu0 0.0
    %509 = vmatpush1.xpose.msra.mxu0 0.0
    %510 = vmatprep.subr.mxu0 0.0
    %511 = vmatpush1.xpose.msra.mxu0 0.0
    %512 = vmatprep.subr.mxu0 0.0
    %513 = vmatpush1.xpose.msra.mxu0 0.0
    %514 = vmatprep.mubr.f32.mxu0 0.0
    %515 = vmatmul.mubr.f32.gmra.mrb[0].mxu0 %v442
    %v516 = vpop.f32.mrb[0].mxu0
    %v517 = vadd.f32 0.0, %v516
    %v518 = vpop.f32.mrb[0].mxu0
    %519 = vdwg.mxu0
    %v521 = vsel %vm440, %v247, 0
    %v524 = vsel %vm440, %v343, 0
    %v527 = vsel %vm440, %v348, 0
    %529 = vmatprep.subr.mxu0 0.0
    %530 = vmatpush1.xpose.msra.mxu0 %v524
    %531 = vmatprep.subr.mxu0 0.0
    %532 = vmatpush1.xpose.msra.mxu0 %v527
    %533 = vmatprep.subr.mxu0 0.0
    %534 = vmatpush1.xpose.msra.mxu0 0.0
    %535 = vmatprep.subr.mxu0 0.0
    %536 = vmatpush1.xpose.msra.mxu0 0.0
    %537 = vmatprep.subr.mxu0 0.0
    %538 = vmatpush1.xpose.msra.mxu0 0.0
    %539 = vmatprep.subr.mxu0 0.0
    %540 = vmatpush1.xpose.msra.mxu0 0.0
    %541 = vmatprep.subr.mxu0 0.0
    %542 = vmatpush1.xpose.msra.mxu0 0.0
    %543 = vmatprep.subr.mxu0 0.0
    %544 = vmatpush1.xpose.msra.mxu0 0.0
    %545 = vmatprep.subr.mxu0 0.0
    %546 = vmatpush1.xpose.msra.mxu0 0.0
    %547 = vmatprep.subr.mxu0 0.0
    %548 = vmatpush1.xpose.msra.mxu0 0.0
    %549 = vmatprep.subr.mxu0 0.0
    %550 = vmatpush1.xpose.msra.mxu0 0.0
    %551 = vmatprep.subr.mxu0 0.0
    %552 = vmatpush1.xpose.msra.mxu0 0.0
    %553 = vmatprep.subr.mxu0 0.0
    %554 = vmatpush1.xpose.msra.mxu0 0.0
    %555 = vmatprep.subr.mxu0 0.0
    %556 = vmatpush1.xpose.msra.mxu0 0.0
    %557 = vmatprep.subr.mxu0 0.0
    %558 = vmatpush1.xpose.msra.mxu0 0.0
    %559 = vmatprep.subr.mxu0 0.0
    %560 = vmatpush1.xpose.msra.mxu0 0.0
    %561 = vmatprep.subr.mxu0 0.0
    %562 = vmatpush1.xpose.msra.mxu0 0.0
    %563 = vmatprep.subr.mxu0 0.0
    %564 = vmatpush1.xpose.msra.mxu0 0.0
    %565 = vmatprep.subr.mxu0 0.0
    %566 = vmatpush1.xpose.msra.mxu0 0.0
    %567 = vmatprep.subr.mxu0 0.0
    %568 = vmatpush1.xpose.msra.mxu0 0.0
    %569 = vmatprep.subr.mxu0 0.0
    %570 = vmatpush1.xpose.msra.mxu0 0.0
    %571 = vmatprep.subr.mxu0 0.0
    %572 = vmatpush1.xpose.msra.mxu0 0.0
    %573 = vmatprep.subr.mxu0 0.0
    %574 = vmatpush1.xpose.msra.mxu0 0.0
    %575 = vmatprep.subr.mxu0 0.0
    %576 = vmatpush1.xpose.msra.mxu0 0.0
    %577 = vmatprep.subr.mxu0 0.0
    %578 = vmatpush1.xpose.msra.mxu0 0.0
    %579 = vmatprep.subr.mxu0 0.0
    %580 = vmatpush1.xpose.msra.mxu0 0.0
    %581 = vmatprep.subr.mxu0 0.0
    %582 = vmatpush1.xpose.msra.mxu0 0.0
    %583 = vmatprep.subr.mxu0 0.0
    %584 = vmatpush1.xpose.msra.mxu0 0.0
    %585 = vmatprep.subr.mxu0 0.0
    %586 = vmatpush1.xpose.msra.mxu0 0.0
    %587 = vmatprep.subr.mxu0 0.0
    %588 = vmatpush1.xpose.msra.mxu0 0.0
    %589 = vmatprep.subr.mxu0 0.0
    %590 = vmatpush1.xpose.msra.mxu0 0.0
    %591 = vmatprep.subr.mxu0 0.0
    %592 = vmatpush1.xpose.msra.mxu0 0.0
    %593 = vmatprep.mubr.f32.mxu0 0.0
    %594 = vmatmul.mubr.f32.gmra.mrb[0].mxu0 %v521
    %v595 = vpop.f32.mrb[0].mxu0
    %v596 = vadd.f32 0.0, %v595
    %v597 = vpop.f32.mrb[0].mxu0
    %598 = vdwg.mxu0
    %vm599 = vcmask 130048
    %v600 = vsel %vm599, %v517, -inf
    %601 = vmax.xlane.f32.xlu0 %v600
    %v602 = vpop.xlane.xlu0 %601
    %v603 = vsel %vm599, %v596, -inf
    %604 = vmax.xlane.f32.xlu0 %v603
    %v605 = vpop.xlane.xlu0 %604
    %v606 = vsub.f32 %v517, %v602
    %v607 = vsub.f32 %v596, %v605
    %v608 = vmul.f32 %v606, 1.442695
    %v609 = vpow.pop %v608
    %v610 = vmul.f32 %v607, 1.442695
    %v611 = vpow.pop %v610
    %v612 = vsel %vm599, %v609, 0.0
    %613 = vadd.xlane.f32.xlu0 %v612
    %v614 = vpop.xlane.xlu0 %613
    %v615 = vsel %vm599, %v611, 0.0
    %616 = vadd.xlane.f32.xlu0 %v615
    %v617 = vpop.xlane.xlu0 %616
    %v618 = vrcp.pop %v614
    %v619 = vrcp.pop %v617
    %v620 = vmul.f32 %v609, %v618
    %v621 = vmul.f32 %v611, %v619
    %v623 = vsel %vm599, %v620, 0
    %625 = vmatprep.subr.mxu0 0.0
    %626 = vmatpush1.msra.mxu0 %v422
    %627 = vmatprep.subr.mxu0 0.0
    %628 = vmatpush1.msra.mxu0 %v427
    %629 = vmatprep.subr.mxu0 0.0
    %630 = vmatpush1.msra.mxu0 0.0
    %631 = vmatprep.subr.mxu0 0.0
    %632 = vmatpush1.msra.mxu0 0.0
    %633 = vmatprep.subr.mxu0 0.0
    %634 = vmatpush1.msra.mxu0 0.0
    %635 = vmatprep.subr.mxu0 0.0
    %636 = vmatpush1.msra.mxu0 0.0
    %637 = vmatprep.subr.mxu0 0.0
    %638 = vmatpush1.msra.mxu0 0.0
    %639 = vmatprep.subr.mxu0 0.0
    %640 = vmatpush1.msra.mxu0 0.0
    %641 = vmatprep.subr.mxu0 0.0
    %642 = vmatpush1.msra.mxu0 0.0
    %643 = vmatprep.subr.mxu0 0.0
    %644 = vmatpush1.msra.mxu0 0.0
    %645 = vmatprep.subr.mxu0 0.0
    %646 = vmatpush1.msra.mxu0 0.0
    %647 = vmatprep.subr.mxu0 0.0
    %648 = vmatpush1.msra.mxu0 0.0
    %649 = vmatprep.subr.mxu0 0.0
    %650 = vmatpush1.msra.mxu0 0.0
    %651 = vmatprep.subr.mxu0 0.0
    %652 = vmatpush1.msra.mxu0 0.0
    %653 = vmatprep.subr.mxu0 0.0
    %654 = vmatpush1.msra.mxu0 0.0
    %655 = vmatprep.subr.mxu0 0.0
    %656 = vmatpush1.msra.mxu0 0.0
    %657 = vmatprep.subr.mxu0 0.0
    %658 = vmatpush1.msra.mxu0 0.0
    %659 = vmatprep.subr.mxu0 0.0
    %660 = vmatpush1.msra.mxu0 0.0
    %661 = vmatprep.subr.mxu0 0.0
    %662 = vmatpush1.msra.mxu0 0.0
    %663 = vmatprep.subr.mxu0 0.0
    %664 = vmatpush1.msra.mxu0 0.0
    %665 = vmatprep.subr.mxu0 0.0
    %666 = vmatpush1.msra.mxu0 0.0
    %667 = vmatprep.subr.mxu0 0.0
    %668 = vmatpush1.msra.mxu0 0.0
    %669 = vmatprep.subr.mxu0 0.0
    %670 = vmatpush1.msra.mxu0 0.0
    %671 = vmatprep.subr.mxu0 0.0
    %672 = vmatpush1.msra.mxu0 0.0
    %673 = vmatprep.subr.mxu0 0.0
    %674 = vmatpush1.msra.mxu0 0.0
    %675 = vmatprep.subr.mxu0 0.0
    %676 = vmatpush1.msra.mxu0 0.0
    %677 = vmatprep.subr.mxu0 0.0
    %678 = vmatpush1.msra.mxu0 0.0
    %679 = vmatprep.subr.mxu0 0.0
    %680 = vmatpush1.msra.mxu0 0.0
    %681 = vmatprep.subr.mxu0 0.0
    %682 = vmatpush1.msra.mxu0 0.0
    %683 = vmatprep.subr.mxu0 0.0
    %684 = vmatpush1.msra.mxu0 0.0
    %685 = vmatprep.subr.mxu0 0.0
    %686 = vmatpush1.msra.mxu0 0.0
    %687 = vmatprep.subr.mxu0 0.0
    %688 = vmatpush1.msra.mxu0 0.0
    %689 = vmatprep.mubr.f32.mxu0 0.0
    %690 = vmatmul.mubr.f32.gmra.mrb[0].mxu0 %v623
    %v691 = vpop.f32.mrb[0].mxu0
    %v692 = vadd.f32 0.0, %v691
    %v693 = vpop.f32.mrb[0].mxu0
    %694 = vdwg.mxu0
    %v696 = vsel %vm599, %v621, 0
    %698 = vmatprep.subr.mxu0 0.0
    %699 = vmatpush1.msra.mxu0 %v432
    %700 = vmatprep.subr.mxu0 0.0
    %701 = vmatpush1.msra.mxu0 %v437
    %702 = vmatprep.subr.mxu0 0.0
    %703 = vmatpush1.msra.mxu0 0.0
    %704 = vmatprep.subr.mxu0 0.0
    %705 = vmatpush1.msra.mxu0 0.0
    %706 = vmatprep.subr.mxu0 0.0
    %707 = vmatpush1.msra.mxu0 0.0
    %708 = vmatprep.subr.mxu0 0.0
    %709 = vmatpush1.msra.mxu0 0.0
    %710 = vmatprep.subr.mxu0 0.0
    %711 = vmatpush1.msra.mxu0 0.0
    %712 = vmatprep.subr.mxu0 0.0
    %713 = vmatpush1.msra.mxu0 0.0
    %714 = vmatprep.subr.mxu0 0.0
    %715 = vmatpush1.msra.mxu0 0.0
    %716 = vmatprep.subr.mxu0 0.0
    %717 = vmatpush1.msra.mxu0 0.0
    %718 = vmatprep.subr.mxu0 0.0
    %719 = vmatpush1.msra.mxu0 0.0
    %720 = vmatprep.subr.mxu0 0.0
    %721 = vmatpush1.msra.mxu0 0.0
    %722 = vmatprep.subr.mxu0 0.0
    %723 = vmatpush1.msra.mxu0 0.0
    %724 = vmatprep.subr.mxu0 0.0
    %725 = vmatpush1.msra.mxu0 0.0
    %726 = vmatprep.subr.mxu0 0.0
    %727 = vmatpush1.msra.mxu0 0.0
    %728 = vmatprep.subr.mxu0 0.0
    %729 = vmatpush1.msra.mxu0 0.0
    %730 = vmatprep.subr.mxu0 0.0
    %731 = vmatpush1.msra.mxu0 0.0
    %732 = vmatprep.subr.mxu0 0.0
    %733 = vmatpush1.msra.mxu0 0.0
    %734 = vmatprep.subr.mxu0 0.0
    %735 = vmatpush1.msra.mxu0 0.0
    %736 = vmatprep.subr.mxu0 0.0
    %737 = vmatpush1.msra.mxu0 0.0
    %738 = vmatprep.subr.mxu0 0.0
    %739 = vmatpush1.msra.mxu0 0.0
    %740 = vmatprep.subr.mxu0 0.0
    %741 = vmatpush1.msra.mxu0 0.0
    %742 = vmatprep.subr.mxu0 0.0
    %743 = vmatpush1.msra.mxu0 0.0
    %744 = vmatprep.subr.mxu0 0.0
    %745 = vmatpush1.msra.mxu0 0.0
    %746 = vmatprep.subr.mxu0 0.0
    %747 = vmatpush1.msra.mxu0 0.0
    %748 = vmatprep.subr.mxu0 0.0
    %749 = vmatpush1.msra.mxu0 0.0
    %750 = vmatprep.subr.mxu0 0.0
    %751 = vmatpush1.msra.mxu0 0.0
    %752 = vmatprep.subr.mxu0 0.0
    %753 = vmatpush1.msra.mxu0 0.0
    %754 = vmatprep.subr.mxu0 0.0
    %755 = vmatpush1.msra.mxu0 0.0
    %756 = vmatprep.subr.mxu0 0.0
    %757 = vmatpush1.msra.mxu0 0.0
    %758 = vmatprep.subr.mxu0 0.0
    %759 = vmatpush1.msra.mxu0 0.0
    %760 = vmatprep.subr.mxu0 0.0
    %761 = vmatpush1.msra.mxu0 0.0
    %762 = vmatprep.mubr.f32.mxu0 0.0
    %763 = vmatmul.mubr.f32.gmra.mrb[0].mxu0 %v696
    %v764 = vpop.f32.mrb[0].mxu0
    %v765 = vadd.f32 0.0, %v764
    %v766 = vpop.f32.mrb[0].mxu0
    %767 = vdwg.mxu0
    %768 = vrot.lane.b32.xlu0 %v242, 120
    %v769 = vpop.permute.xlu0 %768
    %770 = vrot.lane.b32.xlu0 %v333, 120
    %v771 = vpop.permute.xlu0 %770
    %772 = vrot.lane.b32.xlu0 %v338, 120
    %v773 = vpop.permute.xlu0 %772
    %v774 = vsel %vm440, %v769, 0
    %v776 = vsel %vm440, %v771, 0
    %v778 = vsel %vm440, %v773, 0
    %780 = vmatprep.subr.mxu0 0.0
    %781 = vmatpush1.xpose.msra.mxu0 %v776
    %782 = vmatprep.subr.mxu0 0.0
    %783 = vmatpush1.xpose.msra.mxu0 %v778
    %784 = vmatprep.subr.mxu0 0.0
    %785 = vmatpush1.xpose.msra.mxu0 0.0
    %786 = vmatprep.subr.mxu0 0.0
    %787 = vmatpush1.xpose.msra.mxu0 0.0
    %788 = vmatprep.subr.mxu0 0.0
    %789 = vmatpush1.xpose.msra.mxu0 0.0
    %790 = vmatprep.subr.mxu0 0.0
    %791 = vmatpush1.xpose.msra.mxu0 0.0
    %792 = vmatprep.subr.mxu0 0.0
    %793 = vmatpush1.xpose.msra.mxu0 0.0
    %794 = vmatprep.subr.mxu0 0.0
    %795 = vmatpush1.xpose.msra.mxu0 0.0
    %796 = vmatprep.subr.mxu0 0.0
    %797 = vmatpush1.xpose.msra.mxu0 0.0
    %798 = vmatprep.subr.mxu0 0.0
    %799 = vmatpush1.xpose.msra.mxu0 0.0
    %800 = vmatprep.subr.mxu0 0.0
    %801 = vmatpush1.xpose.msra.mxu0 0.0
    %802 = vmatprep.subr.mxu0 0.0
    %803 = vmatpush1.xpose.msra.mxu0 0.0
    %804 = vmatprep.subr.mxu0 0.0
    %805 = vmatpush1.xpose.msra.mxu0 0.0
    %806 = vmatprep.subr.mxu0 0.0
    %807 = vmatpush1.xpose.msra.mxu0 0.0
    %808 = vmatprep.subr.mxu0 0.0
    %809 = vmatpush1.xpose.msra.mxu0 0.0
    %810 = vmatprep.subr.mxu0 0.0
    %811 = vmatpush1.xpose.msra.mxu0 0.0
    %812 = vmatprep.subr.mxu0 0.0
    %813 = vmatpush1.xpose.msra.mxu0 0.0
    %814 = vmatprep.subr.mxu0 0.0
    %815 = vmatpush1.xpose.msra.mxu0 0.0
    %816 = vmatprep.subr.mxu0 0.0
    %817 = vmatpush1.xpose.msra.mxu0 0.0
    %818 = vmatprep.subr.mxu0 0.0
    %819 = vmatpush1.xpose.msra.mxu0 0.0
    %820 = vmatprep.subr.mxu0 0.0
    %821 = vmatpush1.xpose.msra.mxu0 0.0
    %822 = vmatprep.subr.mxu0 0.0
    %823 = vmatpush1.xpose.msra.mxu0 0.0
    %824 = vmatprep.subr.mxu0 0.0
    %825 = vmatpush1.xpose.msra.mxu0 0.0
    %826 = vmatprep.subr.mxu0 0.0
    %827 = vmatpush1.xpose.msra.mxu0 0.0
    %828 = vmatprep.subr.mxu0 0.0
    %829 = vmatpush1.xpose.msra.mxu0 0.0
    %830 = vmatprep.subr.mxu0 0.0
    %831 = vmatpush1.xpose.msra.mxu0 0.0
    %832 = vmatprep.subr.mxu0 0.0
    %833 = vmatpush1.xpose.msra.mxu0 0.0
    %834 = vmatprep.subr.mxu0 0.0
    %835 = vmatpush1.xpose.msra.mxu0 0.0
    %836 = vmatprep.subr.mxu0 0.0
    %837 = vmatpush1.xpose.msra.mxu0 0.0
    %838 = vmatprep.subr.mxu0 0.0
    %839 = vmatpush1.xpose.msra.mxu0 0.0
    %840 = vmatprep.subr.mxu0 0.0
    %841 = vmatpush1.xpose.msra.mxu0 0.0
    %842 = vmatprep.subr.mxu0 0.0
    %843 = vmatpush1.xpose.msra.mxu0 0.0
    %844 = vmatprep.mubr.f32.mxu0 0.0
    %845 = vmatmul.mubr.f32.gmra.mrb[0].mxu0 %v774
    %v846 = vpop.f32.mrb[0].mxu0
    %v847 = vadd.f32 0.0, %v846
    %v848 = vpop.f32.mrb[0].mxu0
    %849 = vdwg.mxu0
    %850 = vrot.lane.b32.xlu0 %v247, 120
    %v851 = vpop.permute.xlu0 %850
    %852 = vrot.lane.b32.xlu0 %v343, 120
    %v853 = vpop.permute.xlu0 %852
    %854 = vrot.lane.b32.xlu0 %v348, 120
    %v855 = vpop.permute.xlu0 %854
    %v856 = vsel %vm440, %v851, 0
    %v858 = vsel %vm440, %v853, 0
    %v860 = vsel %vm440, %v855, 0
    %862 = vmatprep.subr.mxu0 0.0
    %863 = vmatpush1.xpose.msra.mxu0 %v858
    %864 = vmatprep.subr.mxu0 0.0
    %865 = vmatpush1.xpose.msra.mxu0 %v860
    %866 = vmatprep.subr.mxu0 0.0
    %867 = vmatpush1.xpose.msra.mxu0 0.0
    %868 = vmatprep.subr.mxu0 0.0
    %869 = vmatpush1.xpose.msra.mxu0 0.0
    %870 = vmatprep.subr.mxu0 0.0
    %871 = vmatpush1.xpose.msra.mxu0 0.0
    %872 = vmatprep.subr.mxu0 0.0
    %873 = vmatpush1.xpose.msra.mxu0 0.0
    %874 = vmatprep.subr.mxu0 0.0
    %875 = vmatpush1.xpose.msra.mxu0 0.0
    %876 = vmatprep.subr.mxu0 0.0
    %877 = vmatpush1.xpose.msra.mxu0 0.0
    %878 = vmatprep.subr.mxu0 0.0
    %879 = vmatpush1.xpose.msra.mxu0 0.0
    %880 = vmatprep.subr.mxu0 0.0
    %881 = vmatpush1.xpose.msra.mxu0 0.0
    %882 = vmatprep.subr.mxu0 0.0
    %883 = vmatpush1.xpose.msra.mxu0 0.0
    %884 = vmatprep.subr.mxu0 0.0
    %885 = vmatpush1.xpose.msra.mxu0 0.0
    %886 = vmatprep.subr.mxu0 0.0
    %887 = vmatpush1.xpose.msra.mxu0 0.0
    %888 = vmatprep.subr.mxu0 0.0
    %889 = vmatpush1.xpose.msra.mxu0 0.0
    %890 = vmatprep.subr.mxu0 0.0
    %891 = vmatpush1.xpose.msra.mxu0 0.0
    %892 = vmatprep.subr.mxu0 0.0
    %893 = vmatpush1.xpose.msra.mxu0 0.0
    %894 = vmatprep.subr.mxu0 0.0
    %895 = vmatpush1.xpose.msra.mxu0 0.0
    %896 = vmatprep.subr.mxu0 0.0
    %897 = vmatpush1.xpose.msra.mxu0 0.0
    %898 = vmatprep.subr.mxu0 0.0
    %899 = vmatpush1.xpose.msra.mxu0 0.0
    %900 = vmatprep.subr.mxu0 0.0
    %901 = vmatpush1.xpose.msra.mxu0 0.0
    %902 = vmatprep.subr.mxu0 0.0
    %903 = vmatpush1.xpose.msra.mxu0 0.0
    %904 = vmatprep.subr.mxu0 0.0
    %905 = vmatpush1.xpose.msra.mxu0 0.0
    %906 = vmatprep.subr.mxu0 0.0
    %907 = vmatpush1.xpose.msra.mxu0 0.0
    %908 = vmatprep.subr.mxu0 0.0
    %909 = vmatpush1.xpose.msra.mxu0 0.0
    %910 = vmatprep.subr.mxu0 0.0
    %911 = vmatpush1.xpose.msra.mxu0 0.0
    %912 = vmatprep.subr.mxu0 0.0
    %913 = vmatpush1.xpose.msra.mxu0 0.0
    %914 = vmatprep.subr.mxu0 0.0
    %915 = vmatpush1.xpose.msra.mxu0 0.0
    %916 = vmatprep.subr.mxu0 0.0
    %917 = vmatpush1.xpose.msra.mxu0 0.0
    %918 = vmatprep.subr.mxu0 0.0
    %919 = vmatpush1.xpose.msra.mxu0 0.0
    %920 = vmatprep.subr.mxu0 0.0
    %921 = vmatpush1.xpose.msra.mxu0 0.0
    %922 = vmatprep.subr.mxu0 0.0
    %923 = vmatpush1.xpose.msra.mxu0 0.0
    %924 = vmatprep.subr.mxu0 0.0
    %925 = vmatpush1.xpose.msra.mxu0 0.0
    %926 = vmatprep.mubr.f32.mxu0 0.0
    %927 = vmatmul.mubr.f32.gmra.mrb[0].mxu0 %v856
    %v928 = vpop.f32.mrb[0].mxu0
    %v929 = vadd.f32 0.0, %v928
    %v930 = vpop.f32.mrb[0].mxu0
    %931 = vdwg.mxu0
    %v932 = vsel %vm599, %v847, -inf
    %933 = vmax.xlane.f32.xlu0 %v932
    %v934 = vpop.xlane.xlu0 %933
    %v935 = vsel %vm599, %v929, -inf
    %936 = vmax.xlane.f32.xlu0 %v935
    %v937 = vpop.xlane.xlu0 %936
    %v938 = vsub.f32 %v847, %v934
    %v939 = vsub.f32 %v929, %v937
    %v940 = vmul.f32 %v938, 1.442695
    %v941 = vpow.pop %v940
    %v942 = vmul.f32 %v939, 1.442695
    %v943 = vpow.pop %v942
    %v944 = vsel %vm599, %v941, 0.0
    %945 = vadd.xlane.f32.xlu0 %v944
    %v946 = vpop.xlane.xlu0 %945
    %v947 = vsel %vm599, %v943, 0.0
    %948 = vadd.xlane.f32.xlu0 %v947
    %v949 = vpop.xlane.xlu0 %948
    %v950 = vrcp.pop %v946
    %v951 = vrcp.pop %v949
    %v952 = vmul.f32 %v941, %v950
    %v953 = vmul.f32 %v943, %v951
    %956 = vrot.lane.b32.xlu0 %v422, 120
    %v957 = vpop.permute.xlu0 %956
    %958 = vrot.lane.b32.xlu0 %v427, 120
    %v959 = vpop.permute.xlu0 %958
    %v963 = vsel %vm599, %v952, 0
    %965 = vmatprep.subr.mxu0 0.0
    %966 = vmatpush1.msra.mxu0 %v957
    %967 = vmatprep.subr.mxu0 0.0
    %968 = vmatpush1.msra.mxu0 %v959
    %969 = vmatprep.subr.mxu0 0.0
    %970 = vmatpush1.msra.mxu0 0.0
    %971 = vmatprep.subr.mxu0 0.0
    %972 = vmatpush1.msra.mxu0 0.0
    %973 = vmatprep.subr.mxu0 0.0
    %974 = vmatpush1.msra.mxu0 0.0
    %975 = vmatprep.subr.mxu0 0.0
    %976 = vmatpush1.msra.mxu0 0.0
    %977 = vmatprep.subr.mxu0 0.0
    %978 = vmatpush1.msra.mxu0 0.0
    %979 = vmatprep.subr.mxu0 0.0
    %980 = vmatpush1.msra.mxu0 0.0
    %981 = vmatprep.subr.mxu0 0.0
    %982 = vmatpush1.msra.mxu0 0.0
    %983 = vmatprep.subr.mxu0 0.0
    %984 = vmatpush1.msra.mxu0 0.0
    %985 = vmatprep.subr.mxu0 0.0
    %986 = vmatpush1.msra.mxu0 0.0
    %987 = vmatprep.subr.mxu0 0.0
    %988 = vmatpush1.msra.mxu0 0.0
    %989 = vmatprep.subr.mxu0 0.0
    %990 = vmatpush1.msra.mxu0 0.0
    %991 = vmatprep.subr.mxu0 0.0
    %992 = vmatpush1.msra.mxu0 0.0
    %993 = vmatprep.subr.mxu0 0.0
    %994 = vmatpush1.msra.mxu0 0.0
    %995 = vmatprep.subr.mxu0 0.0
    %996 = vmatpush1.msra.mxu0 0.0
    %997 = vmatprep.subr.mxu0 0.0
    %998 = vmatpush1.msra.mxu0 0.0
    %999 = vmatprep.subr.mxu0 0.0
    %1000 = vmatpush1.msra.mxu0 0.0
    %1001 = vmatprep.subr.mxu0 0.0
    %1002 = vmatpush1.msra.mxu0 0.0
    %1003 = vmatprep.subr.mxu0 0.0
    %1004 = vmatpush1.msra.mxu0 0.0
    %1005 = vmatprep.subr.mxu0 0.0
    %1006 = vmatpush1.msra.mxu0 0.0
    %1007 = vmatprep.subr.mxu0 0.0
    %1008 = vmatpush1.msra.mxu0 0.0
    %1009 = vmatprep.subr.mxu0 0.0
    %1010 = vmatpush1.msra.mxu0 0.0
    %1011 = vmatprep.subr.mxu0 0.0
    %1012 = vmatpush1.msra.mxu0 0.0
    %1013 = vmatprep.subr.mxu0 0.0
    %1014 = vmatpush1.msra.mxu0 0.0
    %1015 = vmatprep.subr.mxu0 0.0
    %1016 = vmatpush1.msra.mxu0 0.0
    %1017 = vmatprep.subr.mxu0 0.0
    %1018 = vmatpush1.msra.mxu0 0.0
    %1019 = vmatprep.subr.mxu0 0.0
    %1020 = vmatpush1.msra.mxu0 0.0
    %1021 = vmatprep.subr.mxu0 0.0
    %1022 = vmatpush1.msra.mxu0 0.0
    %1023 = vmatprep.subr.mxu0 0.0
    %1024 = vmatpush1.msra.mxu0 0.0
    %1025 = vmatprep.subr.mxu0 0.0
    %1026 = vmatpush1.msra.mxu0 0.0
    %1027 = vmatprep.subr.mxu0 0.0
    %1028 = vmatpush1.msra.mxu0 0.0
    %1029 = vmatprep.mubr.f32.mxu0 0.0
    %1030 = vmatmul.mubr.f32.gmra.mrb[0].mxu0 %v963
    %v1031 = vpop.f32.mrb[0].mxu0
    %v1032 = vadd.f32 0.0, %v1031
    %v1033 = vpop.f32.mrb[0].mxu0
    %1034 = vdwg.mxu0
    %1037 = vrot.lane.b32.xlu0 %v432, 120
    %v1038 = vpop.permute.xlu0 %1037
    %1039 = vrot.lane.b32.xlu0 %v437, 120
    %v1040 = vpop.permute.xlu0 %1039
    %v1044 = vsel %vm599, %v953, 0
    %1046 = vmatprep.subr.mxu0 0.0
    %1047 = vmatpush1.msra.mxu0 %v1038
    %1048 = vmatprep.subr.mxu0 0.0
    %1049 = vmatpush1.msra.mxu0 %v1040
    %1050 = vmatprep.subr.mxu0 0.0
    %1051 = vmatpush1.msra.mxu0 0.0
    %1052 = vmatprep.subr.mxu0 0.0
    %1053 = vmatpush1.msra.mxu0 0.0
    %1054 = vmatprep.subr.mxu0 0.0
    %1055 = vmatpush1.msra.mxu0 0.0
    %1056 = vmatprep.subr.mxu0 0.0
    %1057 = vmatpush1.msra.mxu0 0.0
    %1058 = vmatprep.subr.mxu0 0.0
    %1059 = vmatpush1.msra.mxu0 0.0
    %1060 = vmatprep.subr.mxu0 0.0
    %1061 = vmatpush1.msra.mxu0 0.0
    %1062 = vmatprep.subr.mxu0 0.0
    %1063 = vmatpush1.msra.mxu0 0.0
    %1064 = vmatprep.subr.mxu0 0.0
    %1065 = vmatpush1.msra.mxu0 0.0
    %1066 = vmatprep.subr.mxu0 0.0
    %1067 = vmatpush1.msra.mxu0 0.0
    %1068 = vmatprep.subr.mxu0 0.0
    %1069 = vmatpush1.msra.mxu0 0.0
    %1070 = vmatprep.subr.mxu0 0.0
    %1071 = vmatpush1.msra.mxu0 0.0
    %1072 = vmatprep.subr.mxu0 0.0
    %1073 = vmatpush1.msra.mxu0 0.0
    %1074 = vmatprep.subr.mxu0 0.0
    %1075 = vmatpush1.msra.mxu0 0.0
    %1076 = vmatprep.subr.mxu0 0.0
    %1077 = vmatpush1.msra.mxu0 0.0
    %1078 = vmatprep.subr.mxu0 0.0
    %1079 = vmatpush1.msra.mxu0 0.0
    %1080 = vmatprep.subr.mxu0 0.0
    %1081 = vmatpush1.msra.mxu0 0.0
    %1082 = vmatprep.subr.mxu0 0.0
    %1083 = vmatpush1.msra.mxu0 0.0
    %1084 = vmatprep.subr.mxu0 0.0
    %1085 = vmatpush1.msra.mxu0 0.0
    %1086 = vmatprep.subr.mxu0 0.0
    %1087 = vmatpush1.msra.mxu0 0.0
    %1088 = vmatprep.subr.mxu0 0.0
    %1089 = vmatpush1.msra.mxu0 0.0
    %1090 = vmatprep.subr.mxu0 0.0
    %1091 = vmatpush1.msra.mxu0 0.0
    %1092 = vmatprep.subr.mxu0 0.0
    %1093 = vmatpush1.msra.mxu0 0.0
    %1094 = vmatprep.subr.mxu0 0.0
    %1095 = vmatpush1.msra.mxu0 0.0
    %1096 = vmatprep.subr.mxu0 0.0
    %1097 = vmatpush1.msra.mxu0 0.0
    %1098 = vmatprep.subr.mxu0 0.0
    %1099 = vmatpush1.msra.mxu0 0.0
    %1100 = vmatprep.subr.mxu0 0.0
    %1101 = vmatpush1.msra.mxu0 0.0
    %1102 = vmatprep.subr.mxu0 0.0
    %1103 = vmatpush1.msra.mxu0 0.0
    %1104 = vmatprep.subr.mxu0 0.0
    %1105 = vmatpush1.msra.mxu0 0.0
    %1106 = vmatprep.subr.mxu0 0.0
    %1107 = vmatpush1.msra.mxu0 0.0
    %1108 = vmatprep.subr.mxu0 0.0
    %1109 = vmatpush1.msra.mxu0 0.0
    %1110 = vmatprep.mubr.f32.mxu0 0.0
    %1111 = vmatmul.mubr.f32.gmra.mrb[0].mxu0 %v1044
    %v1112 = vpop.f32.mrb[0].mxu0
    %v1113 = vadd.f32 0.0, %v1112
    %v1114 = vpop.f32.mrb[0].mxu0
    %1115 = vdwg.mxu0
    %1116 = vrot.lane.b32.xlu0 %v242, 112
    %v1117 = vpop.permute.xlu0 %1116
    %1118 = vrot.lane.b32.xlu0 %v333, 112
    %v1119 = vpop.permute.xlu0 %1118
    %1120 = vrot.lane.b32.xlu0 %v338, 112
    %v1121 = vpop.permute.xlu0 %1120
    %v1122 = vsel %vm440, %v1117, 0
    %v1124 = vsel %vm440, %v1119, 0
    %v1126 = vsel %vm440, %v1121, 0
    %1128 = vmatprep.subr.mxu0 0.0
    %1129 = vmatpush1.xpose.msra.mxu0 %v1124
    %1130 = vmatprep.subr.mxu0 0.0
    %1131 = vmatpush1.xpose.msra.mxu0 %v1126
    %1132 = vmatprep.subr.mxu0 0.0
    %1133 = vmatpush1.xpose.msra.mxu0 0.0
    %1134 = vmatprep.subr.mxu0 0.0
    %1135 = vmatpush1.xpose.msra.mxu0 0.0
    %1136 = vmatprep.subr.mxu0 0.0
    %1137 = vmatpush1.xpose.msra.mxu0 0.0
    %1138 = vmatprep.subr.mxu0 0.0
    %1139 = vmatpush1.xpose.msra.mxu0 0.0
    %1140 = vmatprep.subr.mxu0 0.0
    %1141 = vmatpush1.xpose.msra.mxu0 0.0
    %1142 = vmatprep.subr.mxu0 0.0
    %1143 = vmatpush1.xpose.msra.mxu0 0.0
    %1144 = vmatprep.subr.mxu0 0.0
    %1145 = vmatpush1.xpose.msra.mxu0 0.0
    %1146 = vmatprep.subr.mxu0 0.0
    %1147 = vmatpush1.xpose.msra.mxu0 0.0
    %1148 = vmatprep.subr.mxu0 0.0
    %1149 = vmatpush1.xpose.msra.mxu0 0.0
    %1150 = vmatprep.subr.mxu0 0.0
    %1151 = vmatpush1.xpose.msra.mxu0 0.0
    %1152 = vmatprep.subr.mxu0 0.0
    %1153 = vmatpush1.xpose.msra.mxu0 0.0
    %1154 = vmatprep.subr.mxu0 0.0
    %1155 = vmatpush1.xpose.msra.mxu0 0.0
    %1156 = vmatprep.subr.mxu0 0.0
    %1157 = vmatpush1.xpose.msra.mxu0 0.0
    %1158 = vmatprep.subr.mxu0 0.0
    %1159 = vmatpush1.xpose.msra.mxu0 0.0
    %1160 = vmatprep.subr.mxu0 0.0
    %1161 = vmatpush1.xpose.msra.mxu0 0.0
    %1162 = vmatprep.subr.mxu0 0.0
    %1163 = vmatpush1.xpose.msra.mxu0 0.0
    %1164 = vmatprep.subr.mxu0 0.0
    %1165 = vmatpush1.xpose.msra.mxu0 0.0
    %1166 = vmatprep.subr.mxu0 0.0
    %1167 = vmatpush1.xpose.msra.mxu0 0.0
    %1168 = vmatprep.subr.mxu0 0.0
    %1169 = vmatpush1.xpose.msra.mxu0 0.0
    %1170 = vmatprep.subr.mxu0 0.0
    %1171 = vmatpush1.xpose.msra.mxu0 0.0
    %1172 = vmatprep.subr.mxu0 0.0
    %1173 = vmatpush1.xpose.msra.mxu0 0.0
    %1174 = vmatprep.subr.mxu0 0.0
    %1175 = vmatpush1.xpose.msra.mxu0 0.0
    %1176 = vmatprep.subr.mxu0 0.0
    %1177 = vmatpush1.xpose.msra.mxu0 0.0
    %1178 = vmatprep.subr.mxu0 0.0
    %1179 = vmatpush1.xpose.msra.mxu0 0.0
    %1180 = vmatprep.subr.mxu0 0.0
    %1181 = vmatpush1.xpose.msra.mxu0 0.0
    %1182 = vmatprep.subr.mxu0 0.0
    %1183 = vmatpush1.xpose.msra.mxu0 0.0
    %1184 = vmatprep.subr.mxu0 0.0
    %1185 = vmatpush1.xpose.msra.mxu0 0.0
    %1186 = vmatprep.subr.mxu0 0.0
    %1187 = vmatpush1.xpose.msra.mxu0 0.0
    %1188 = vmatprep.subr.mxu0 0.0
    %1189 = vmatpush1.xpose.msra.mxu0 0.0
    %1190 = vmatprep.subr.mxu0 0.0
    %1191 = vmatpush1.xpose.msra.mxu0 0.0
    %1192 = vmatprep.mubr.f32.mxu0 0.0
    %1193 = vmatmul.mubr.f32.gmra.mrb[0].mxu0 %v1122
    %v1194 = vpop.f32.mrb[0].mxu0
    %v1195 = vadd.f32 0.0, %v1194
    %v1196 = vpop.f32.mrb[0].mxu0
    %1197 = vdwg.mxu0
    %1198 = vrot.lane.b32.xlu0 %v247, 112
    %v1199 = vpop.permute.xlu0 %1198
    %1200 = vrot.lane.b32.xlu0 %v343, 112
    %v1201 = vpop.permute.xlu0 %1200
    %1202 = vrot.lane.b32.xlu0 %v348, 112
    %v1203 = vpop.permute.xlu0 %1202
    %v1204 = vsel %vm440, %v1199, 0
    %v1206 = vsel %vm440, %v1201, 0
    %v1208 = vsel %vm440, %v1203, 0
    %1210 = vmatprep.subr.mxu0 0.0
    %1211 = vmatpush1.xpose.msra.mxu0 %v1206
    %1212 = vmatprep.subr.mxu0 0.0
    %1213 = vmatpush1.xpose.msra.mxu0 %v1208
    %1214 = vmatprep.subr.mxu0 0.0
    %1215 = vmatpush1.xpose.msra.mxu0 0.0
    %1216 = vmatprep.subr.mxu0 0.0
    %1217 = vmatpush1.xpose.msra.mxu0 0.0
    %1218 = vmatprep.subr.mxu0 0.0
    %1219 = vmatpush1.xpose.msra.mxu0 0.0
    %1220 = vmatprep.subr.mxu0 0.0
    %1221 = vmatpush1.xpose.msra.mxu0 0.0
    %1222 = vmatprep.subr.mxu0 0.0
    %1223 = vmatpush1.xpose.msra.mxu0 0.0
    %1224 = vmatprep.subr.mxu0 0.0
    %1225 = vmatpush1.xpose.msra.mxu0 0.0
    %1226 = vmatprep.subr.mxu0 0.0
    %1227 = vmatpush1.xpose.msra.mxu0 0.0
    %1228 = vmatprep.subr.mxu0 0.0
    %1229 = vmatpush1.xpose.msra.mxu0 0.0
    %1230 = vmatprep.subr.mxu0 0.0
    %1231 = vmatpush1.xpose.msra.mxu0 0.0
    %1232 = vmatprep.subr.mxu0 0.0
    %1233 = vmatpush1.xpose.msra.mxu0 0.0
    %1234 = vmatprep.subr.mxu0 0.0
    %1235 = vmatpush1.xpose.msra.mxu0 0.0
    %1236 = vmatprep.subr.mxu0 0.0
    %1237 = vmatpush1.xpose.msra.mxu0 0.0
    %1238 = vmatprep.subr.mxu0 0.0
    %1239 = vmatpush1.xpose.msra.mxu0 0.0
    %1240 = vmatprep.subr.mxu0 0.0
    %1241 = vmatpush1.xpose.msra.mxu0 0.0
    %1242 = vmatprep.subr.mxu0 0.0
    %1243 = vmatpush1.xpose.msra.mxu0 0.0
    %1244 = vmatprep.subr.mxu0 0.0
    %1245 = vmatpush1.xpose.msra.mxu0 0.0
    %1246 = vmatprep.subr.mxu0 0.0
    %1247 = vmatpush1.xpose.msra.mxu0 0.0
    %1248 = vmatprep.subr.mxu0 0.0
    %1249 = vmatpush1.xpose.msra.mxu0 0.0
    %1250 = vmatprep.subr.mxu0 0.0
    %1251 = vmatpush1.xpose.msra.mxu0 0.0
    %1252 = vmatprep.subr.mxu0 0.0
    %1253 = vmatpush1.xpose.msra.mxu0 0.0
    %1254 = vmatprep.subr.mxu0 0.0
    %1255 = vmatpush1.xpose.msra.mxu0 0.0
    %1256 = vmatprep.subr.mxu0 0.0
    %1257 = vmatpush1.xpose.msra.mxu0 0.0
    %1258 = vmatprep.subr.mxu0 0.0
    %1259 = vmatpush1.xpose.msra.mxu0 0.0
    %1260 = vmatprep.subr.mxu0 0.0
    %1261 = vmatpush1.xpose.msra.mxu0 0.0
    %1262 = vmatprep.subr.mxu0 0.0
    %1263 = vmatpush1.xpose.msra.mxu0 0.0
    %1264 = vmatprep.subr.mxu0 0.0
    %1265 = vmatpush1.xpose.msra.mxu0 0.0
    %1266 = vmatprep.subr.mxu0 0.0
    %1267 = vmatpush1.xpose.msra.mxu0 0.0
    %1268 = vmatprep.subr.mxu0 0.0
    %1269 = vmatpush1.xpose.msra.mxu0 0.0
    %1270 = vmatprep.subr.mxu0 0.0
    %1271 = vmatpush1.xpose.msra.mxu0 0.0
    %1272 = vmatprep.subr.mxu0 0.0
    %1273 = vmatpush1.xpose.msra.mxu0 0.0
    %1274 = vmatprep.mubr.f32.mxu0 0.0
    %1275 = vmatmul.mubr.f32.gmra.mrb[0].mxu0 %v1204
    %v1276 = vpop.f32.mrb[0].mxu0
    %v1277 = vadd.f32 0.0, %v1276
    %v1278 = vpop.f32.mrb[0].mxu0
    %1279 = vdwg.mxu0
    %v1280 = vsel %vm599, %v1195, -inf
    %1281 = vmax.xlane.f32.xlu0 %v1280
    %v1282 = vpop.xlane.xlu0 %1281
    %v1283 = vsel %vm599, %v1277, -inf
    %1284 = vmax.xlane.f32.xlu0 %v1283
    %v1285 = vpop.xlane.xlu0 %1284
    %v1286 = vsub.f32 %v1195, %v1282
    %v1287 = vsub.f32 %v1277, %v1285
    %v1288 = vmul.f32 %v1286, 1.442695
    %v1289 = vpow.pop %v1288
    %v1290 = vmul.f32 %v1287, 1.442695
    %v1291 = vpow.pop %v1290
    %v1292 = vsel %vm599, %v1289, 0.0
    %1293 = vadd.xlane.f32.xlu0 %v1292
    %v1294 = vpop.xlane.xlu0 %1293
    %v1295 = vsel %vm599, %v1291, 0.0
    %1296 = vadd.xlane.f32.xlu0 %v1295
    %v1297 = vpop.xlane.xlu0 %1296
    %v1298 = vrcp.pop %v1294
    %v1299 = vrcp.pop %v1297
    %v1300 = vmul.f32 %v1289, %v1298
    %v1301 = vmul.f32 %v1291, %v1299
    %1302 = vrot.lane.b32.xlu0 %v422, 112
    %v1303 = vpop.permute.xlu0 %1302
    %1304 = vrot.lane.b32.xlu0 %v427, 112
    %v1305 = vpop.permute.xlu0 %1304
    %v1309 = vsel %vm599, %v1300, 0
    %1311 = vmatprep.subr.mxu0 0.0
    %1312 = vmatpush1.msra.mxu0 %v1303
    %1313 = vmatprep.subr.mxu0 0.0
    %1314 = vmatpush1.msra.mxu0 %v1305
    %1315 = vmatprep.subr.mxu0 0.0
    %1316 = vmatpush1.msra.mxu0 0.0
    %1317 = vmatprep.subr.mxu0 0.0
    %1318 = vmatpush1.msra.mxu0 0.0
    %1319 = vmatprep.subr.mxu0 0.0
    %1320 = vmatpush1.msra.mxu0 0.0
    %1321 = vmatprep.subr.mxu0 0.0
    %1322 = vmatpush1.msra.mxu0 0.0
    %1323 = vmatprep.subr.mxu0 0.0
    %1324 = vmatpush1.msra.mxu0 0.0
    %1325 = vmatprep.subr.mxu0 0.0
    %1326 = vmatpush1.msra.mxu0 0.0
    %1327 = vmatprep.subr.mxu0 0.0
    %1328 = vmatpush1.msra.mxu0 0.0
    %1329 = vmatprep.subr.mxu0 0.0
    %1330 = vmatpush1.msra.mxu0 0.0
    %1331 = vmatprep.subr.mxu0 0.0
    %1332 = vmatpush1.msra.mxu0 0.0
    %1333 = vmatprep.subr.mxu0 0.0
    %1334 = vmatpush1.msra.mxu0 0.0
    %1335 = vmatprep.subr.mxu0 0.0
    %1336 = vmatpush1.msra.mxu0 0.0
    %1337 = vmatprep.subr.mxu0 0.0
    %1338 = vmatpush1.msra.mxu0 0.0
    %1339 = vmatprep.subr.mxu0 0.0
    %1340 = vmatpush1.msra.mxu0 0.0
    %1341 = vmatprep.subr.mxu0 0.0
    %1342 = vmatpush1.msra.mxu0 0.0
    %1343 = vmatprep.subr.mxu0 0.0
    %1344 = vmatpush1.msra.mxu0 0.0
    %1345 = vmatprep.subr.mxu0 0.0
    %1346 = vmatpush1.msra.mxu0 0.0
    %1347 = vmatprep.subr.mxu0 0.0
    %1348 = vmatpush1.msra.mxu0 0.0
    %1349 = vmatprep.subr.mxu0 0.0
    %1350 = vmatpush1.msra.mxu0 0.0
    %1351 = vmatprep.subr.mxu0 0.0
    %1352 = vmatpush1.msra.mxu0 0.0
    %1353 = vmatprep.subr.mxu0 0.0
    %1354 = vmatpush1.msra.mxu0 0.0
    %1355 = vmatprep.subr.mxu0 0.0
    %1356 = vmatpush1.msra.mxu0 0.0
    %1357 = vmatprep.subr.mxu0 0.0
    %1358 = vmatpush1.msra.mxu0 0.0
    %1359 = vmatprep.subr.mxu0 0.0
    %1360 = vmatpush1.msra.mxu0 0.0
    %1361 = vmatprep.subr.mxu0 0.0
    %1362 = vmatpush1.msra.mxu0 0.0
    %1363 = vmatprep.subr.mxu0 0.0
    %1364 = vmatpush1.msra.mxu0 0.0
    %1365 = vmatprep.subr.mxu0 0.0
    %1366 = vmatpush1.msra.mxu0 0.0
    %1367 = vmatprep.subr.mxu0 0.0
    %1368 = vmatpush1.msra.mxu0 0.0
    %1369 = vmatprep.subr.mxu0 0.0
    %1370 = vmatpush1.msra.mxu0 0.0
    %1371 = vmatprep.subr.mxu0 0.0
    %1372 = vmatpush1.msra.mxu0 0.0
    %1373 = vmatprep.subr.mxu0 0.0
    %1374 = vmatpush1.msra.mxu0 0.0
    %1375 = vmatprep.mubr.f32.mxu0 0.0
    %1376 = vmatmul.mubr.f32.gmra.mrb[0].mxu0 %v1309
    %v1377 = vpop.f32.mrb[0].mxu0
    %v1378 = vadd.f32 0.0, %v1377
    %v1379 = vpop.f32.mrb[0].mxu0
    %1380 = vdwg.mxu0
    %1381 = vrot.lane.b32.xlu0 %v432, 112
    %v1382 = vpop.permute.xlu0 %1381
    %1383 = vrot.lane.b32.xlu0 %v437, 112
    %v1384 = vpop.permute.xlu0 %1383
    %v1388 = vsel %vm599, %v1301, 0
    %1390 = vmatprep.subr.mxu0 0.0
    %1391 = vmatpush1.msra.mxu0 %v1382
    %1392 = vmatprep.subr.mxu0 0.0
    %1393 = vmatpush1.msra.mxu0 %v1384
    %1394 = vmatprep.subr.mxu0 0.0
    %1395 = vmatpush1.msra.mxu0 0.0
    %1396 = vmatprep.subr.mxu0 0.0
    %1397 = vmatpush1.msra.mxu0 0.0
    %1398 = vmatprep.subr.mxu0 0.0
    %1399 = vmatpush1.msra.mxu0 0.0
    %1400 = vmatprep.subr.mxu0 0.0
    %1401 = vmatpush1.msra.mxu0 0.0
    %1402 = vmatprep.subr.mxu0 0.0
    %1403 = vmatpush1.msra.mxu0 0.0
    %1404 = vmatprep.subr.mxu0 0.0
    %1405 = vmatpush1.msra.mxu0 0.0
    %1406 = vmatprep.subr.mxu0 0.0
    %1407 = vmatpush1.msra.mxu0 0.0
    %1408 = vmatprep.subr.mxu0 0.0
    %1409 = vmatpush1.msra.mxu0 0.0
    %1410 = vmatprep.subr.mxu0 0.0
    %1411 = vmatpush1.msra.mxu0 0.0
    %1412 = vmatprep.subr.mxu0 0.0
    %1413 = vmatpush1.msra.mxu0 0.0
    %1414 = vmatprep.subr.mxu0 0.0
    %1415 = vmatpush1.msra.mxu0 0.0
    %1416 = vmatprep.subr.mxu0 0.0
    %1417 = vmatpush1.msra.mxu0 0.0
    %1418 = vmatprep.subr.mxu0 0.0
    %1419 = vmatpush1.msra.mxu0 0.0
    %1420 = vmatprep.subr.mxu0 0.0
    %1421 = vmatpush1.msra.mxu0 0.0
    %1422 = vmatprep.subr.mxu0 0.0
    %1423 = vmatpush1.msra.mxu0 0.0
    %1424 = vmatprep.subr.mxu0 0.0
    %1425 = vmatpush1.msra.mxu0 0.0
    %1426 = vmatprep.subr.mxu0 0.0
    %1427 = vmatpush1.msra.mxu0 0.0
    %1428 = vmatprep.subr.mxu0 0.0
    %1429 = vmatpush1.msra.mxu0 0.0
    %1430 = vmatprep.subr.mxu0 0.0
    %1431 = vmatpush1.msra.mxu0 0.0
    %1432 = vmatprep.subr.mxu0 0.0
    %1433 = vmatpush1.msra.mxu0 0.0
    %1434 = vmatprep.subr.mxu0 0.0
    %1435 = vmatpush1.msra.mxu0 0.0
    %1436 = vmatprep.subr.mxu0 0.0
    %1437 = vmatpush1.msra.mxu0 0.0
    %1438 = vmatprep.subr.mxu0 0.0
    %1439 = vmatpush1.msra.mxu0 0.0
    %1440 = vmatprep.subr.mxu0 0.0
    %1441 = vmatpush1.msra.mxu0 0.0
    %1442 = vmatprep.subr.mxu0 0.0
    %1443 = vmatpush1.msra.mxu0 0.0
    %1444 = vmatprep.subr.mxu0 0.0
    %1445 = vmatpush1.msra.mxu0 0.0
    %1446 = vmatprep.subr.mxu0 0.0
    %1447 = vmatpush1.msra.mxu0 0.0
    %1448 = vmatprep.subr.mxu0 0.0
    %1449 = vmatpush1.msra.mxu0 0.0
    %1450 = vmatprep.subr.mxu0 0.0
    %1451 = vmatpush1.msra.mxu0 0.0
    %1452 = vmatprep.subr.mxu0 0.0
    %1453 = vmatpush1.msra.mxu0 0.0
    %1454 = vmatprep.mubr.f32.mxu0 0.0
    %1455 = vmatmul.mubr.f32.gmra.mrb[0].mxu0 %v1388
    %v1456 = vpop.f32.mrb[0].mxu0
    %v1457 = vadd.f32 0.0, %v1456
    %v1458 = vpop.f32.mrb[0].mxu0
    %1459 = vdwg.mxu0
    %1460 = vrot.lane.b32.xlu0 %v242, 104
    %v1461 = vpop.permute.xlu0 %1460
    %1462 = vrot.lane.b32.xlu0 %v333, 104
    %v1463 = vpop.permute.xlu0 %1462
    %1464 = vrot.lane.b32.xlu0 %v338, 104
    %v1465 = vpop.permute.xlu0 %1464
    %v1466 = vsel %vm440, %v1461, 0
    %v1468 = vsel %vm440, %v1463, 0
    %v1470 = vsel %vm440, %v1465, 0
    %1472 = vmatprep.subr.mxu0 0.0
    %1473 = vmatpush1.xpose.msra.mxu0 %v1468
    %1474 = vmatprep.subr.mxu0 0.0
    %1475 = vmatpush1.xpose.msra.mxu0 %v1470
    %1476 = vmatprep.subr.mxu0 0.0
    %1477 = vmatpush1.xpose.msra.mxu0 0.0
    %1478 = vmatprep.subr.mxu0 0.0
    %1479 = vmatpush1.xpose.msra.mxu0 0.0
    %1480 = vmatprep.subr.mxu0 0.0
    %1481 = vmatpush1.xpose.msra.mxu0 0.0
    %1482 = vmatprep.subr.mxu0 0.0
    %1483 = vmatpush1.xpose.msra.mxu0 0.0
    %1484 = vmatprep.subr.mxu0 0.0
    %1485 = vmatpush1.xpose.msra.mxu0 0.0
    %1486 = vmatprep.subr.mxu0 0.0
    %1487 = vmatpush1.xpose.msra.mxu0 0.0
    %1488 = vmatprep.subr.mxu0 0.0
    %1489 = vmatpush1.xpose.msra.mxu0 0.0
    %1490 = vmatprep.subr.mxu0 0.0
    %1491 = vmatpush1.xpose.msra.mxu0 0.0
    %1492 = vmatprep.subr.mxu0 0.0
    %1493 = vmatpush1.xpose.msra.mxu0 0.0
    %1494 = vmatprep.subr.mxu0 0.0
    %1495 = vmatpush1.xpose.msra.mxu0 0.0
    %1496 = vmatprep.subr.mxu0 0.0
    %1497 = vmatpush1.xpose.msra.mxu0 0.0
    %1498 = vmatprep.subr.mxu0 0.0
    %1499 = vmatpush1.xpose.msra.mxu0 0.0
    %1500 = vmatprep.subr.mxu0 0.0
    %1501 = vmatpush1.xpose.msra.mxu0 0.0
    %1502 = vmatprep.subr.mxu0 0.0
    %1503 = vmatpush1.xpose.msra.mxu0 0.0
    %1504 = vmatprep.subr.mxu0 0.0
    %1505 = vmatpush1.xpose.msra.mxu0 0.0
    %1506 = vmatprep.subr.mxu0 0.0
    %1507 = vmatpush1.xpose.msra.mxu0 0.0
    %1508 = vmatprep.subr.mxu0 0.0
    %1509 = vmatpush1.xpose.msra.mxu0 0.0
    %1510 = vmatprep.subr.mxu0 0.0
    %1511 = vmatpush1.xpose.msra.mxu0 0.0
    %1512 = vmatprep.subr.mxu0 0.0
    %1513 = vmatpush1.xpose.msra.mxu0 0.0
    %1514 = vmatprep.subr.mxu0 0.0
    %1515 = vmatpush1.xpose.msra.mxu0 0.0
    %1516 = vmatprep.subr.mxu0 0.0
    %1517 = vmatpush1.xpose.msra.mxu0 0.0
    %1518 = vmatprep.subr.mxu0 0.0
    %1519 = vmatpush1.xpose.msra.mxu0 0.0
    %1520 = vmatprep.subr.mxu0 0.0
    %1521 = vmatpush1.xpose.msra.mxu0 0.0
    %1522 = vmatprep.subr.mxu0 0.0
    %1523 = vmatpush1.xpose.msra.mxu0 0.0
    %1524 = vmatprep.subr.mxu0 0.0
    %1525 = vmatpush1.xpose.msra.mxu0 0.0
    %1526 = vmatprep.subr.mxu0 0.0
    %1527 = vmatpush1.xpose.msra.mxu0 0.0
    %1528 = vmatprep.subr.mxu0 0.0
    %1529 = vmatpush1.xpose.msra.mxu0 0.0
    %1530 = vmatprep.subr.mxu0 0.0
    %1531 = vmatpush1.xpose.msra.mxu0 0.0
    %1532 = vmatprep.subr.mxu0 0.0
    %1533 = vmatpush1.xpose.msra.mxu0 0.0
    %1534 = vmatprep.subr.mxu0 0.0
    %1535 = vmatpush1.xpose.msra.mxu0 0.0
    %1536 = vmatprep.mubr.f32.mxu0 0.0
    %1537 = vmatmul.mubr.f32.gmra.mrb[0].mxu0 %v1466
    %v1538 = vpop.f32.mrb[0].mxu0
    %v1539 = vadd.f32 0.0, %v1538
    %v1540 = vpop.f32.mrb[0].mxu0
    %1541 = vdwg.mxu0
    %1542 = vrot.lane.b32.xlu0 %v247, 104
    %v1543 = vpop.permute.xlu0 %1542
    %1544 = vrot.lane.b32.xlu0 %v343, 104
    %v1545 = vpop.permute.xlu0 %1544
    %1546 = vrot.lane.b32.xlu0 %v348, 104
    %v1547 = vpop.permute.xlu0 %1546
    %v1548 = vsel %vm440, %v1543, 0
    %v1550 = vsel %vm440, %v1545, 0
    %v1552 = vsel %vm440, %v1547, 0
    %1554 = vmatprep.subr.mxu0 0.0
    %1555 = vmatpush1.xpose.msra.mxu0 %v1550
    %1556 = vmatprep.subr.mxu0 0.0
    %1557 = vmatpush1.xpose.msra.mxu0 %v1552
    %1558 = vmatprep.subr.mxu0 0.0
    %1559 = vmatpush1.xpose.msra.mxu0 0.0
    %1560 = vmatprep.subr.mxu0 0.0
    %1561 = vmatpush1.xpose.msra.mxu0 0.0
    %1562 = vmatprep.subr.mxu0 0.0
    %1563 = vmatpush1.xpose.msra.mxu0 0.0
    %1564 = vmatprep.subr.mxu0 0.0
    %1565 = vmatpush1.xpose.msra.mxu0 0.0
    %1566 = vmatprep.subr.mxu0 0.0
    %1567 = vmatpush1.xpose.msra.mxu0 0.0
    %1568 = vmatprep.subr.mxu0 0.0
    %1569 = vmatpush1.xpose.msra.mxu0 0.0
    %1570 = vmatprep.subr.mxu0 0.0
    %1571 = vmatpush1.xpose.msra.mxu0 0.0
    %1572 = vmatprep.subr.mxu0 0.0
    %1573 = vmatpush1.xpose.msra.mxu0 0.0
    %1574 = vmatprep.subr.mxu0 0.0
    %1575 = vmatpush1.xpose.msra.mxu0 0.0
    %1576 = vmatprep.subr.mxu0 0.0
    %1577 = vmatpush1.xpose.msra.mxu0 0.0
    %1578 = vmatprep.subr.mxu0 0.0
    %1579 = vmatpush1.xpose.msra.mxu0 0.0
    %1580 = vmatprep.subr.mxu0 0.0
    %1581 = vmatpush1.xpose.msra.mxu0 0.0
    %1582 = vmatprep.subr.mxu0 0.0
    %1583 = vmatpush1.xpose.msra.mxu0 0.0
    %1584 = vmatprep.subr.mxu0 0.0
    %1585 = vmatpush1.xpose.msra.mxu0 0.0
    %1586 = vmatprep.subr.mxu0 0.0
    %1587 = vmatpush1.xpose.msra.mxu0 0.0
    %1588 = vmatprep.subr.mxu0 0.0
    %1589 = vmatpush1.xpose.msra.mxu0 0.0
    %1590 = vmatprep.subr.mxu0 0.0
    %1591 = vmatpush1.xpose.msra.mxu0 0.0
    %1592 = vmatprep.subr.mxu0 0.0
    %1593 = vmatpush1.xpose.msra.mxu0 0.0
    %1594 = vmatprep.subr.mxu0 0.0
    %1595 = vmatpush1.xpose.msra.mxu0 0.0
    %1596 = vmatprep.subr.mxu0 0.0
    %1597 = vmatpush1.xpose.msra.mxu0 0.0
    %1598 = vmatprep.subr.mxu0 0.0
    %1599 = vmatpush1.xpose.msra.mxu0 0.0
    %1600 = vmatprep.subr.mxu0 0.0
    %1601 = vmatpush1.xpose.msra.mxu0 0.0
    %1602 = vmatprep.subr.mxu0 0.0
    %1603 = vmatpush1.xpose.msra.mxu0 0.0
    %1604 = vmatprep.subr.mxu0 0.0
    %1605 = vmatpush1.xpose.msra.mxu0 0.0
    %1606 = vmatprep.subr.mxu0 0.0
    %1607 = vmatpush1.xpose.msra.mxu0 0.0
    %1608 = vmatprep.subr.mxu0 0.0
    %1609 = vmatpush1.xpose.msra.mxu0 0.0
    %1610 = vmatprep.subr.mxu0 0.0
    %1611 = vmatpush1.xpose.msra.mxu0 0.0
    %1612 = vmatprep.subr.mxu0 0.0
    %1613 = vmatpush1.xpose.msra.mxu0 0.0
    %1614 = vmatprep.subr.mxu0 0.0
    %1615 = vmatpush1.xpose.msra.mxu0 0.0
    %1616 = vmatprep.subr.mxu0 0.0
    %1617 = vmatpush1.xpose.msra.mxu0 0.0
    %1618 = vmatprep.mubr.f32.mxu0 0.0
    %1619 = vmatmul.mubr.f32.gmra.mrb[0].mxu0 %v1548
    %v1620 = vpop.f32.mrb[0].mxu0
    %v1621 = vadd.f32 0.0, %v1620
    %v1622 = vpop.f32.mrb[0].mxu0
    %1623 = vdwg.mxu0
    %v1624 = vsel %vm599, %v1539, -inf
    %1625 = vmax.xlane.f32.xlu0 %v1624
    %v1626 = vpop.xlane.xlu0 %1625
    %v1627 = vsel %vm599, %v1621, -inf
    %1628 = vmax.xlane.f32.xlu0 %v1627
    %v1629 = vpop.xlane.xlu0 %1628
    %v1630 = vsub.f32 %v1539, %v1626
    %v1631 = vsub.f32 %v1621, %v1629
    %v1632 = vmul.f32 %v1630, 1.442695
    %v1633 = vpow.pop %v1632
    %v1634 = vmul.f32 %v1631, 1.442695
    %v1635 = vpow.pop %v1634
    %v1636 = vsel %vm599, %v1633, 0.0
    %1637 = vadd.xlane.f32.xlu0 %v1636
    %v1638 = vpop.xlane.xlu0 %1637
    %v1639 = vsel %vm599, %v1635, 0.0
    %1640 = vadd.xlane.f32.xlu0 %v1639
    %v1641 = vpop.xlane.xlu0 %1640
    %v1642 = vrcp.pop %v1638
    %v1643 = vrcp.pop %v1641
    %v1644 = vmul.f32 %v1633, %v1642
    %v1645 = vmul.f32 %v1635, %v1643
    %1646 = vrot.lane.b32.xlu0 %v422, 104
    %v1647 = vpop.permute.xlu0 %1646
    %1648 = vrot.lane.b32.xlu0 %v427, 104
    %v1649 = vpop.permute.xlu0 %1648
    %v1653 = vsel %vm599, %v1644, 0
    %1655 = vmatprep.subr.mxu0 0.0
    %1656 = vmatpush1.msra.mxu0 %v1647
    %1657 = vmatprep.subr.mxu0 0.0
    %1658 = vmatpush1.msra.mxu0 %v1649
    %1659 = vmatprep.subr.mxu0 0.0
    %1660 = vmatpush1.msra.mxu0 0.0
    %1661 = vmatprep.subr.mxu0 0.0
    %1662 = vmatpush1.msra.mxu0 0.0
    %1663 = vmatprep.subr.mxu0 0.0
    %1664 = vmatpush1.msra.mxu0 0.0
    %1665 = vmatprep.subr.mxu0 0.0
    %1666 = vmatpush1.msra.mxu0 0.0
    %1667 = vmatprep.subr.mxu0 0.0
    %1668 = vmatpush1.msra.mxu0 0.0
    %1669 = vmatprep.subr.mxu0 0.0
    %1670 = vmatpush1.msra.mxu0 0.0
    %1671 = vmatprep.subr.mxu0 0.0
    %1672 = vmatpush1.msra.mxu0 0.0
    %1673 = vmatprep.subr.mxu0 0.0
    %1674 = vmatpush1.msra.mxu0 0.0
    %1675 = vmatprep.subr.mxu0 0.0
    %1676 = vmatpush1.msra.mxu0 0.0
    %1677 = vmatprep.subr.mxu0 0.0
    %1678 = vmatpush1.msra.mxu0 0.0
    %1679 = vmatprep.subr.mxu0 0.0
    %1680 = vmatpush1.msra.mxu0 0.0
    %1681 = vmatprep.subr.mxu0 0.0
    %1682 = vmatpush1.msra.mxu0 0.0
    %1683 = vmatprep.subr.mxu0 0.0
    %1684 = vmatpush1.msra.mxu0 0.0
    %1685 = vmatprep.subr.mxu0 0.0
    %1686 = vmatpush1.msra.mxu0 0.0
    %1687 = vmatprep.subr.mxu0 0.0
    %1688 = vmatpush1.msra.mxu0 0.0
    %1689 = vmatprep.subr.mxu0 0.0
    %1690 = vmatpush1.msra.mxu0 0.0
    %1691 = vmatprep.subr.mxu0 0.0
    %1692 = vmatpush1.msra.mxu0 0.0
    %1693 = vmatprep.subr.mxu0 0.0
    %1694 = vmatpush1.msra.mxu0 0.0
    %1695 = vmatprep.subr.mxu0 0.0
    %1696 = vmatpush1.msra.mxu0 0.0
    %1697 = vmatprep.subr.mxu0 0.0
    %1698 = vmatpush1.msra.mxu0 0.0
    %1699 = vmatprep.subr.mxu0 0.0
    %1700 = vmatpush1.msra.mxu0 0.0
    %1701 = vmatprep.subr.mxu0 0.0
    %1702 = vmatpush1.msra.mxu0 0.0
    %1703 = vmatprep.subr.mxu0 0.0
    %1704 = vmatpush1.msra.mxu0 0.0
    %1705 = vmatprep.subr.mxu0 0.0
    %1706 = vmatpush1.msra.mxu0 0.0
    %1707 = vmatprep.subr.mxu0 0.0
    %1708 = vmatpush1.msra.mxu0 0.0
    %1709 = vmatprep.subr.mxu0 0.0
    %1710 = vmatpush1.msra.mxu0 0.0
    %1711 = vmatprep.subr.mxu0 0.0
    %1712 = vmatpush1.msra.mxu0 0.0
    %1713 = vmatprep.subr.mxu0 0.0
    %1714 = vmatpush1.msra.mxu0 0.0
    %1715 = vmatprep.subr.mxu0 0.0
    %1716 = vmatpush1.msra.mxu0 0.0
    %1717 = vmatprep.subr.mxu0 0.0
    %1718 = vmatpush1.msra.mxu0 0.0
    %1719 = vmatprep.mubr.f32.mxu0 0.0
    %1720 = vmatmul.mubr.f32.gmra.mrb[0].mxu0 %v1653
    %v1721 = vpop.f32.mrb[0].mxu0
    %v1722 = vadd.f32 0.0, %v1721
    %v1723 = vpop.f32.mrb[0].mxu0
    %1724 = vdwg.mxu0
    %1725 = vrot.lane.b32.xlu0 %v432, 104
    %v1726 = vpop.permute.xlu0 %1725
    %1727 = vrot.lane.b32.xlu0 %v437, 104
    %v1728 = vpop.permute.xlu0 %1727
    %v1732 = vsel %vm599, %v1645, 0
    %1734 = vmatprep.subr.mxu0 0.0
    %1735 = vmatpush1.msra.mxu0 %v1726
    %1736 = vmatprep.subr.mxu0 0.0
    %1737 = vmatpush1.msra.mxu0 %v1728
    %1738 = vmatprep.subr.mxu0 0.0
    %1739 = vmatpush1.msra.mxu0 0.0
    %1740 = vmatprep.subr.mxu0 0.0
    %1741 = vmatpush1.msra.mxu0 0.0
    %1742 = vmatprep.subr.mxu0 0.0
    %1743 = vmatpush1.msra.mxu0 0.0
    %1744 = vmatprep.subr.mxu0 0.0
    %1745 = vmatpush1.msra.mxu0 0.0
    %1746 = vmatprep.subr.mxu0 0.0
    %1747 = vmatpush1.msra.mxu0 0.0
    %1748 = vmatprep.subr.mxu0 0.0
    %1749 = vmatpush1.msra.mxu0 0.0
    %1750 = vmatprep.subr.mxu0 0.0
    %1751 = vmatpush1.msra.mxu0 0.0
    %1752 = vmatprep.subr.mxu0 0.0
    %1753 = vmatpush1.msra.mxu0 0.0
    %1754 = vmatprep.subr.mxu0 0.0
    %1755 = vmatpush1.msra.mxu0 0.0
    %1756 = vmatprep.subr.mxu0 0.0
    %1757 = vmatpush1.msra.mxu0 0.0
    %1758 = vmatprep.subr.mxu0 0.0
    %1759 = vmatpush1.msra.mxu0 0.0
    %1760 = vmatprep.subr.mxu0 0.0
    %1761 = vmatpush1.msra.mxu0 0.0
    %1762 = vmatprep.subr.mxu0 0.0
    %1763 = vmatpush1.msra.mxu0 0.0
    %1764 = vmatprep.subr.mxu0 0.0
    %1765 = vmatpush1.msra.mxu0 0.0
    %1766 = vmatprep.subr.mxu0 0.0
    %1767 = vmatpush1.msra.mxu0 0.0
    %1768 = vmatprep.subr.mxu0 0.0
    %1769 = vmatpush1.msra.mxu0 0.0
    %1770 = vmatprep.subr.mxu0 0.0
    %1771 = vmatpush1.msra.mxu0 0.0
    %1772 = vmatprep.subr.mxu0 0.0
    %1773 = vmatpush1.msra.mxu0 0.0
    %1774 = vmatprep.subr.mxu0 0.0
    %1775 = vmatpush1.msra.mxu0 0.0
    %1776 = vmatprep.subr.mxu0 0.0
    %1777 = vmatpush1.msra.mxu0 0.0
    %1778 = vmatprep.subr.mxu0 0.0
    %1779 = vmatpush1.msra.mxu0 0.0
    %1780 = vmatprep.subr.mxu0 0.0
    %1781 = vmatpush1.msra.mxu0 0.0
    %1782 = vmatprep.subr.mxu0 0.0
    %1783 = vmatpush1.msra.mxu0 0.0
    %1784 = vmatprep.subr.mxu0 0.0
    %1785 = vmatpush1.msra.mxu0 0.0
    %1786 = vmatprep.subr.mxu0 0.0
    %1787 = vmatpush1.msra.mxu0 0.0
    %1788 = vmatprep.subr.mxu0 0.0
    %1789 = vmatpush1.msra.mxu0 0.0
    %1790 = vmatprep.subr.mxu0 0.0
    %1791 = vmatpush1.msra.mxu0 0.0
    %1792 = vmatprep.subr.mxu0 0.0
    %1793 = vmatpush1.msra.mxu0 0.0
    %1794 = vmatprep.subr.mxu0 0.0
    %1795 = vmatpush1.msra.mxu0 0.0
    %1796 = vmatprep.subr.mxu0 0.0
    %1797 = vmatpush1.msra.mxu0 0.0
    %1798 = vmatprep.mubr.f32.mxu0 0.0
    %1799 = vmatmul.mubr.f32.gmra.mrb[0].mxu0 %v1732
    %v1800 = vpop.f32.mrb[0].mxu0
    %v1801 = vadd.f32 0.0, %v1800
    %v1802 = vpop.f32.mrb[0].mxu0
    %1803 = vdwg.mxu0
    %1806 = vrot.lane.b32.xlu0 %v1032, 8
    %v1807 = vpop.permute.xlu0 %1806
    %1808 = vrot.lane.b32.xlu0 %v1113, 8
    %v1809 = vpop.permute.xlu0 %1808
    %1814 = vrot.lane.b32.xlu0 %v1378, 16
    %v1815 = vpop.permute.xlu0 %1814
    %1816 = vrot.lane.b32.xlu0 %v1457, 16
    %v1817 = vpop.permute.xlu0 %1816
    %1822 = vrot.lane.b32.xlu0 %v1722, 24
    %v1823 = vpop.permute.xlu0 %1822
    %1824 = vrot.lane.b32.xlu0 %v1801, 24
    %v1825 = vpop.permute.xlu0 %1824
    %v1828 = vsel %vm440, %v692, %v1807
    %v1829 = vsel %vm440, %v765, %v1809
    %v1830 = vsel %vm599, %v1828, %v1815
    %v1831 = vsel %vm599, %v1829, %v1817
    %vm1832 = vcmask 195584
    %v1833 = vsel %vm1832, %v1830, %v1823
    %v1834 = vsel %vm1832, %v1831, %v1825
    %v1835 = vld [vmem:[#allocation11] sm:$0xff]
    %v1836 = vld [vmem:[#allocation11 + $0x8] sm:$0xff]
    %v1837 = vld [vmem:[#allocation11 + $0x10] sm:$0xff]
    %v1838 = vld [vmem:[#allocation11 + $0x18] sm:$0xff]
    %v1839 = vld [vmem:[%s6] sm:$0x1]
    %v1841 = vlaneseq
    %v1842 = vshrl.u32 %v1841, 7
    %v1843 = vsub.s32 0, %v1842
    %v1844 = vrot.slane %v1839, %v1843
    %v1847 = vsel %vm168, %v1833, 0
    %v1850 = vsel %vm168, %v1834, 0
    %1852 = vmatprep.subr.mxu0 0.0
    %1853 = vmatpush1.msra.mxu0 %v1835
    %1854 = vmatprep.subr.mxu0 0.0
    %1855 = vmatpush1.msra.mxu0 %v1836
    %1856 = vmatprep.subr.mxu0 0.0
    %1857 = vmatpush1.msra.mxu0 %v1837
    %1858 = vmatprep.subr.mxu0 0.0
    %1859 = vmatpush1.msra.mxu0 %v1838
    %1860 = vmatprep.subr.mxu0 0.0
    %1861 = vmatpush1.msra.mxu0 0.0
    %1862 = vmatprep.subr.mxu0 0.0
    %1863 = vmatpush1.msra.mxu0 0.0
    %1864 = vmatprep.subr.mxu0 0.0
    %1865 = vmatpush1.msra.mxu0 0.0
    %1866 = vmatprep.subr.mxu0 0.0
    %1867 = vmatpush1.msra.mxu0 0.0
    %1868 = vmatprep.subr.mxu0 0.0
    %1869 = vmatpush1.msra.mxu0 0.0
    %1870 = vmatprep.subr.mxu0 0.0
    %1871 = vmatpush1.msra.mxu0 0.0
    %1872 = vmatprep.subr.mxu0 0.0
    %1873 = vmatpush1.msra.mxu0 0.0
    %1874 = vmatprep.subr.mxu0 0.0
    %1875 = vmatpush1.msra.mxu0 0.0
    %1876 = vmatprep.subr.mxu0 0.0
    %1877 = vmatpush1.msra.mxu0 0.0
    %1878 = vmatprep.subr.mxu0 0.0
    %1879 = vmatpush1.msra.mxu0 0.0
    %1880 = vmatprep.subr.mxu0 0.0
    %1881 = vmatpush1.msra.mxu0 0.0
    %1882 = vmatprep.subr.mxu0 0.0
    %1883 = vmatpush1.msra.mxu0 0.0
    %1884 = vmatprep.subr.mxu0 0.0
    %1885 = vmatpush1.msra.mxu0 0.0
    %1886 = vmatprep.subr.mxu0 0.0
    %1887 = vmatpush1.msra.mxu0 0.0
    %1888 = vmatprep.subr.mxu0 0.0
    %1889 = vmatpush1.msra.mxu0 0.0
    %1890 = vmatprep.subr.mxu0 0.0
    %1891 = vmatpush1.msra.mxu0 0.0
    %1892 = vmatprep.subr.mxu0 0.0
    %1893 = vmatpush1.msra.mxu0 0.0
    %1894 = vmatprep.subr.mxu0 0.0
    %1895 = vmatpush1.msra.mxu0 0.0
    %1896 = vmatprep.subr.mxu0 0.0
    %1897 = vmatpush1.msra.mxu0 0.0
    %1898 = vmatprep.subr.mxu0 0.0
    %1899 = vmatpush1.msra.mxu0 0.0
    %1900 = vmatprep.subr.mxu0 0.0
    %1901 = vmatpush1.msra.mxu0 0.0
    %1902 = vmatprep.subr.mxu0 0.0
    %1903 = vmatpush1.msra.mxu0 0.0
    %1904 = vmatprep.subr.mxu0 0.0
    %1905 = vmatpush1.msra.mxu0 0.0
    %1906 = vmatprep.subr.mxu0 0.0
    %1907 = vmatpush1.msra.mxu0 0.0
    %1908 = vmatprep.subr.mxu0 0.0
    %1909 = vmatpush1.msra.mxu0 0.0
    %1910 = vmatprep.subr.mxu0 0.0
    %1911 = vmatpush1.msra.mxu0 0.0
    %1912 = vmatprep.subr.mxu0 0.0
    %1913 = vmatpush1.msra.mxu0 0.0
    %1914 = vmatprep.subr.mxu0 0.0
    %1915 = vmatpush1.msra.mxu0 0.0
    %1916 = vmatprep.mubr.f32.mxu0 0.0
    %1917 = vmatmul.mubr.f32.gmra.mrb[0].mxu0 %v1847
    %v1918 = vpop.f32.mrb[0].mxu0
    %v1919 = vadd.f32 %v1844, %v1918
    %v1920 = vpop.f32.mrb[0].mxu0
    %1921 = vmatprep.mubr.f32.mxu0 0.0
    %1922 = vmatmul.mubr.f32.gmra.mrb[0].mxu0 %v1850
    %v1923 = vpop.f32.mrb[0].mxu0
    %v1924 = vadd.f32 %v1844, %v1923
    %v1925 = vpop.f32.mrb[0].mxu0
    %1926 = vdwg.mxu0
    %v1927 = vadd.f32 %v158, %v1919
    %v1928 = vadd.f32 %v159, %v1924
    %v1929 = vld [vmem:[%s7] sm:$0x1]
    %v1930 = vld [vmem:[#allocation13] sm:$0x1]
    %v1931 = vsel %vm168, %v1927, 0.0
    %1932 = vadd.xlane.f32.xlu0 %v1931
    %v1933 = vpop.xlane.xlu0 %1932
    %v1934 = vsel %vm168, %v1928, 0.0
    %1935 = vadd.xlane.f32.xlu0 %v1934
    %v1936 = vpop.xlane.xlu0 %1935
    %v1937 = vrcp.pop 32.0
    %v1938 = vmul.f32 %v1933, %v1937
    %v1939 = vmul.f32 %v1936, %v1937
    %v1940 = vsub.f32 %v1927, %v1938
    %v1941 = vsub.f32 %v1928, %v1939
    %v1942 = vmul.f32 %v1940, %v1940
    %v1943 = vmul.f32 %v1941, %v1941
    %v1944 = vsel %vm168, %v1942, 0.0
    %1945 = vadd.xlane.f32.xlu0 %v1944
    %v1946 = vpop.xlane.xlu0 %1945
    %v1947 = vsel %vm168, %v1943, 0.0
    %1948 = vadd.xlane.f32.xlu0 %v1947
    %v1949 = vpop.xlane.xlu0 %1948
    %v1950 = vmul.f32 %v1946, %v1937
    %v1951 = vmul.f32 %v1949, %v1937
    %v1952 = vadd.f32 %v1950, 1e-05
    %v1953 = vadd.f32 %v1951, 1e-05
    %v1954 = vrsqrt.pop %v1952
    %v1955 = vrsqrt.pop %v1953
    %v1956 = vmul.f32 %v1940, %v1954
    %v1957 = vmul.f32 %v1941, %v1955
    %v1959 = vlaneseq
    %v1960 = vshrl.u32 %v1959, 7
    %v1961 = vsub.s32 0, %v1960
    %v1962 = vrot.slane %v1929, %v1961
    %v1964 = vmul.f32 %v1956, %v1962
    %v1965 = vmul.f32 %v1957, %v1962
    %v1967 = vlaneseq
    %v1968 = vshrl.u32 %v1967, 7
    %v1969 = vsub.s32 0, %v1968
    %v1970 = vrot.slane %v1930, %v1969
    %v1972 = vadd.f32 %v1964, %v1970
    %v1973 = vadd.f32 %v1965, %v1970
    %v1974 = vld [vmem:[%s9] sm:$0xff]
    %v1975 = vld [vmem:[%s9 + $0x8] sm:$0xff]
    %v1976 = vld [vmem:[%s9 + $0x10] sm:$0xff]
    %v1977 = vld [vmem:[%s9 + $0x18] sm:$0xff]
    %v1978 = vld [vmem:[%s10] sm:$0x1]
    %v1980 = vlaneseq
    %v1981 = vshrl.u32 %v1980, 7
    %v1982 = vsub.s32 0, %v1981
    %v1983 = vrot.slane %v1978, %v1982
    %v1986 = vsel %vm168, %v1972, 0
    %v1989 = vsel %vm168, %v1973, 0
    %1991 = vmatprep.subr.mxu0 0.0
    %1992 = vmatpush1.msra.mxu0 %v1974
    %1993 = vmatprep.subr.mxu0 0.0
    %1994 = vmatpush1.msra.mxu0 %v1975
    %1995 = vmatprep.subr.mxu0 0.0
    %1996 = vmatpush1.msra.mxu0 %v1976
    %1997 = vmatprep.subr.mxu0 0.0
    %1998 = vmatpush1.msra.mxu0 %v1977
    %1999 = vmatprep.subr.mxu0 0.0
    %2000 = vmatpush1.msra.mxu0 0.0
    %2001 = vmatprep.subr.mxu0 0.0
    %2002 = vmatpush1.msra.mxu0 0.0
    %2003 = vmatprep.subr.mxu0 0.0
    %2004 = vmatpush1.msra.mxu0 0.0
    %2005 = vmatprep.subr.mxu0 0.0
    %2006 = vmatpush1.msra.mxu0 0.0
    %2007 = vmatprep.subr.mxu0 0.0
    %2008 = vmatpush1.msra.mxu0 0.0
    %2009 = vmatprep.subr.mxu0 0.0
    %2010 = vmatpush1.msra.mxu0 0.0
    %2011 = vmatprep.subr.mxu0 0.0
    %2012 = vmatpush1.msra.mxu0 0.0
    %2013 = vmatprep.subr.mxu0 0.0
    %2014 = vmatpush1.msra.mxu0 0.0
    %2015 = vmatprep.subr.mxu0 0.0
    %2016 = vmatpush1.msra.mxu0 0.0
    %2017 = vmatprep.subr.mxu0 0.0
    %2018 = vmatpush1.msra.mxu0 0.0
    %2019 = vmatprep.subr.mxu0 0.0
    %2020 = vmatpush1.msra.mxu0 0.0
    %2021 = vmatprep.subr.mxu0 0.0
    %2022 = vmatpush1.msra.mxu0 0.0
    %2023 = vmatprep.subr.mxu0 0.0
    %2024 = vmatpush1.msra.mxu0 0.0
    %2025 = vmatprep.subr.mxu0 0.0
    %2026 = vmatpush1.msra.mxu0 0.0
    %2027 = vmatprep.subr.mxu0 0.0
    %2028 = vmatpush1.msra.mxu0 0.0
    %2029 = vmatprep.subr.mxu0 0.0
    %2030 = vmatpush1.msra.mxu0 0.0
    %2031 = vmatprep.subr.mxu0 0.0
    %2032 = vmatpush1.msra.mxu0 0.0
    %2033 = vmatprep.subr.mxu0 0.0
    %2034 = vmatpush1.msra.mxu0 0.0
    %2035 = vmatprep.subr.mxu0 0.0
    %2036 = vmatpush1.msra.mxu0 0.0
    %2037 = vmatprep.subr.mxu0 0.0
    %2038 = vmatpush1.msra.mxu0 0.0
    %2039 = vmatprep.subr.mxu0 0.0
    %2040 = vmatpush1.msra.mxu0 0.0
    %2041 = vmatprep.subr.mxu0 0.0
    %2042 = vmatpush1.msra.mxu0 0.0
    %2043 = vmatprep.subr.mxu0 0.0
    %2044 = vmatpush1.msra.mxu0 0.0
    %2045 = vmatprep.subr.mxu0 0.0
    %2046 = vmatpush1.msra.mxu0 0.0
    %2047 = vmatprep.subr.mxu0 0.0
    %2048 = vmatpush1.msra.mxu0 0.0
    %2049 = vmatprep.subr.mxu0 0.0
    %2050 = vmatpush1.msra.mxu0 0.0
    %2051 = vmatprep.subr.mxu0 0.0
    %2052 = vmatpush1.msra.mxu0 0.0
    %2053 = vmatprep.subr.mxu0 0.0
    %2054 = vmatpush1.msra.mxu0 0.0
    %2055 = vmatprep.mubr.f32.mxu0 0.0
    %2056 = vmatmul.mubr.f32.gmra.mrb[0].mxu0 %v1986
    %v2057 = vpop.f32.mrb[0].mxu0
    %v2058 = vadd.f32 %v1983, %v2057
    %v2059 = vpop.f32.mrb[0].mxu0
    %2060 = vmatprep.mubr.f32.mxu0 0.0
    %2061 = vmatmul.mubr.f32.gmra.mrb[0].mxu0 %v1989
    %v2062 = vpop.f32.mrb[0].mxu0
    %v2063 = vadd.f32 %v1983, %v2062
    %v2064 = vpop.f32.mrb[0].mxu0
    %2065 = vdwg.mxu0
    %v2066 = vmax.f32 %v2058, 0.0
    %v2067 = vmax.f32 %v2063, 0.0
    %v2068 = vld [vmem:[#allocation14] sm:$0xff]
    %v2069 = vld [vmem:[#allocation14 + $0x8] sm:$0xff]
    %v2070 = vld [vmem:[#allocation14 + $0x10] sm:$0xff]
    %v2071 = vld [vmem:[#allocation14 + $0x18] sm:$0xff]
    %v2072 = vld [vmem:[%s12] sm:$0x1]
    %v2074 = vlaneseq
    %v2075 = vshrl.u32 %v2074, 7
    %v2076 = vsub.s32 0, %v2075
    %v2077 = vrot.slane %v2072, %v2076
    %v2080 = vsel %vm168, %v2066, 0
    %v2083 = vsel %vm168, %v2067, 0
    %2085 = vmatprep.subr.mxu0 0.0
    %2086 = vmatpush1.msra.mxu0 %v2068
    %2087 = vmatprep.subr.mxu0 0.0
    %2088 = vmatpush1.msra.mxu0 %v2069
    %2089 = vmatprep.subr.mxu0 0.0
    %2090 = vmatpush1.msra.mxu0 %v2070
    %2091 = vmatprep.subr.mxu0 0.0
    %2092 = vmatpush1.msra.mxu0 %v2071
    %2093 = vmatprep.subr.mxu0 0.0
    %2094 = vmatpush1.msra.mxu0 0.0
    %2095 = vmatprep.subr.mxu0 0.0
    %2096 = vmatpush1.msra.mxu0 0.0
    %2097 = vmatprep.subr.mxu0 0.0
    %2098 = vmatpush1.msra.mxu0 0.0
    %2099 = vmatprep.subr.mxu0 0.0
    %2100 = vmatpush1.msra.mxu0 0.0
    %2101 = vmatprep.subr.mxu0 0.0
    %2102 = vmatpush1.msra.mxu0 0.0
    %2103 = vmatprep.subr.mxu0 0.0
    %2104 = vmatpush1.msra.mxu0 0.0
    %2105 = vmatprep.subr.mxu0 0.0
    %2106 = vmatpush1.msra.mxu0 0.0
    %2107 = vmatprep.subr.mxu0 0.0
    %2108 = vmatpush1.msra.mxu0 0.0
    %2109 = vmatprep.subr.mxu0 0.0
    %2110 = vmatpush1.msra.mxu0 0.0
    %2111 = vmatprep.subr.mxu0 0.0
    %2112 = vmatpush1.msra.mxu0 0.0
    %2113 = vmatprep.subr.mxu0 0.0
    %2114 = vmatpush1.msra.mxu0 0.0
    %2115 = vmatprep.subr.mxu0 0.0
    %2116 = vmatpush1.msra.mxu0 0.0
    %2117 = vmatprep.subr.mxu0 0.0
    %2118 = vmatpush1.msra.mxu0 0.0
    %2119 = vmatprep.subr.mxu0 0.0
    %2120 = vmatpush1.msra.mxu0 0.0
    %2121 = vmatprep.subr.mxu0 0.0
    %2122 = vmatpush1.msra.mxu0 0.0
    %2123 = vmatprep.subr.mxu0 0.0
    %2124 = vmatpush1.msra.mxu0 0.0
    %2125 = vmatprep.subr.mxu0 0.0
    %2126 = vmatpush1.msra.mxu0 0.0
    %2127 = vmatprep.subr.mxu0 0.0
    %2128 = vmatpush1.msra.mxu0 0.0
    %2129 = vmatprep.subr.mxu0 0.0
    %2130 = vmatpush1.msra.mxu0 0.0
    %2131 = vmatprep.subr.mxu0 0.0
    %2132 = vmatpush1.msra.mxu0 0.0
    %2133 = vmatprep.subr.mxu0 0.0
    %2134 = vmatpush1.msra.mxu0 0.0
    %2135 = vmatprep.subr.mxu0 0.0
    %2136 = vmatpush1.msra.mxu0 0.0
    %2137 = vmatprep.subr.mxu0 0.0
    %2138 = vmatpush1.msra.mxu0 0.0
    %2139 = vmatprep.subr.mxu0 0.0
    %2140 = vmatpush1.msra.mxu0 0.0
    %2141 = vmatprep.subr.mxu0 0.0
    %2142 = vmatpush1.msra.mxu0 0.0
    %2143 = vmatprep.subr.mxu0 0.0
    %2144 = vmatpush1.msra.mxu0 0.0
    %2145 = vmatprep.subr.mxu0 0.0
    %2146 = vmatpush1.msra.mxu0 0.0
    %2147 = vmatprep.subr.mxu0 0.0
    %2148 = vmatpush1.msra.mxu0 0.0
    %2149 = vmatprep.mubr.f32.mxu0 0.0
    %2150 = vmatmul.mubr.f32.gmra.mrb[0].mxu0 %v2080
    %v2151 = vpop.f32.mrb[0].mxu0
    %v2152 = vadd.f32 %v2077, %v2151
    %v2153 = vpop.f32.mrb[0].mxu0
    %2154 = vmatprep.mubr.f32.mxu0 0.0
    %2155 = vmatmul.mubr.f32.gmra.mrb[0].mxu0 %v2083
    %v2156 = vpop.f32.mrb[0].mxu0
    %v2157 = vadd.f32 %v2077, %v2156
    %v2158 = vpop.f32.mrb[0].mxu0
    %2159 = vdwg.mxu0
    %v2160 = vadd.f32 %v1972, %v2152
    %v2161 = vadd.f32 %v1973, %v2157
    %v2162 = vld [vmem:[%s13] sm:$0x1]
    %v2163 = vld [vmem:[%s14] sm:$0x1]
    %v2164 = vsel %vm168, %v2160, 0.0
    %2165 = vadd.xlane.f32.xlu0 %v2164
    %v2166 = vpop.xlane.xlu0 %2165
    %v2167 = vsel %vm168, %v2161, 0.0
    %2168 = vadd.xlane.f32.xlu0 %v2167
    %v2169 = vpop.xlane.xlu0 %2168
    %v2170 = vmul.f32 %v2166, %v1937
    %v2171 = vmul.f32 %v2169, %v1937
    %v2172 = vsub.f32 %v2160, %v2170
    %v2173 = vsub.f32 %v2161, %v2171
    %v2174 = vmul.f32 %v2172, %v2172
    %v2175 = vmul.f32 %v2173, %v2173
    %v2176 = vsel %vm168, %v2174, 0.0
    %2177 = vadd.xlane.f32.xlu0 %v2176
    %v2178 = vpop.xlane.xlu0 %2177
    %v2179 = vsel %vm168, %v2175, 0.0
    %2180 = vadd.xlane.f32.xlu0 %v2179
    %v2181 = vpop.xlane.xlu0 %2180
    %v2182 = vmul.f32 %v2178, %v1937
    %v2183 = vmul.f32 %v2181, %v1937
    %v2184 = vadd.f32 %v2182, 1e-05
    %v2185 = vadd.f32 %v2183, 1e-05
    %v2186 = vrsqrt.pop %v2184
    %v2187 = vrsqrt.pop %v2185
    %v2188 = vmul.f32 %v2172, %v2186
    %v2189 = vmul.f32 %v2173, %v2187
    %v2191 = vlaneseq
    %v2192 = vshrl.u32 %v2191, 7
    %v2193 = vsub.s32 0, %v2192
    %v2194 = vrot.slane %v2162, %v2193
    %v2196 = vmul.f32 %v2188, %v2194
    %v2197 = vmul.f32 %v2189, %v2194
    %v2199 = vlaneseq
    %v2200 = vshrl.u32 %v2199, 7
    %v2201 = vsub.s32 0, %v2200
    %v2202 = vrot.slane %v2163, %v2201
    %v2204 = vadd.f32 %v2196, %v2202
    %v2205 = vadd.f32 %v2197, %v2202
    %2206 = vst.msk [vmem:[#allocation16] sm:$0xff] %vm168, %v2204
    %2207 = vst.msk [vmem:[#allocation16 + $0x8] sm:$0xff] %vm168, %v2205
    // Predicated region
    $region94: #{tpu_custom_call.1} parent=1 // pred_check
      _
    $region95: #{tpu_custom_call.1} parent=1 // pred_check_branch
      %2209 = sbr.rel (0) target = $region97
    $region96: #{tpu_custom_call.1} parent=1 // pred_region
      %s2211 = ssub.s32 256, 256
      %2212 = vsyncadd [#allocation4], %s2211
      %s2213 = sshll.u32 [#allocation16], 4
      %s2214 = int_to_ptr.vmem [resolvable:$true] %s2213
      %2219 = dma.vmem_to_hbm [thread:$0]  %s2214, 256, %s15, [#allocation4], 128, 128, 8
    $region97: #{tpu_custom_call.1} parent=1 // pred_fallthru
      _
    // Predicated region
    $region98: #{tpu_custom_call.1} parent=1 // pred_check
      _
    $region99: #{tpu_custom_call.1} parent=1 // pred_check_branch
      %2221 = sbr.rel (0) target = $region101
    $region100: #{tpu_custom_call.1} parent=1 // pred_region
      %2222 = dma.done [#allocation4], 256
    $region101: #{tpu_custom_call.1} parent=1 // pred_fallthru
      _
    %2223 = vsyncpa [#allocation3], 1
    %2224 = vsyncpa [#allocation6], 1
    %2225 = vsyncpa [#allocation9], 1
    %2226 = vsyncpa [#allocation12], 1
    %2227 = vsyncpa [#allocation15], 1
    %2228 = vsyncpa [#allocation4], 1

</llo_original>
